<compile_context>
chip_gen: v7x
topology: tpu7x:2x2x1
jax: 0.10.0
libtpu: 0.0.40
codegen_flags: <defaults>
</compile_context>

<pallas_src>
import functools

import numpy as np
import jax
import jax.numpy as jnp
from jax import lax
from jax.experimental import pallas as pl
from jax.experimental.pallas import tpu as pltpu


# ----------------------------------------------------------------------------
# In-kernel helpers
# ----------------------------------------------------------------------------
def _im2col_into(col_ref, xb, masks, Wc, row0):
    """Write the 9 masked taps of a 3x3 / pad=1 / stride=1 conv into col_ref.

    xb    : (C, L) bf16 activation, L = NB * Hc * Wc, images packed on lanes.
    masks : (9, L) bf16 0/1 border masks (trace-time constants, per image).
    Rows [row0, row0 + 9*C) are written tap-major / channel-minor, matching the
    (Cout, 9*Cin) weight reshape.  Zero padding AND cross-image isolation of
    the flat roll are both realized by the single mask multiply per tap.
    Returns the number of rows written (9*C).
    """
    C = xb.shape[0]
    t = 0
    for dy in (-1, 0, 1):
        for dx in (-1, 0, 1):
            s = dy * Wc + dx                        # flat shift for this tap
            sh = xb if s == 0 else jnp.roll(xb, -s, axis=1)
            col_ref[pl.ds(row0 + t * C, C), :] = sh * masks[t:t + 1]
            t += 1
    return 9 * C


def _sim_kernel(x_ref, p_ref, u_ref, mh_ref, ml_ref,
                w0h_ref, b0h_ref, w0l_ref, b0l_ref,
                w1h_ref, b1h_ref, w1l_ref, b1l_ref,
                w2h_ref, b2h_ref,
                o_ref, colh_ref, coll_ref, *, W, Wl):
    x = x_ref[...].astype(jnp.bfloat16)   # (h_C, L_h): single bf16 copy of input
    P = p_ref[...]                        # (L_h, L_l) bf16 block-diag avg-pool
    U = u_ref[...]                        # (L_l, L_h) bf16 block-diag bilinear up
    mh = mh_ref[...]                      # (9, L_h) bf16 border masks (high res)
    ml = ml_ref[...]                      # (9, L_l) bf16 border masks (low res)

    def mm(a, b):                         # MXU matmul, f32 accumulation
        return jnp.dot(a, b, preferred_element_type=jnp.float32)

    def pool(a_bf):                       # (C, L_h) bf16 -> (C, L_l) bf16
        return mm(a_bf, P).astype(jnp.bfloat16)

    def up(a_bf):                         # (C, L_l) bf16 -> (C, L_h) bf16
        return mm(a_bf, U).astype(jnp.bfloat16)

    relu = lambda a: jnp.maximum(a, 0.0)  # epilogue stays f32 (v5e-safe)

    # stage 0:  x_h = relu(bnh_0(h2h_0(x)));  x_l = relu(bnl_0(h2l_0(pool(x))))
    k = _im2col_into(colh_ref, x, mh, W, 0)
    x_h = relu(mm(w0h_ref[...], colh_ref[pl.ds(0, k), :]) + b0h_ref[...])
    k = _im2col_into(coll_ref, pool(x), ml, Wl, 0)
    x_l = relu(mm(w0l_ref[...], coll_ref[pl.ds(0, k), :]) + b0l_ref[...])
    x_h_bf = x_h.astype(jnp.bfloat16)     # cast once, reused by im2col + pool
    x_l_bf = x_l.astype(jnp.bfloat16)     # cast once, reused by im2col + up

    # stage 1: residual pairs fused into one K-concatenated matmul each; BN
    #          (which wraps the sum incl. both conv biases) is folded in.
    k = _im2col_into(colh_ref, x_h_bf, mh, W, 0)
    k += _im2col_into(colh_ref, up(x_l_bf), mh, W, k)
    x_h1 = relu(mm(w1h_ref[...], colh_ref[pl.ds(0, k), :]) + b1h_ref[...])
    k = _im2col_into(coll_ref, x_l_bf, ml, Wl, 0)
    k += _im2col_into(coll_ref, pool(x_h_bf), ml, Wl, k)
    x_l1 = relu(mm(w1l_ref[...], coll_ref[pl.ds(0, k), :]) + b1l_ref[...])
    x_h1_bf = x_h1.astype(jnp.bfloat16)
    x_l1_bf = x_l1.astype(jnp.bfloat16)

    # stage 2
    k = _im2col_into(colh_ref, x_h1_bf, mh, W, 0)
    k += _im2col_into(colh_ref, up(x_l1_bf), mh, W, k)
    x_h2 = relu(mm(w2h_ref[...], colh_ref[pl.ds(0, k), :]) + b2h_ref[...])

    o_ref[...] = x_h2.astype(o_ref.dtype)   # lane-dense, unmasked store


# ----------------------------------------------------------------------------
# Trace-time constants: pool / upsample matrices, masks, BN folding
# ----------------------------------------------------------------------------
def _pool_matrix(H, W):
    """(H*W, H/2*W/2) matrix implementing AvgPool2d((2,2), stride=2)."""
    Hl, Wl = H // 2, W // 2
    P = np.zeros((H * W, Hl * Wl), np.float32)
    for y in range(H):
        for x in range(W):
            P[y * W + x, (y // 2) * Wl + (x // 2)] = 0.25
    return P


def _upsample_matrix(Hl, Wl, H, W):
    """(Hl*Wl, H*W) matrix for bilinear upsample, align_corners=False (PyTorch)."""
    U = np.zeros((Hl * Wl, H * W), np.float32)

    def src(i, osz, isz):
        s = max((i + 0.5) * (isz / osz) - 0.5, 0.0)
        i0 = min(int(np.floor(s)), isz - 1)
        i1 = min(i0 + 1, isz - 1)
        return i0, i1, s - i0

    for y in range(H):
        y0, y1, fy = src(y, H, Hl)
        for x in range(W):
            x0, x1, fx = src(x, W, Wl)
            U[y0 * Wl + x0, y * W + x] += (1 - fy) * (1 - fx)
            U[y0 * Wl + x1, y * W + x] += (1 - fy) * fx
            U[y1 * Wl + x0, y * W + x] += fy * (1 - fx)
            U[y1 * Wl + x1, y * W + x] += fy * fx
    return U


def _tap_masks(H, W, nb):
    """(9, nb*H*W) 0/1 masks: tap t=(dy,dx) is valid at output position p iff
    (y+dy, x+dx) lies inside the SAME image.  Computed from per-image
    coordinates, so the in-kernel flat roll never leaks across images."""
    yy, xx = np.mgrid[0:H, 0:W]
    rows = []
    for dy in (-1, 0, 1):
        for dx in (-1, 0, 1):
            v = ((yy + dy >= 0) & (yy + dy < H) &
                 (xx + dx >= 0) & (xx + dx < W))
            rows.append(v.reshape(-1))
    m = np.stack(rows).astype(np.float32)        # (9, H*W)
    return np.tile(m, (1, nb))                   # identical mask per image


def _reshape_w(w):
    # OIHW (Cout, Cin, 3, 3) -> (Cout, 9*Cin), tap-major / channel-minor,
    # matching the im2col row layout.
    return jnp.transpose(w, (0, 2, 3, 1)).reshape(w.shape[0], -1)


def _fold_bn(params, conv_names, bn_name, eps=1e-5):
    """Fold eval-mode BN into (possibly K-concatenated) conv weights + bias.

    Matches bn(convA(a) + convB(b)): both weights are scaled, both biases are
    summed inside the BN affine."""
    g = params[bn_name + '_g']
    beta = params[bn_name + '_b']
    m = params[bn_name + '_m']
    v = params[bn_name + '_v']
    scale = g / jnp.sqrt(v + eps)
    shift = beta - m * scale
    ws, bsum = [], 0.0
    for cn in conv_names:
        ws.append(_reshape_w(params[cn + '_w']) * scale[:, None])
        bsum = bsum + params[cn + '_b']
    w = jnp.concatenate(ws, axis=1).astype(jnp.bfloat16)
    b = (scale * bsum + shift).astype(jnp.float32)[:, None]     # (Cout, 1)
    return w, b


def _pick_nb(N, HW, HWl, max_lanes=2048):
    """Batch-tile size NB: prefer a full 128-lane tile on the low-res branch
    and (for v7x's 2 TensorCores) >= 2 grid steps whenever N allows."""
    divs = [d for d in range(1, N + 1) if N % d == 0 and d * HW <= max_lanes]
    if not divs:
        divs = [1]
    good = [d for d in divs if N // d >= 2 and d * HWl >= 128]
    if good:
        return max(good)
    return max(divs)


# ----------------------------------------------------------------------------
# Public wrapper
# ----------------------------------------------------------------------------
def sim_forward(x_nchw, params, *, nb=None):
    """SIM forward (eval mode).  x_nchw: (N, h_C, H, W) float32, PyTorch NCHW."""
    N, Ch, H, W = x_nchw.shape
    Hl, Wl = H // 2, W // 2
    HW, HWl = H * W, Hl * Wl
    l_C = params['h2l_0_w'].shape[0]
    if nb is None:
        nb = _pick_nb(N, HW, HWl)
    assert N % nb == 0, (N, nb)
    Lh, Ll = nb * HW, nb * HWl

    # NCHW -> channel-major with batch folded onto the lane axis: (C, N*H*W).
    xf = jnp.transpose(x_nchw.astype(jnp.float32), (1, 0, 2, 3)).reshape(Ch, N * HW)

    # Trace-time constants.  Pool / upsample matrices are block-diagonal over
    # the NB images of a batch tile (exact PyTorch semantics per image).
    eye = np.eye(nb, dtype=np.float32)
    P = jnp.asarray(np.kron(eye, _pool_matrix(H, W)), jnp.bfloat16)              # (Lh, Ll)
    U = jnp.asarray(np.kron(eye, _upsample_matrix(Hl, Wl, H, W)), jnp.bfloat16)  # (Ll, Lh)
    mh = jnp.asarray(_tap_masks(H, W, nb), jnp.bfloat16)                         # (9, Lh)
    ml = jnp.asarray(_tap_masks(Hl, Wl, nb), jnp.bfloat16)                       # (9, Ll)

    # TODO(synk): only eval-mode BatchNorm (running stats) is supported; it is
    # folded into the conv weights/bias below.  Training-mode batch statistics
    # are not implemented.
    w0h, b0h = _fold_bn(params, ['h2h_0'], 'bnh_0')
    w0l, b0l = _fold_bn(params, ['h2l_0'], 'bnl_0')
    w1h, b1h = _fold_bn(params, ['h2h_1', 'l2h_1'], 'bnh_1')
    w1l, b1l = _fold_bn(params, ['l2l_1', 'h2l_1'], 'bnl_1')
    w2h, b2h = _fold_bn(params, ['h2h_2', 'l2h_2'], 'bnh_2')

    consts = [P, U, mh, ml, w0h, b0h, w0l, b0l, w1h, b1h, w1l, b1l, w2h, b2h]

    def const_spec(a):
        # Block index never changes across the grid -> Pallas skips re-DMAing
        # these constants between consecutive grid steps.
        return pl.BlockSpec(a.shape, lambda i: (0,) * a.ndim)

    kcols = 9 * (Ch + l_C)   # rows of the fused (K-concatenated) im2col scratch

    out = pl.pallas_call(
        functools.partial(_sim_kernel, W=W, Wl=Wl),
        out_shape=jax.ShapeDtypeStruct((Ch, N * HW), jnp.float32),
        grid=(N // nb,),
        in_specs=[pl.BlockSpec((Ch, Lh), lambda i: (0, i))]
                 + [const_spec(a) for a in consts],
        out_specs=pl.BlockSpec((Ch, Lh), lambda i: (0, i)),
        scratch_shapes=[pltpu.VMEM((kcols, Lh), jnp.bfloat16),
                        pltpu.VMEM((kcols, Ll), jnp.bfloat16)],
        compiler_params=pltpu.CompilerParams(
            dimension_semantics=("parallel",)),
    )(xf, *consts)

    return out.reshape(Ch, N, H, W).transpose(1, 0, 2, 3)


# ----------------------------------------------------------------------------
# Synthetic parameters (PyTorch layouts) + pure-JAX reference for validation
# ----------------------------------------------------------------------------
_CONVS = [('h2l_0', 'h', 'l'), ('h2h_0', 'h', 'h'),
          ('h2h_1', 'h', 'h'), ('h2l_1', 'h', 'l'),
          ('l2h_1', 'l', 'h'), ('l2l_1', 'l', 'l'),
          ('h2h_2', 'h', 'h'), ('l2h_2', 'l', 'h')]
_BNS = [('bnl_0', 'l'), ('bnh_0', 'h'), ('bnl_1', 'l'),
        ('bnh_1', 'h'), ('bnh_2', 'h')]


def make_params(key, h_C, l_C):
    dim = {'h': h_C, 'l': l_C}
    params = {}
    keys = jax.random.split(key, 2 * len(_CONVS) + 4 * len(_BNS))
    ki = 0
    for name, cin_t, cout_t in _CONVS:
        cin, cout = dim[cin_t], dim[cout_t]
        params[name + '_w'] = 0.15 * jax.random.normal(
            keys[ki], (cout, cin, 3, 3), jnp.float32); ki += 1
        params[name + '_b'] = 0.1 * jax.random.normal(
            keys[ki], (cout,), jnp.float32); ki += 1
    for name, c_t in _BNS:
        c = dim[c_t]
        params[name + '_g'] = 1.0 + 0.1 * jax.random.normal(
            keys[ki], (c,), jnp.float32); ki += 1
        params[name + '_b'] = 0.1 * jax.random.normal(
            keys[ki], (c,), jnp.float32); ki += 1
        params[name + '_m'] = 0.1 * jax.random.normal(
            keys[ki], (c,), jnp.float32); ki += 1
        params[name + '_v'] = jnp.exp(0.2 * jax.random.normal(
            keys[ki], (c,), jnp.float32)); ki += 1
    return params


def _bn_args(p, name):
    return p[name + '_g'], p[name + '_b'], p[name + '_m'], p[name + '_v']


def ref_forward(x, p, eps=1e-5):
    """Plain-JAX reference (f32, NCHW) mirroring the PyTorch module."""
    def conv(a, w, b):
        out = lax.conv_general_dilated(
            a, w, window_strides=(1, 1), padding=((1, 1), (1, 1)),
            dimension_numbers=('NCHW', 'OIHW', 'NCHW'),
            precision=lax.Precision.HIGHEST)
        return out + b[None, :, None, None]

    def bn(a, g, beta, m, v):
        s = g / jnp.sqrt(v + eps)
        return a * s[None, :, None, None] + (beta - m * s)[None, :, None, None]

    def pool(a):
        n, c, hh, ww = a.shape
        return a.reshape(n, c, hh // 2, 2, ww // 2, 2).mean(axis=(3, 5))

    def up(a, Ho, Wo):
        _, _, hi, wi = a.shape

        def idx(osz, isz):
            t = (jnp.arange(osz, dtype=jnp.float32) + 0.5) * (isz / osz) - 0.5
            t = jnp.maximum(t, 0.0)
            i0 = jnp.minimum(jnp.floor(t).astype(jnp.int32), isz - 1)
            i1 = jnp.minimum(i0 + 1, isz - 1)
            return i0, i1, t - i0.astype(jnp.float32)

        y0, y1, fy = idx(Ho, hi)
        x0, x1, fx = idx(Wo, wi)
        top = (a[:, :, y0, :] * (1.0 - fy)[None, None, :, None]
               + a[:, :, y1, :] * fy[None, None, :, None])
        return (top[:, :, :, x0] * (1.0 - fx)[None, None, None, :]
                + top[:, :, :, x1] * fx[None, None, None, :])

    relu = lambda a: jnp.maximum(a, 0.0)
    H, W = x.shape[2:]
    x_h = relu(bn(conv(x, p['h2h_0_w'], p['h2h_0_b']), *_bn_args(p, 'bnh_0')))
    x_l = relu(bn(conv(pool(x), p['h2l_0_w'], p['h2l_0_b']), *_bn_args(p, 'bnl_0')))
    x_h2h = conv(x_h, p['h2h_1_w'], p['h2h_1_b'])
    x_h2l = conv(pool(x_h), p['h2l_1_w'], p['h2l_1_b'])
    x_l2l = conv(x_l, p['l2l_1_w'], p['l2l_1_b'])
    x_l2h = conv(up(x_l, H, W), p['l2h_1_w'], p['l2h_1_b'])
    x_h = relu(bn(x_h2h + x_l2h, *_bn_args(p, 'bnh_1')))
    x_l = relu(bn(x_l2l + x_h2l, *_bn_args(p, 'bnl_1')))
    x_h2h = conv(x_h, p['h2h_2_w'], p['h2h_2_b'])
    x_l2h = conv(up(x_l, H, W), p['l2h_2_w'], p['l2h_2_b'])
    return relu(bn(x_h2h + x_l2h, *_bn_args(p, 'bnh_2')))


if __name__ == "__main__":
    h_C, l_C = 8, 4
    N, H, W = 2, 16, 16

    key = jax.random.PRNGKey(0)
    k_x, k_p = jax.random.split(key)
    x = jax.random.normal(k_x, (N, h_C, H, W), jnp.float32)   # NCHW, like PyTorch
    params = make_params(k_p, h_C, l_C)

    out = jax.block_until_ready(jax.jit(sim_forward)(x, params))
    assert out.shape == (N, h_C, H, W)
    assert bool(jnp.all(jnp.isfinite(out)))

    ref = jax.block_until_ready(ref_forward(x, params))
    err = float(jnp.max(jnp.abs(out - ref)))
    # bf16 MXU operands with f32 accumulation -> small numerical difference.
    assert err < 0.2, f"kernel/reference mismatch: max abs err = {err}"

    print("KERNEL_OK")
</pallas_src>

<mosaic_0001>
module attributes {stable_mosaic.version = 11 : i64} {
  func.func @_sim_kernel(%arg0: i32, %arg1: memref<8x512xf32, #tpu.memory_space<vmem>>, %arg2: memref<512x128xbf16, #tpu.memory_space<vmem>>, %arg3: memref<128x512xbf16, #tpu.memory_space<vmem>>, %arg4: memref<9x512xbf16, #tpu.memory_space<vmem>>, %arg5: memref<9x128xbf16, #tpu.memory_space<vmem>>, %arg6: memref<8x72xbf16, #tpu.memory_space<vmem>>, %arg7: memref<8x1xf32, #tpu.memory_space<vmem>>, %arg8: memref<4x72xbf16, #tpu.memory_space<vmem>>, %arg9: memref<4x1xf32, #tpu.memory_space<vmem>>, %arg10: memref<8x108xbf16, #tpu.memory_space<vmem>>, %arg11: memref<8x1xf32, #tpu.memory_space<vmem>>, %arg12: memref<4x108xbf16, #tpu.memory_space<vmem>>, %arg13: memref<4x1xf32, #tpu.memory_space<vmem>>, %arg14: memref<8x108xbf16, #tpu.memory_space<vmem>>, %arg15: memref<8x1xf32, #tpu.memory_space<vmem>>, %arg16: memref<8x512xf32, #tpu.memory_space<vmem>>, %arg17: memref<108x512xbf16, #tpu.memory_space<vmem>>, %arg18: memref<108x128xbf16, #tpu.memory_space<vmem>>) attributes {dimension_semantics = [#tpu.dimension_semantics<parallel>], iteration_bounds = array<i64: 1>, scalar_prefetch = 0 : i64, scratch_operands = 2 : i64, tpu.core_type = #tpu.core_type<tc>, window_params = [{transform_indices = @transform_0, window_bounds = array<i64: 8, 512>}, {pipeline_mode = #tpu.pipeline_mode<synchronous>, transform_indices = @transform_1, window_bounds = array<i64: 512, 128>}, {pipeline_mode = #tpu.pipeline_mode<synchronous>, transform_indices = @transform_2, window_bounds = array<i64: 128, 512>}, {pipeline_mode = #tpu.pipeline_mode<synchronous>, transform_indices = @transform_3, window_bounds = array<i64: 9, 512>}, {pipeline_mode = #tpu.pipeline_mode<synchronous>, transform_indices = @transform_4, window_bounds = array<i64: 9, 128>}, {pipeline_mode = #tpu.pipeline_mode<synchronous>, transform_indices = @transform_5, window_bounds = array<i64: 8, 72>}, {pipeline_mode = #tpu.pipeline_mode<synchronous>, transform_indices = @transform_6, window_bounds = array<i64: 8, 1>}, {pipeline_mode = #tpu.pipeline_mode<synchronous>, transform_indices = @transform_7, window_bounds = array<i64: 4, 72>}, {pipeline_mode = #tpu.pipeline_mode<synchronous>, transform_indices = @transform_8, window_bounds = array<i64: 4, 1>}, {pipeline_mode = #tpu.pipeline_mode<synchronous>, transform_indices = @transform_9, window_bounds = array<i64: 8, 108>}, {pipeline_mode = #tpu.pipeline_mode<synchronous>, transform_indices = @transform_10, window_bounds = array<i64: 8, 1>}, {pipeline_mode = #tpu.pipeline_mode<synchronous>, transform_indices = @transform_11, window_bounds = array<i64: 4, 108>}, {pipeline_mode = #tpu.pipeline_mode<synchronous>, transform_indices = @transform_12, window_bounds = array<i64: 4, 1>}, {pipeline_mode = #tpu.pipeline_mode<synchronous>, transform_indices = @transform_13, window_bounds = array<i64: 8, 108>}, {pipeline_mode = #tpu.pipeline_mode<synchronous>, transform_indices = @transform_14, window_bounds = array<i64: 8, 1>}, {transform_indices = @transform_15, window_bounds = array<i64: 8, 512>}]} {
    %c0 = arith.constant 0 : index
    %c0_0 = arith.constant 0 : index
    %0 = vector.load %arg1[%c0, %c0_0] : memref<8x512xf32, #tpu.memory_space<vmem>>, vector<8x512xf32>
    %1 = arith.truncf %0 : vector<8x512xf32> to vector<8x512xbf16>
    %c0_1 = arith.constant 0 : index
    %c0_2 = arith.constant 0 : index
    %2 = vector.load %arg2[%c0_1, %c0_2] : memref<512x128xbf16, #tpu.memory_space<vmem>>, vector<512x128xbf16>
    %c0_3 = arith.constant 0 : index
    %c0_4 = arith.constant 0 : index
    %3 = vector.load %arg3[%c0_3, %c0_4] : memref<128x512xbf16, #tpu.memory_space<vmem>>, vector<128x512xbf16>
    %c0_5 = arith.constant 0 : index
    %c0_6 = arith.constant 0 : index
    %4 = vector.load %arg4[%c0_5, %c0_6] : memref<9x512xbf16, #tpu.memory_space<vmem>>, vector<9x512xbf16>
    %c0_7 = arith.constant 0 : index
    %c0_8 = arith.constant 0 : index
    %5 = vector.load %arg5[%c0_7, %c0_8] : memref<9x128xbf16, #tpu.memory_space<vmem>>, vector<9x128xbf16>
    %6 = vector.extract_strided_slice %1 {offsets = [0, 495], sizes = [8, 17], strides = [1, 1]} : vector<8x512xbf16> to vector<8x17xbf16>
    %7 = vector.extract_strided_slice %1 {offsets = [0, 0], sizes = [8, 495], strides = [1, 1]} : vector<8x512xbf16> to vector<8x495xbf16>
    %8 = tpu.concatenate %6, %7 in 1 : vector<8x17xbf16>, vector<8x495xbf16> -> vector<8x512xbf16>
    %9 = vector.extract_strided_slice %4 {offsets = [0, 0], sizes = [1, 512], strides = [1, 1]} : vector<9x512xbf16> to vector<1x512xbf16>
    %10 = vector.broadcast %9 : vector<1x512xbf16> to vector<8x512xbf16>
    %11 = arith.mulf %8, %10 : vector<8x512xbf16>
    %c0_9 = arith.constant 0 : index
    %c0_10 = arith.constant 0 : index
    %12 = vector.load %arg17[%c0_9, %c0_10] : memref<108x512xbf16, #tpu.memory_space<vmem>>, vector<8x512xbf16>
    tpu.vector_store %arg17[%c0_9, %c0_10], %11 {strides = array<i32>} : memref<108x512xbf16, #tpu.memory_space<vmem>>, vector<8x512xbf16>,
    %13 = vector.extract_strided_slice %1 {offsets = [0, 496], sizes = [8, 16], strides = [1, 1]} : vector<8x512xbf16> to vector<8x16xbf16>
    %14 = vector.extract_strided_slice %1 {offsets = [0, 0], sizes = [8, 496], strides = [1, 1]} : vector<8x512xbf16> to vector<8x496xbf16>
    %15 = tpu.concatenate %13, %14 in 1 : vector<8x16xbf16>, vector<8x496xbf16> -> vector<8x512xbf16>
    %16 = vector.extract_strided_slice %4 {offsets = [1, 0], sizes = [1, 512], strides = [1, 1]} : vector<9x512xbf16> to vector<1x512xbf16>
    %17 = vector.broadcast %16 : vector<1x512xbf16> to vector<8x512xbf16>
    %18 = arith.mulf %15, %17 : vector<8x512xbf16>
    %c8 = arith.constant 8 : index
    %c0_11 = arith.constant 0 : index
    %19 = vector.load %arg17[%c8, %c0_11] : memref<108x512xbf16, #tpu.memory_space<vmem>>, vector<8x512xbf16>
    tpu.vector_store %arg17[%c8, %c0_11], %18 {strides = array<i32>} : memref<108x512xbf16, #tpu.memory_space<vmem>>, vector<8x512xbf16>,
    %20 = vector.extract_strided_slice %1 {offsets = [0, 497], sizes = [8, 15], strides = [1, 1]} : vector<8x512xbf16> to vector<8x15xbf16>
    %21 = vector.extract_strided_slice %1 {offsets = [0, 0], sizes = [8, 497], strides = [1, 1]} : vector<8x512xbf16> to vector<8x497xbf16>
    %22 = tpu.concatenate %20, %21 in 1 : vector<8x15xbf16>, vector<8x497xbf16> -> vector<8x512xbf16>
    %23 = vector.extract_strided_slice %4 {offsets = [2, 0], sizes = [1, 512], strides = [1, 1]} : vector<9x512xbf16> to vector<1x512xbf16>
    %24 = vector.broadcast %23 : vector<1x512xbf16> to vector<8x512xbf16>
    %25 = arith.mulf %22, %24 : vector<8x512xbf16>
    %c16 = arith.constant 16 : index
    %c0_12 = arith.constant 0 : index
    %26 = vector.load %arg17[%c16, %c0_12] : memref<108x512xbf16, #tpu.memory_space<vmem>>, vector<8x512xbf16>
    tpu.vector_store %arg17[%c16, %c0_12], %25 {strides = array<i32>} : memref<108x512xbf16, #tpu.memory_space<vmem>>, vector<8x512xbf16>,
    %27 = vector.extract_strided_slice %1 {offsets = [0, 511], sizes = [8, 1], strides = [1, 1]} : vector<8x512xbf16> to vector<8x1xbf16>
    %28 = vector.extract_strided_slice %1 {offsets = [0, 0], sizes = [8, 511], strides = [1, 1]} : vector<8x512xbf16> to vector<8x511xbf16>
    %29 = tpu.concatenate %27, %28 in 1 : vector<8x1xbf16>, vector<8x511xbf16> -> vector<8x512xbf16>
    %30 = vector.extract_strided_slice %4 {offsets = [3, 0], sizes = [1, 512], strides = [1, 1]} : vector<9x512xbf16> to vector<1x512xbf16>
    %31 = vector.broadcast %30 : vector<1x512xbf16> to vector<8x512xbf16>
    %32 = arith.mulf %29, %31 : vector<8x512xbf16>
    %c24 = arith.constant 24 : index
    %c0_13 = arith.constant 0 : index
    %33 = vector.load %arg17[%c24, %c0_13] : memref<108x512xbf16, #tpu.memory_space<vmem>>, vector<8x512xbf16>
    tpu.vector_store %arg17[%c24, %c0_13], %32 {strides = array<i32>} : memref<108x512xbf16, #tpu.memory_space<vmem>>, vector<8x512xbf16>,
    %34 = vector.extract_strided_slice %4 {offsets = [4, 0], sizes = [1, 512], strides = [1, 1]} : vector<9x512xbf16> to vector<1x512xbf16>
    %35 = vector.broadcast %34 : vector<1x512xbf16> to vector<8x512xbf16>
    %36 = arith.mulf %1, %35 : vector<8x512xbf16>
    %c32 = arith.constant 32 : index
    %c0_14 = arith.constant 0 : index
    %37 = vector.load %arg17[%c32, %c0_14] : memref<108x512xbf16, #tpu.memory_space<vmem>>, vector<8x512xbf16>
    tpu.vector_store %arg17[%c32, %c0_14], %36 {strides = array<i32>} : memref<108x512xbf16, #tpu.memory_space<vmem>>, vector<8x512xbf16>,
    %38 = vector.extract_strided_slice %1 {offsets = [0, 1], sizes = [8, 511], strides = [1, 1]} : vector<8x512xbf16> to vector<8x511xbf16>
    %39 = vector.extract_strided_slice %1 {offsets = [0, 0], sizes = [8, 1], strides = [1, 1]} : vector<8x512xbf16> to vector<8x1xbf16>
    %40 = tpu.concatenate %38, %39 in 1 : vector<8x511xbf16>, vector<8x1xbf16> -> vector<8x512xbf16>
    %41 = vector.extract_strided_slice %4 {offsets = [5, 0], sizes = [1, 512], strides = [1, 1]} : vector<9x512xbf16> to vector<1x512xbf16>
    %42 = vector.broadcast %41 : vector<1x512xbf16> to vector<8x512xbf16>
    %43 = arith.mulf %40, %42 : vector<8x512xbf16>
    %c40 = arith.constant 40 : index
    %c0_15 = arith.constant 0 : index
    %44 = vector.load %arg17[%c40, %c0_15] : memref<108x512xbf16, #tpu.memory_space<vmem>>, vector<8x512xbf16>
    tpu.vector_store %arg17[%c40, %c0_15], %43 {strides = array<i32>} : memref<108x512xbf16, #tpu.memory_space<vmem>>, vector<8x512xbf16>,
    %45 = vector.extract_strided_slice %1 {offsets = [0, 15], sizes = [8, 497], strides = [1, 1]} : vector<8x512xbf16> to vector<8x497xbf16>
    %46 = vector.extract_strided_slice %1 {offsets = [0, 0], sizes = [8, 15], strides = [1, 1]} : vector<8x512xbf16> to vector<8x15xbf16>
    %47 = tpu.concatenate %45, %46 in 1 : vector<8x497xbf16>, vector<8x15xbf16> -> vector<8x512xbf16>
    %48 = vector.extract_strided_slice %4 {offsets = [6, 0], sizes = [1, 512], strides = [1, 1]} : vector<9x512xbf16> to vector<1x512xbf16>
    %49 = vector.broadcast %48 : vector<1x512xbf16> to vector<8x512xbf16>
    %50 = arith.mulf %47, %49 : vector<8x512xbf16>
    %c48 = arith.constant 48 : index
    %c0_16 = arith.constant 0 : index
    %51 = vector.load %arg17[%c48, %c0_16] : memref<108x512xbf16, #tpu.memory_space<vmem>>, vector<8x512xbf16>
    tpu.vector_store %arg17[%c48, %c0_16], %50 {strides = array<i32>} : memref<108x512xbf16, #tpu.memory_space<vmem>>, vector<8x512xbf16>,
    %52 = vector.extract_strided_slice %1 {offsets = [0, 16], sizes = [8, 496], strides = [1, 1]} : vector<8x512xbf16> to vector<8x496xbf16>
    %53 = vector.extract_strided_slice %1 {offsets = [0, 0], sizes = [8, 16], strides = [1, 1]} : vector<8x512xbf16> to vector<8x16xbf16>
    %54 = tpu.concatenate %52, %53 in 1 : vector<8x496xbf16>, vector<8x16xbf16> -> vector<8x512xbf16>
    %55 = vector.extract_strided_slice %4 {offsets = [7, 0], sizes = [1, 512], strides = [1, 1]} : vector<9x512xbf16> to vector<1x512xbf16>
    %56 = vector.broadcast %55 : vector<1x512xbf16> to vector<8x512xbf16>
    %57 = arith.mulf %54, %56 : vector<8x512xbf16>
    %c56 = arith.constant 56 : index
    %c0_17 = arith.constant 0 : index
    %58 = vector.load %arg17[%c56, %c0_17] : memref<108x512xbf16, #tpu.memory_space<vmem>>, vector<8x512xbf16>
    tpu.vector_store %arg17[%c56, %c0_17], %57 {strides = array<i32>} : memref<108x512xbf16, #tpu.memory_space<vmem>>, vector<8x512xbf16>,
    %59 = vector.extract_strided_slice %1 {offsets = [0, 17], sizes = [8, 495], strides = [1, 1]} : vector<8x512xbf16> to vector<8x495xbf16>
    %60 = vector.extract_strided_slice %1 {offsets = [0, 0], sizes = [8, 17], strides = [1, 1]} : vector<8x512xbf16> to vector<8x17xbf16>
    %61 = tpu.concatenate %59, %60 in 1 : vector<8x495xbf16>, vector<8x17xbf16> -> vector<8x512xbf16>
    %62 = vector.extract_strided_slice %4 {offsets = [8, 0], sizes = [1, 512], strides = [1, 1]} : vector<9x512xbf16> to vector<1x512xbf16>
    %63 = vector.broadcast %62 : vector<1x512xbf16> to vector<8x512xbf16>
    %64 = arith.mulf %61, %63 : vector<8x512xbf16>
    %c64 = arith.constant 64 : index
    %c0_18 = arith.constant 0 : index
    %65 = vector.load %arg17[%c64, %c0_18] : memref<108x512xbf16, #tpu.memory_space<vmem>>, vector<8x512xbf16>
    tpu.vector_store %arg17[%c64, %c0_18], %64 {strides = array<i32>} : memref<108x512xbf16, #tpu.memory_space<vmem>>, vector<8x512xbf16>,
    %c0_19 = arith.constant 0 : index
    %c0_20 = arith.constant 0 : index
    %66 = vector.load %arg6[%c0_19, %c0_20] : memref<8x72xbf16, #tpu.memory_space<vmem>>, vector<8x72xbf16>
    %c0_21 = arith.constant 0 : index
    %c0_22 = arith.constant 0 : index
    %67 = vector.load %arg17[%c0_21, %c0_22] : memref<108x512xbf16, #tpu.memory_space<vmem>>, vector<72x512xbf16>
    %cst = arith.constant dense<0.000000e+00> : vector<8x512xf32>
    %68 = tpu.matmul %66, %67, %cst {dimension_numbers = #tpu.dot_dimension_numbers<[1], [0], [0], [1], [0, 0, 1, 1], [], []>} : vector<8x72xbf16>, vector<72x512xbf16>, vector<8x512xf32> -> vector<8x512xf32>
    %c0_23 = arith.constant 0 : index
    %c0_24 = arith.constant 0 : index
    %69 = vector.load %arg7[%c0_23, %c0_24] : memref<8x1xf32, #tpu.memory_space<vmem>>, vector<8x1xf32>
    %70 = vector.broadcast %69 : vector<8x1xf32> to vector<8x512xf32>
    %71 = arith.addf %68, %70 : vector<8x512xf32>
    %cst_25 = arith.constant 0.000000e+00 : f32
    %72 = vector.broadcast %cst_25 : f32 to vector<8x512xf32>
    %73 = arith.maximumf %71, %72 : vector<8x512xf32>
    %cst_26 = arith.constant dense<0.000000e+00> : vector<8x128xf32>
    %74 = tpu.matmul %1, %2, %cst_26 {dimension_numbers = #tpu.dot_dimension_numbers<[1], [0], [0], [1], [0, 0, 1, 1], [], []>} : vector<8x512xbf16>, vector<512x128xbf16>, vector<8x128xf32> -> vector<8x128xf32>
    %75 = arith.truncf %74 : vector<8x128xf32> to vector<8x128xbf16>
    %76 = vector.extract_strided_slice %75 {offsets = [0, 119], sizes = [8, 9], strides = [1, 1]} : vector<8x128xbf16> to vector<8x9xbf16>
    %77 = vector.extract_strided_slice %75 {offsets = [0, 0], sizes = [8, 119], strides = [1, 1]} : vector<8x128xbf16> to vector<8x119xbf16>
    %78 = tpu.concatenate %76, %77 in 1 : vector<8x9xbf16>, vector<8x119xbf16> -> vector<8x128xbf16>
    %79 = vector.extract_strided_slice %5 {offsets = [0, 0], sizes = [1, 128], strides = [1, 1]} : vector<9x128xbf16> to vector<1x128xbf16>
    %80 = vector.broadcast %79 : vector<1x128xbf16> to vector<8x128xbf16>
    %81 = arith.mulf %78, %80 : vector<8x128xbf16>
    %c0_27 = arith.constant 0 : index
    %c0_28 = arith.constant 0 : index
    %82 = vector.load %arg18[%c0_27, %c0_28] : memref<108x128xbf16, #tpu.memory_space<vmem>>, vector<8x128xbf16>
    tpu.vector_store %arg18[%c0_27, %c0_28], %81 {strides = array<i32>} : memref<108x128xbf16, #tpu.memory_space<vmem>>, vector<8x128xbf16>,
    %83 = vector.extract_strided_slice %75 {offsets = [0, 120], sizes = [8, 8], strides = [1, 1]} : vector<8x128xbf16> to vector<8x8xbf16>
    %84 = vector.extract_strided_slice %75 {offsets = [0, 0], sizes = [8, 120], strides = [1, 1]} : vector<8x128xbf16> to vector<8x120xbf16>
    %85 = tpu.concatenate %83, %84 in 1 : vector<8x8xbf16>, vector<8x120xbf16> -> vector<8x128xbf16>
    %86 = vector.extract_strided_slice %5 {offsets = [1, 0], sizes = [1, 128], strides = [1, 1]} : vector<9x128xbf16> to vector<1x128xbf16>
    %87 = vector.broadcast %86 : vector<1x128xbf16> to vector<8x128xbf16>
    %88 = arith.mulf %85, %87 : vector<8x128xbf16>
    %c8_29 = arith.constant 8 : index
    %c0_30 = arith.constant 0 : index
    %89 = vector.load %arg18[%c8_29, %c0_30] : memref<108x128xbf16, #tpu.memory_space<vmem>>, vector<8x128xbf16>
    tpu.vector_store %arg18[%c8_29, %c0_30], %88 {strides = array<i32>} : memref<108x128xbf16, #tpu.memory_space<vmem>>, vector<8x128xbf16>,
    %90 = vector.extract_strided_slice %75 {offsets = [0, 121], sizes = [8, 7], strides = [1, 1]} : vector<8x128xbf16> to vector<8x7xbf16>
    %91 = vector.extract_strided_slice %75 {offsets = [0, 0], sizes = [8, 121], strides = [1, 1]} : vector<8x128xbf16> to vector<8x121xbf16>
    %92 = tpu.concatenate %90, %91 in 1 : vector<8x7xbf16>, vector<8x121xbf16> -> vector<8x128xbf16>
    %93 = vector.extract_strided_slice %5 {offsets = [2, 0], sizes = [1, 128], strides = [1, 1]} : vector<9x128xbf16> to vector<1x128xbf16>
    %94 = vector.broadcast %93 : vector<1x128xbf16> to vector<8x128xbf16>
    %95 = arith.mulf %92, %94 : vector<8x128xbf16>
    %c16_31 = arith.constant 16 : index
    %c0_32 = arith.constant 0 : index
    %96 = vector.load %arg18[%c16_31, %c0_32] : memref<108x128xbf16, #tpu.memory_space<vmem>>, vector<8x128xbf16>
    tpu.vector_store %arg18[%c16_31, %c0_32], %95 {strides = array<i32>} : memref<108x128xbf16, #tpu.memory_space<vmem>>, vector<8x128xbf16>,
    %97 = vector.extract_strided_slice %75 {offsets = [0, 127], sizes = [8, 1], strides = [1, 1]} : vector<8x128xbf16> to vector<8x1xbf16>
    %98 = vector.extract_strided_slice %75 {offsets = [0, 0], sizes = [8, 127], strides = [1, 1]} : vector<8x128xbf16> to vector<8x127xbf16>
    %99 = tpu.concatenate %97, %98 in 1 : vector<8x1xbf16>, vector<8x127xbf16> -> vector<8x128xbf16>
    %100 = vector.extract_strided_slice %5 {offsets = [3, 0], sizes = [1, 128], strides = [1, 1]} : vector<9x128xbf16> to vector<1x128xbf16>
    %101 = vector.broadcast %100 : vector<1x128xbf16> to vector<8x128xbf16>
    %102 = arith.mulf %99, %101 : vector<8x128xbf16>
    %c24_33 = arith.constant 24 : index
    %c0_34 = arith.constant 0 : index
    %103 = vector.load %arg18[%c24_33, %c0_34] : memref<108x128xbf16, #tpu.memory_space<vmem>>, vector<8x128xbf16>
    tpu.vector_store %arg18[%c24_33, %c0_34], %102 {strides = array<i32>} : memref<108x128xbf16, #tpu.memory_space<vmem>>, vector<8x128xbf16>,
    %104 = vector.extract_strided_slice %5 {offsets = [4, 0], sizes = [1, 128], strides = [1, 1]} : vector<9x128xbf16> to vector<1x128xbf16>
    %105 = vector.broadcast %104 : vector<1x128xbf16> to vector<8x128xbf16>
    %106 = arith.mulf %75, %105 : vector<8x128xbf16>
    %c32_35 = arith.constant 32 : index
    %c0_36 = arith.constant 0 : index
    %107 = vector.load %arg18[%c32_35, %c0_36] : memref<108x128xbf16, #tpu.memory_space<vmem>>, vector<8x128xbf16>
    tpu.vector_store %arg18[%c32_35, %c0_36], %106 {strides = array<i32>} : memref<108x128xbf16, #tpu.memory_space<vmem>>, vector<8x128xbf16>,
    %108 = vector.extract_strided_slice %75 {offsets = [0, 1], sizes = [8, 127], strides = [1, 1]} : vector<8x128xbf16> to vector<8x127xbf16>
    %109 = vector.extract_strided_slice %75 {offsets = [0, 0], sizes = [8, 1], strides = [1, 1]} : vector<8x128xbf16> to vector<8x1xbf16>
    %110 = tpu.concatenate %108, %109 in 1 : vector<8x127xbf16>, vector<8x1xbf16> -> vector<8x128xbf16>
    %111 = vector.extract_strided_slice %5 {offsets = [5, 0], sizes = [1, 128], strides = [1, 1]} : vector<9x128xbf16> to vector<1x128xbf16>
    %112 = vector.broadcast %111 : vector<1x128xbf16> to vector<8x128xbf16>
    %113 = arith.mulf %110, %112 : vector<8x128xbf16>
    %c40_37 = arith.constant 40 : index
    %c0_38 = arith.constant 0 : index
    %114 = vector.load %arg18[%c40_37, %c0_38] : memref<108x128xbf16, #tpu.memory_space<vmem>>, vector<8x128xbf16>
    tpu.vector_store %arg18[%c40_37, %c0_38], %113 {strides = array<i32>} : memref<108x128xbf16, #tpu.memory_space<vmem>>, vector<8x128xbf16>,
    %115 = vector.extract_strided_slice %75 {offsets = [0, 7], sizes = [8, 121], strides = [1, 1]} : vector<8x128xbf16> to vector<8x121xbf16>
    %116 = vector.extract_strided_slice %75 {offsets = [0, 0], sizes = [8, 7], strides = [1, 1]} : vector<8x128xbf16> to vector<8x7xbf16>
    %117 = tpu.concatenate %115, %116 in 1 : vector<8x121xbf16>, vector<8x7xbf16> -> vector<8x128xbf16>
    %118 = vector.extract_strided_slice %5 {offsets = [6, 0], sizes = [1, 128], strides = [1, 1]} : vector<9x128xbf16> to vector<1x128xbf16>
    %119 = vector.broadcast %118 : vector<1x128xbf16> to vector<8x128xbf16>
    %120 = arith.mulf %117, %119 : vector<8x128xbf16>
    %c48_39 = arith.constant 48 : index
    %c0_40 = arith.constant 0 : index
    %121 = vector.load %arg18[%c48_39, %c0_40] : memref<108x128xbf16, #tpu.memory_space<vmem>>, vector<8x128xbf16>
    tpu.vector_store %arg18[%c48_39, %c0_40], %120 {strides = array<i32>} : memref<108x128xbf16, #tpu.memory_space<vmem>>, vector<8x128xbf16>,
    %122 = vector.extract_strided_slice %75 {offsets = [0, 8], sizes = [8, 120], strides = [1, 1]} : vector<8x128xbf16> to vector<8x120xbf16>
    %123 = vector.extract_strided_slice %75 {offsets = [0, 0], sizes = [8, 8], strides = [1, 1]} : vector<8x128xbf16> to vector<8x8xbf16>
    %124 = tpu.concatenate %122, %123 in 1 : vector<8x120xbf16>, vector<8x8xbf16> -> vector<8x128xbf16>
    %125 = vector.extract_strided_slice %5 {offsets = [7, 0], sizes = [1, 128], strides = [1, 1]} : vector<9x128xbf16> to vector<1x128xbf16>
    %126 = vector.broadcast %125 : vector<1x128xbf16> to vector<8x128xbf16>
    %127 = arith.mulf %124, %126 : vector<8x128xbf16>
    %c56_41 = arith.constant 56 : index
    %c0_42 = arith.constant 0 : index
    %128 = vector.load %arg18[%c56_41, %c0_42] : memref<108x128xbf16, #tpu.memory_space<vmem>>, vector<8x128xbf16>
    tpu.vector_store %arg18[%c56_41, %c0_42], %127 {strides = array<i32>} : memref<108x128xbf16, #tpu.memory_space<vmem>>, vector<8x128xbf16>,
    %129 = vector.extract_strided_slice %75 {offsets = [0, 9], sizes = [8, 119], strides = [1, 1]} : vector<8x128xbf16> to vector<8x119xbf16>
    %130 = vector.extract_strided_slice %75 {offsets = [0, 0], sizes = [8, 9], strides = [1, 1]} : vector<8x128xbf16> to vector<8x9xbf16>
    %131 = tpu.concatenate %129, %130 in 1 : vector<8x119xbf16>, vector<8x9xbf16> -> vector<8x128xbf16>
    %132 = vector.extract_strided_slice %5 {offsets = [8, 0], sizes = [1, 128], strides = [1, 1]} : vector<9x128xbf16> to vector<1x128xbf16>
    %133 = vector.broadcast %132 : vector<1x128xbf16> to vector<8x128xbf16>
    %134 = arith.mulf %131, %133 : vector<8x128xbf16>
    %c64_43 = arith.constant 64 : index
    %c0_44 = arith.constant 0 : index
    %135 = vector.load %arg18[%c64_43, %c0_44] : memref<108x128xbf16, #tpu.memory_space<vmem>>, vector<8x128xbf16>
    tpu.vector_store %arg18[%c64_43, %c0_44], %134 {strides = array<i32>} : memref<108x128xbf16, #tpu.memory_space<vmem>>, vector<8x128xbf16>,
    %c0_45 = arith.constant 0 : index
    %c0_46 = arith.constant 0 : index
    %136 = vector.load %arg8[%c0_45, %c0_46] : memref<4x72xbf16, #tpu.memory_space<vmem>>, vector<4x72xbf16>
    %c0_47 = arith.constant 0 : index
    %c0_48 = arith.constant 0 : index
    %137 = vector.load %arg18[%c0_47, %c0_48] : memref<108x128xbf16, #tpu.memory_space<vmem>>, vector<72x128xbf16>
    %cst_49 = arith.constant dense<0.000000e+00> : vector<4x128xf32>
    %138 = tpu.matmul %136, %137, %cst_49 {dimension_numbers = #tpu.dot_dimension_numbers<[1], [0], [0], [1], [0, 0, 1, 1], [], []>} : vector<4x72xbf16>, vector<72x128xbf16>, vector<4x128xf32> -> vector<4x128xf32>
    %c0_50 = arith.constant 0 : index
    %c0_51 = arith.constant 0 : index
    %139 = vector.load %arg9[%c0_50, %c0_51] : memref<4x1xf32, #tpu.memory_space<vmem>>, vector<4x1xf32>
    %140 = vector.broadcast %139 : vector<4x1xf32> to vector<4x128xf32>
    %141 = arith.addf %138, %140 : vector<4x128xf32>
    %cst_52 = arith.constant 0.000000e+00 : f32
    %142 = vector.broadcast %cst_52 : f32 to vector<4x128xf32>
    %143 = arith.maximumf %141, %142 : vector<4x128xf32>
    %144 = arith.truncf %73 : vector<8x512xf32> to vector<8x512xbf16>
    %145 = arith.truncf %143 : vector<4x128xf32> to vector<4x128xbf16>
    %146 = vector.extract_strided_slice %144 {offsets = [0, 495], sizes = [8, 17], strides = [1, 1]} : vector<8x512xbf16> to vector<8x17xbf16>
    %147 = vector.extract_strided_slice %144 {offsets = [0, 0], sizes = [8, 495], strides = [1, 1]} : vector<8x512xbf16> to vector<8x495xbf16>
    %148 = tpu.concatenate %146, %147 in 1 : vector<8x17xbf16>, vector<8x495xbf16> -> vector<8x512xbf16>
    %149 = vector.extract_strided_slice %4 {offsets = [0, 0], sizes = [1, 512], strides = [1, 1]} : vector<9x512xbf16> to vector<1x512xbf16>
    %150 = vector.broadcast %149 : vector<1x512xbf16> to vector<8x512xbf16>
    %151 = arith.mulf %148, %150 : vector<8x512xbf16>
    %c0_53 = arith.constant 0 : index
    %c0_54 = arith.constant 0 : index
    %152 = vector.load %arg17[%c0_53, %c0_54] : memref<108x512xbf16, #tpu.memory_space<vmem>>, vector<8x512xbf16>
    tpu.vector_store %arg17[%c0_53, %c0_54], %151 {strides = array<i32>} : memref<108x512xbf16, #tpu.memory_space<vmem>>, vector<8x512xbf16>,
    %153 = vector.extract_strided_slice %144 {offsets = [0, 496], sizes = [8, 16], strides = [1, 1]} : vector<8x512xbf16> to vector<8x16xbf16>
    %154 = vector.extract_strided_slice %144 {offsets = [0, 0], sizes = [8, 496], strides = [1, 1]} : vector<8x512xbf16> to vector<8x496xbf16>
    %155 = tpu.concatenate %153, %154 in 1 : vector<8x16xbf16>, vector<8x496xbf16> -> vector<8x512xbf16>
    %156 = vector.extract_strided_slice %4 {offsets = [1, 0], sizes = [1, 512], strides = [1, 1]} : vector<9x512xbf16> to vector<1x512xbf16>
    %157 = vector.broadcast %156 : vector<1x512xbf16> to vector<8x512xbf16>
    %158 = arith.mulf %155, %157 : vector<8x512xbf16>
    %c8_55 = arith.constant 8 : index
    %c0_56 = arith.constant 0 : index
    %159 = vector.load %arg17[%c8_55, %c0_56] : memref<108x512xbf16, #tpu.memory_space<vmem>>, vector<8x512xbf16>
    tpu.vector_store %arg17[%c8_55, %c0_56], %158 {strides = array<i32>} : memref<108x512xbf16, #tpu.memory_space<vmem>>, vector<8x512xbf16>,
    %160 = vector.extract_strided_slice %144 {offsets = [0, 497], sizes = [8, 15], strides = [1, 1]} : vector<8x512xbf16> to vector<8x15xbf16>
    %161 = vector.extract_strided_slice %144 {offsets = [0, 0], sizes = [8, 497], strides = [1, 1]} : vector<8x512xbf16> to vector<8x497xbf16>
    %162 = tpu.concatenate %160, %161 in 1 : vector<8x15xbf16>, vector<8x497xbf16> -> vector<8x512xbf16>
    %163 = vector.extract_strided_slice %4 {offsets = [2, 0], sizes = [1, 512], strides = [1, 1]} : vector<9x512xbf16> to vector<1x512xbf16>
    %164 = vector.broadcast %163 : vector<1x512xbf16> to vector<8x512xbf16>
    %165 = arith.mulf %162, %164 : vector<8x512xbf16>
    %c16_57 = arith.constant 16 : index
    %c0_58 = arith.constant 0 : index
    %166 = vector.load %arg17[%c16_57, %c0_58] : memref<108x512xbf16, #tpu.memory_space<vmem>>, vector<8x512xbf16>
    tpu.vector_store %arg17[%c16_57, %c0_58], %165 {strides = array<i32>} : memref<108x512xbf16, #tpu.memory_space<vmem>>, vector<8x512xbf16>,
    %167 = vector.extract_strided_slice %144 {offsets = [0, 511], sizes = [8, 1], strides = [1, 1]} : vector<8x512xbf16> to vector<8x1xbf16>
    %168 = vector.extract_strided_slice %144 {offsets = [0, 0], sizes = [8, 511], strides = [1, 1]} : vector<8x512xbf16> to vector<8x511xbf16>
    %169 = tpu.concatenate %167, %168 in 1 : vector<8x1xbf16>, vector<8x511xbf16> -> vector<8x512xbf16>
    %170 = vector.extract_strided_slice %4 {offsets = [3, 0], sizes = [1, 512], strides = [1, 1]} : vector<9x512xbf16> to vector<1x512xbf16>
    %171 = vector.broadcast %170 : vector<1x512xbf16> to vector<8x512xbf16>
    %172 = arith.mulf %169, %171 : vector<8x512xbf16>
    %c24_59 = arith.constant 24 : index
    %c0_60 = arith.constant 0 : index
    %173 = vector.load %arg17[%c24_59, %c0_60] : memref<108x512xbf16, #tpu.memory_space<vmem>>, vector<8x512xbf16>
    tpu.vector_store %arg17[%c24_59, %c0_60], %172 {strides = array<i32>} : memref<108x512xbf16, #tpu.memory_space<vmem>>, vector<8x512xbf16>,
    %174 = vector.extract_strided_slice %4 {offsets = [4, 0], sizes = [1, 512], strides = [1, 1]} : vector<9x512xbf16> to vector<1x512xbf16>
    %175 = vector.broadcast %174 : vector<1x512xbf16> to vector<8x512xbf16>
    %176 = arith.mulf %144, %175 : vector<8x512xbf16>
    %c32_61 = arith.constant 32 : index
    %c0_62 = arith.constant 0 : index
    %177 = vector.load %arg17[%c32_61, %c0_62] : memref<108x512xbf16, #tpu.memory_space<vmem>>, vector<8x512xbf16>
    tpu.vector_store %arg17[%c32_61, %c0_62], %176 {strides = array<i32>} : memref<108x512xbf16, #tpu.memory_space<vmem>>, vector<8x512xbf16>,
    %178 = vector.extract_strided_slice %144 {offsets = [0, 1], sizes = [8, 511], strides = [1, 1]} : vector<8x512xbf16> to vector<8x511xbf16>
    %179 = vector.extract_strided_slice %144 {offsets = [0, 0], sizes = [8, 1], strides = [1, 1]} : vector<8x512xbf16> to vector<8x1xbf16>
    %180 = tpu.concatenate %178, %179 in 1 : vector<8x511xbf16>, vector<8x1xbf16> -> vector<8x512xbf16>
    %181 = vector.extract_strided_slice %4 {offsets = [5, 0], sizes = [1, 512], strides = [1, 1]} : vector<9x512xbf16> to vector<1x512xbf16>
    %182 = vector.broadcast %181 : vector<1x512xbf16> to vector<8x512xbf16>
    %183 = arith.mulf %180, %182 : vector<8x512xbf16>
    %c40_63 = arith.constant 40 : index
    %c0_64 = arith.constant 0 : index
    %184 = vector.load %arg17[%c40_63, %c0_64] : memref<108x512xbf16, #tpu.memory_space<vmem>>, vector<8x512xbf16>
    tpu.vector_store %arg17[%c40_63, %c0_64], %183 {strides = array<i32>} : memref<108x512xbf16, #tpu.memory_space<vmem>>, vector<8x512xbf16>,
    %185 = vector.extract_strided_slice %144 {offsets = [0, 15], sizes = [8, 497], strides = [1, 1]} : vector<8x512xbf16> to vector<8x497xbf16>
    %186 = vector.extract_strided_slice %144 {offsets = [0, 0], sizes = [8, 15], strides = [1, 1]} : vector<8x512xbf16> to vector<8x15xbf16>
    %187 = tpu.concatenate %185, %186 in 1 : vector<8x497xbf16>, vector<8x15xbf16> -> vector<8x512xbf16>
    %188 = vector.extract_strided_slice %4 {offsets = [6, 0], sizes = [1, 512], strides = [1, 1]} : vector<9x512xbf16> to vector<1x512xbf16>
    %189 = vector.broadcast %188 : vector<1x512xbf16> to vector<8x512xbf16>
    %190 = arith.mulf %187, %189 : vector<8x512xbf16>
    %c48_65 = arith.constant 48 : index
    %c0_66 = arith.constant 0 : index
    %191 = vector.load %arg17[%c48_65, %c0_66] : memref<108x512xbf16, #tpu.memory_space<vmem>>, vector<8x512xbf16>
    tpu.vector_store %arg17[%c48_65, %c0_66], %190 {strides = array<i32>} : memref<108x512xbf16, #tpu.memory_space<vmem>>, vector<8x512xbf16>,
    %192 = vector.extract_strided_slice %144 {offsets = [0, 16], sizes = [8, 496], strides = [1, 1]} : vector<8x512xbf16> to vector<8x496xbf16>
    %193 = vector.extract_strided_slice %144 {offsets = [0, 0], sizes = [8, 16], strides = [1, 1]} : vector<8x512xbf16> to vector<8x16xbf16>
    %194 = tpu.concatenate %192, %193 in 1 : vector<8x496xbf16>, vector<8x16xbf16> -> vector<8x512xbf16>
    %195 = vector.extract_strided_slice %4 {offsets = [7, 0], sizes = [1, 512], strides = [1, 1]} : vector<9x512xbf16> to vector<1x512xbf16>
    %196 = vector.broadcast %195 : vector<1x512xbf16> to vector<8x512xbf16>
    %197 = arith.mulf %194, %196 : vector<8x512xbf16>
    %c56_67 = arith.constant 56 : index
    %c0_68 = arith.constant 0 : index
    %198 = vector.load %arg17[%c56_67, %c0_68] : memref<108x512xbf16, #tpu.memory_space<vmem>>, vector<8x512xbf16>
    tpu.vector_store %arg17[%c56_67, %c0_68], %197 {strides = array<i32>} : memref<108x512xbf16, #tpu.memory_space<vmem>>, vector<8x512xbf16>,
    %199 = vector.extract_strided_slice %144 {offsets = [0, 17], sizes = [8, 495], strides = [1, 1]} : vector<8x512xbf16> to vector<8x495xbf16>
    %200 = vector.extract_strided_slice %144 {offsets = [0, 0], sizes = [8, 17], strides = [1, 1]} : vector<8x512xbf16> to vector<8x17xbf16>
    %201 = tpu.concatenate %199, %200 in 1 : vector<8x495xbf16>, vector<8x17xbf16> -> vector<8x512xbf16>
    %202 = vector.extract_strided_slice %4 {offsets = [8, 0], sizes = [1, 512], strides = [1, 1]} : vector<9x512xbf16> to vector<1x512xbf16>
    %203 = vector.broadcast %202 : vector<1x512xbf16> to vector<8x512xbf16>
    %204 = arith.mulf %201, %203 : vector<8x512xbf16>
    %c64_69 = arith.constant 64 : index
    %c0_70 = arith.constant 0 : index
    %205 = vector.load %arg17[%c64_69, %c0_70] : memref<108x512xbf16, #tpu.memory_space<vmem>>, vector<8x512xbf16>
    tpu.vector_store %arg17[%c64_69, %c0_70], %204 {strides = array<i32>} : memref<108x512xbf16, #tpu.memory_space<vmem>>, vector<8x512xbf16>,
    %cst_71 = arith.constant dense<0.000000e+00> : vector<4x512xf32>
    %206 = tpu.matmul %145, %3, %cst_71 {dimension_numbers = #tpu.dot_dimension_numbers<[1], [0], [0], [1], [0, 0, 1, 1], [], []>} : vector<4x128xbf16>, vector<128x512xbf16>, vector<4x512xf32> -> vector<4x512xf32>
    %207 = arith.truncf %206 : vector<4x512xf32> to vector<4x512xbf16>
    %208 = vector.extract_strided_slice %207 {offsets = [0, 495], sizes = [4, 17], strides = [1, 1]} : vector<4x512xbf16> to vector<4x17xbf16>
    %209 = vector.extract_strided_slice %207 {offsets = [0, 0], sizes = [4, 495], strides = [1, 1]} : vector<4x512xbf16> to vector<4x495xbf16>
    %210 = tpu.concatenate %208, %209 in 1 : vector<4x17xbf16>, vector<4x495xbf16> -> vector<4x512xbf16>
    %211 = vector.extract_strided_slice %4 {offsets = [0, 0], sizes = [1, 512], strides = [1, 1]} : vector<9x512xbf16> to vector<1x512xbf16>
    %212 = vector.broadcast %211 : vector<1x512xbf16> to vector<4x512xbf16>
    %213 = arith.mulf %210, %212 : vector<4x512xbf16>
    %c72 = arith.constant 72 : index
    %c0_72 = arith.constant 0 : index
    %214 = vector.load %arg17[%c72, %c0_72] : memref<108x512xbf16, #tpu.memory_space<vmem>>, vector<4x512xbf16>
    tpu.vector_store %arg17[%c72, %c0_72], %213 {strides = array<i32>} : memref<108x512xbf16, #tpu.memory_space<vmem>>, vector<4x512xbf16>,
    %215 = vector.extract_strided_slice %207 {offsets = [0, 496], sizes = [4, 16], strides = [1, 1]} : vector<4x512xbf16> to vector<4x16xbf16>
    %216 = vector.extract_strided_slice %207 {offsets = [0, 0], sizes = [4, 496], strides = [1, 1]} : vector<4x512xbf16> to vector<4x496xbf16>
    %217 = tpu.concatenate %215, %216 in 1 : vector<4x16xbf16>, vector<4x496xbf16> -> vector<4x512xbf16>
    %218 = vector.extract_strided_slice %4 {offsets = [1, 0], sizes = [1, 512], strides = [1, 1]} : vector<9x512xbf16> to vector<1x512xbf16>
    %219 = vector.broadcast %218 : vector<1x512xbf16> to vector<4x512xbf16>
    %220 = arith.mulf %217, %219 : vector<4x512xbf16>
    %c76 = arith.constant 76 : index
    %c0_73 = arith.constant 0 : index
    %221 = vector.load %arg17[%c76, %c0_73] : memref<108x512xbf16, #tpu.memory_space<vmem>>, vector<4x512xbf16>
    tpu.vector_store %arg17[%c76, %c0_73], %220 {strides = array<i32>} : memref<108x512xbf16, #tpu.memory_space<vmem>>, vector<4x512xbf16>,
    %222 = vector.extract_strided_slice %207 {offsets = [0, 497], sizes = [4, 15], strides = [1, 1]} : vector<4x512xbf16> to vector<4x15xbf16>
    %223 = vector.extract_strided_slice %207 {offsets = [0, 0], sizes = [4, 497], strides = [1, 1]} : vector<4x512xbf16> to vector<4x497xbf16>
    %224 = tpu.concatenate %222, %223 in 1 : vector<4x15xbf16>, vector<4x497xbf16> -> vector<4x512xbf16>
    %225 = vector.extract_strided_slice %4 {offsets = [2, 0], sizes = [1, 512], strides = [1, 1]} : vector<9x512xbf16> to vector<1x512xbf16>
    %226 = vector.broadcast %225 : vector<1x512xbf16> to vector<4x512xbf16>
    %227 = arith.mulf %224, %226 : vector<4x512xbf16>
    %c80 = arith.constant 80 : index
    %c0_74 = arith.constant 0 : index
    %228 = vector.load %arg17[%c80, %c0_74] : memref<108x512xbf16, #tpu.memory_space<vmem>>, vector<4x512xbf16>
    tpu.vector_store %arg17[%c80, %c0_74], %227 {strides = array<i32>} : memref<108x512xbf16, #tpu.memory_space<vmem>>, vector<4x512xbf16>,
    %229 = vector.extract_strided_slice %207 {offsets = [0, 511], sizes = [4, 1], strides = [1, 1]} : vector<4x512xbf16> to vector<4x1xbf16>
    %230 = vector.extract_strided_slice %207 {offsets = [0, 0], sizes = [4, 511], strides = [1, 1]} : vector<4x512xbf16> to vector<4x511xbf16>
    %231 = tpu.concatenate %229, %230 in 1 : vector<4x1xbf16>, vector<4x511xbf16> -> vector<4x512xbf16>
    %232 = vector.extract_strided_slice %4 {offsets = [3, 0], sizes = [1, 512], strides = [1, 1]} : vector<9x512xbf16> to vector<1x512xbf16>
    %233 = vector.broadcast %232 : vector<1x512xbf16> to vector<4x512xbf16>
    %234 = arith.mulf %231, %233 : vector<4x512xbf16>
    %c84 = arith.constant 84 : index
    %c0_75 = arith.constant 0 : index
    %235 = vector.load %arg17[%c84, %c0_75] : memref<108x512xbf16, #tpu.memory_space<vmem>>, vector<4x512xbf16>
    tpu.vector_store %arg17[%c84, %c0_75], %234 {strides = array<i32>} : memref<108x512xbf16, #tpu.memory_space<vmem>>, vector<4x512xbf16>,
    %236 = vector.extract_strided_slice %4 {offsets = [4, 0], sizes = [1, 512], strides = [1, 1]} : vector<9x512xbf16> to vector<1x512xbf16>
    %237 = vector.broadcast %236 : vector<1x512xbf16> to vector<4x512xbf16>
    %238 = arith.mulf %207, %237 : vector<4x512xbf16>
    %c88 = arith.constant 88 : index
    %c0_76 = arith.constant 0 : index
    %239 = vector.load %arg17[%c88, %c0_76] : memref<108x512xbf16, #tpu.memory_space<vmem>>, vector<4x512xbf16>
    tpu.vector_store %arg17[%c88, %c0_76], %238 {strides = array<i32>} : memref<108x512xbf16, #tpu.memory_space<vmem>>, vector<4x512xbf16>,
    %240 = vector.extract_strided_slice %207 {offsets = [0, 1], sizes = [4, 511], strides = [1, 1]} : vector<4x512xbf16> to vector<4x511xbf16>
    %241 = vector.extract_strided_slice %207 {offsets = [0, 0], sizes = [4, 1], strides = [1, 1]} : vector<4x512xbf16> to vector<4x1xbf16>
    %242 = tpu.concatenate %240, %241 in 1 : vector<4x511xbf16>, vector<4x1xbf16> -> vector<4x512xbf16>
    %243 = vector.extract_strided_slice %4 {offsets = [5, 0], sizes = [1, 512], strides = [1, 1]} : vector<9x512xbf16> to vector<1x512xbf16>
    %244 = vector.broadcast %243 : vector<1x512xbf16> to vector<4x512xbf16>
    %245 = arith.mulf %242, %244 : vector<4x512xbf16>
    %c92 = arith.constant 92 : index
    %c0_77 = arith.constant 0 : index
    %246 = vector.load %arg17[%c92, %c0_77] : memref<108x512xbf16, #tpu.memory_space<vmem>>, vector<4x512xbf16>
    tpu.vector_store %arg17[%c92, %c0_77], %245 {strides = array<i32>} : memref<108x512xbf16, #tpu.memory_space<vmem>>, vector<4x512xbf16>,
    %247 = vector.extract_strided_slice %207 {offsets = [0, 15], sizes = [4, 497], strides = [1, 1]} : vector<4x512xbf16> to vector<4x497xbf16>
    %248 = vector.extract_strided_slice %207 {offsets = [0, 0], sizes = [4, 15], strides = [1, 1]} : vector<4x512xbf16> to vector<4x15xbf16>
    %249 = tpu.concatenate %247, %248 in 1 : vector<4x497xbf16>, vector<4x15xbf16> -> vector<4x512xbf16>
    %250 = vector.extract_strided_slice %4 {offsets = [6, 0], sizes = [1, 512], strides = [1, 1]} : vector<9x512xbf16> to vector<1x512xbf16>
    %251 = vector.broadcast %250 : vector<1x512xbf16> to vector<4x512xbf16>
    %252 = arith.mulf %249, %251 : vector<4x512xbf16>
    %c96 = arith.constant 96 : index
    %c0_78 = arith.constant 0 : index
    %253 = vector.load %arg17[%c96, %c0_78] : memref<108x512xbf16, #tpu.memory_space<vmem>>, vector<4x512xbf16>
    tpu.vector_store %arg17[%c96, %c0_78], %252 {strides = array<i32>} : memref<108x512xbf16, #tpu.memory_space<vmem>>, vector<4x512xbf16>,
    %254 = vector.extract_strided_slice %207 {offsets = [0, 16], sizes = [4, 496], strides = [1, 1]} : vector<4x512xbf16> to vector<4x496xbf16>
    %255 = vector.extract_strided_slice %207 {offsets = [0, 0], sizes = [4, 16], strides = [1, 1]} : vector<4x512xbf16> to vector<4x16xbf16>
    %256 = tpu.concatenate %254, %255 in 1 : vector<4x496xbf16>, vector<4x16xbf16> -> vector<4x512xbf16>
    %257 = vector.extract_strided_slice %4 {offsets = [7, 0], sizes = [1, 512], strides = [1, 1]} : vector<9x512xbf16> to vector<1x512xbf16>
    %258 = vector.broadcast %257 : vector<1x512xbf16> to vector<4x512xbf16>
    %259 = arith.mulf %256, %258 : vector<4x512xbf16>
    %c100 = arith.constant 100 : index
    %c0_79 = arith.constant 0 : index
    %260 = vector.load %arg17[%c100, %c0_79] : memref<108x512xbf16, #tpu.memory_space<vmem>>, vector<4x512xbf16>
    tpu.vector_store %arg17[%c100, %c0_79], %259 {strides = array<i32>} : memref<108x512xbf16, #tpu.memory_space<vmem>>, vector<4x512xbf16>,
    %261 = vector.extract_strided_slice %207 {offsets = [0, 17], sizes = [4, 495], strides = [1, 1]} : vector<4x512xbf16> to vector<4x495xbf16>
    %262 = vector.extract_strided_slice %207 {offsets = [0, 0], sizes = [4, 17], strides = [1, 1]} : vector<4x512xbf16> to vector<4x17xbf16>
    %263 = tpu.concatenate %261, %262 in 1 : vector<4x495xbf16>, vector<4x17xbf16> -> vector<4x512xbf16>
    %264 = vector.extract_strided_slice %4 {offsets = [8, 0], sizes = [1, 512], strides = [1, 1]} : vector<9x512xbf16> to vector<1x512xbf16>
    %265 = vector.broadcast %264 : vector<1x512xbf16> to vector<4x512xbf16>
    %266 = arith.mulf %263, %265 : vector<4x512xbf16>
    %c104 = arith.constant 104 : index
    %c0_80 = arith.constant 0 : index
    %267 = vector.load %arg17[%c104, %c0_80] : memref<108x512xbf16, #tpu.memory_space<vmem>>, vector<4x512xbf16>
    tpu.vector_store %arg17[%c104, %c0_80], %266 {strides = array<i32>} : memref<108x512xbf16, #tpu.memory_space<vmem>>, vector<4x512xbf16>,
    %c0_81 = arith.constant 0 : index
    %c0_82 = arith.constant 0 : index
    %268 = vector.load %arg10[%c0_81, %c0_82] : memref<8x108xbf16, #tpu.memory_space<vmem>>, vector<8x108xbf16>
    %c0_83 = arith.constant 0 : index
    %c0_84 = arith.constant 0 : index
    %269 = vector.load %arg17[%c0_83, %c0_84] : memref<108x512xbf16, #tpu.memory_space<vmem>>, vector<108x512xbf16>
    %cst_85 = arith.constant dense<0.000000e+00> : vector<8x512xf32>
    %270 = tpu.matmul %268, %269, %cst_85 {dimension_numbers = #tpu.dot_dimension_numbers<[1], [0], [0], [1], [0, 0, 1, 1], [], []>} : vector<8x108xbf16>, vector<108x512xbf16>, vector<8x512xf32> -> vector<8x512xf32>
    %c0_86 = arith.constant 0 : index
    %c0_87 = arith.constant 0 : index
    %271 = vector.load %arg11[%c0_86, %c0_87] : memref<8x1xf32, #tpu.memory_space<vmem>>, vector<8x1xf32>
    %272 = vector.broadcast %271 : vector<8x1xf32> to vector<8x512xf32>
    %273 = arith.addf %270, %272 : vector<8x512xf32>
    %cst_88 = arith.constant 0.000000e+00 : f32
    %274 = vector.broadcast %cst_88 : f32 to vector<8x512xf32>
    %275 = arith.maximumf %273, %274 : vector<8x512xf32>
    %276 = vector.extract_strided_slice %145 {offsets = [0, 119], sizes = [4, 9], strides = [1, 1]} : vector<4x128xbf16> to vector<4x9xbf16>
    %277 = vector.extract_strided_slice %145 {offsets = [0, 0], sizes = [4, 119], strides = [1, 1]} : vector<4x128xbf16> to vector<4x119xbf16>
    %278 = tpu.concatenate %276, %277 in 1 : vector<4x9xbf16>, vector<4x119xbf16> -> vector<4x128xbf16>
    %279 = vector.extract_strided_slice %5 {offsets = [0, 0], sizes = [1, 128], strides = [1, 1]} : vector<9x128xbf16> to vector<1x128xbf16>
    %280 = vector.broadcast %279 : vector<1x128xbf16> to vector<4x128xbf16>
    %281 = arith.mulf %278, %280 : vector<4x128xbf16>
    %c0_89 = arith.constant 0 : index
    %c0_90 = arith.constant 0 : index
    %282 = vector.load %arg18[%c0_89, %c0_90] : memref<108x128xbf16, #tpu.memory_space<vmem>>, vector<4x128xbf16>
    tpu.vector_store %arg18[%c0_89, %c0_90], %281 {strides = array<i32>} : memref<108x128xbf16, #tpu.memory_space<vmem>>, vector<4x128xbf16>,
    %283 = vector.extract_strided_slice %145 {offsets = [0, 120], sizes = [4, 8], strides = [1, 1]} : vector<4x128xbf16> to vector<4x8xbf16>
    %284 = vector.extract_strided_slice %145 {offsets = [0, 0], sizes = [4, 120], strides = [1, 1]} : vector<4x128xbf16> to vector<4x120xbf16>
    %285 = tpu.concatenate %283, %284 in 1 : vector<4x8xbf16>, vector<4x120xbf16> -> vector<4x128xbf16>
    %286 = vector.extract_strided_slice %5 {offsets = [1, 0], sizes = [1, 128], strides = [1, 1]} : vector<9x128xbf16> to vector<1x128xbf16>
    %287 = vector.broadcast %286 : vector<1x128xbf16> to vector<4x128xbf16>
    %288 = arith.mulf %285, %287 : vector<4x128xbf16>
    %c4 = arith.constant 4 : index
    %c0_91 = arith.constant 0 : index
    %289 = vector.load %arg18[%c4, %c0_91] : memref<108x128xbf16, #tpu.memory_space<vmem>>, vector<4x128xbf16>
    tpu.vector_store %arg18[%c4, %c0_91], %288 {strides = array<i32>} : memref<108x128xbf16, #tpu.memory_space<vmem>>, vector<4x128xbf16>,
    %290 = vector.extract_strided_slice %145 {offsets = [0, 121], sizes = [4, 7], strides = [1, 1]} : vector<4x128xbf16> to vector<4x7xbf16>
    %291 = vector.extract_strided_slice %145 {offsets = [0, 0], sizes = [4, 121], strides = [1, 1]} : vector<4x128xbf16> to vector<4x121xbf16>
    %292 = tpu.concatenate %290, %291 in 1 : vector<4x7xbf16>, vector<4x121xbf16> -> vector<4x128xbf16>
    %293 = vector.extract_strided_slice %5 {offsets = [2, 0], sizes = [1, 128], strides = [1, 1]} : vector<9x128xbf16> to vector<1x128xbf16>
    %294 = vector.broadcast %293 : vector<1x128xbf16> to vector<4x128xbf16>
    %295 = arith.mulf %292, %294 : vector<4x128xbf16>
    %c8_92 = arith.constant 8 : index
    %c0_93 = arith.constant 0 : index
    %296 = vector.load %arg18[%c8_92, %c0_93] : memref<108x128xbf16, #tpu.memory_space<vmem>>, vector<4x128xbf16>
    tpu.vector_store %arg18[%c8_92, %c0_93], %295 {strides = array<i32>} : memref<108x128xbf16, #tpu.memory_space<vmem>>, vector<4x128xbf16>,
    %297 = vector.extract_strided_slice %145 {offsets = [0, 127], sizes = [4, 1], strides = [1, 1]} : vector<4x128xbf16> to vector<4x1xbf16>
    %298 = vector.extract_strided_slice %145 {offsets = [0, 0], sizes = [4, 127], strides = [1, 1]} : vector<4x128xbf16> to vector<4x127xbf16>
    %299 = tpu.concatenate %297, %298 in 1 : vector<4x1xbf16>, vector<4x127xbf16> -> vector<4x128xbf16>
    %300 = vector.extract_strided_slice %5 {offsets = [3, 0], sizes = [1, 128], strides = [1, 1]} : vector<9x128xbf16> to vector<1x128xbf16>
    %301 = vector.broadcast %300 : vector<1x128xbf16> to vector<4x128xbf16>
    %302 = arith.mulf %299, %301 : vector<4x128xbf16>
    %c12 = arith.constant 12 : index
    %c0_94 = arith.constant 0 : index
    %303 = vector.load %arg18[%c12, %c0_94] : memref<108x128xbf16, #tpu.memory_space<vmem>>, vector<4x128xbf16>
    tpu.vector_store %arg18[%c12, %c0_94], %302 {strides = array<i32>} : memref<108x128xbf16, #tpu.memory_space<vmem>>, vector<4x128xbf16>,
    %304 = vector.extract_strided_slice %5 {offsets = [4, 0], sizes = [1, 128], strides = [1, 1]} : vector<9x128xbf16> to vector<1x128xbf16>
    %305 = vector.broadcast %304 : vector<1x128xbf16> to vector<4x128xbf16>
    %306 = arith.mulf %145, %305 : vector<4x128xbf16>
    %c16_95 = arith.constant 16 : index
    %c0_96 = arith.constant 0 : index
    %307 = vector.load %arg18[%c16_95, %c0_96] : memref<108x128xbf16, #tpu.memory_space<vmem>>, vector<4x128xbf16>
    tpu.vector_store %arg18[%c16_95, %c0_96], %306 {strides = array<i32>} : memref<108x128xbf16, #tpu.memory_space<vmem>>, vector<4x128xbf16>,
    %308 = vector.extract_strided_slice %145 {offsets = [0, 1], sizes = [4, 127], strides = [1, 1]} : vector<4x128xbf16> to vector<4x127xbf16>
    %309 = vector.extract_strided_slice %145 {offsets = [0, 0], sizes = [4, 1], strides = [1, 1]} : vector<4x128xbf16> to vector<4x1xbf16>
    %310 = tpu.concatenate %308, %309 in 1 : vector<4x127xbf16>, vector<4x1xbf16> -> vector<4x128xbf16>
    %311 = vector.extract_strided_slice %5 {offsets = [5, 0], sizes = [1, 128], strides = [1, 1]} : vector<9x128xbf16> to vector<1x128xbf16>
    %312 = vector.broadcast %311 : vector<1x128xbf16> to vector<4x128xbf16>
    %313 = arith.mulf %310, %312 : vector<4x128xbf16>
    %c20 = arith.constant 20 : index
    %c0_97 = arith.constant 0 : index
    %314 = vector.load %arg18[%c20, %c0_97] : memref<108x128xbf16, #tpu.memory_space<vmem>>, vector<4x128xbf16>
    tpu.vector_store %arg18[%c20, %c0_97], %313 {strides = array<i32>} : memref<108x128xbf16, #tpu.memory_space<vmem>>, vector<4x128xbf16>,
    %315 = vector.extract_strided_slice %145 {offsets = [0, 7], sizes = [4, 121], strides = [1, 1]} : vector<4x128xbf16> to vector<4x121xbf16>
    %316 = vector.extract_strided_slice %145 {offsets = [0, 0], sizes = [4, 7], strides = [1, 1]} : vector<4x128xbf16> to vector<4x7xbf16>
    %317 = tpu.concatenate %315, %316 in 1 : vector<4x121xbf16>, vector<4x7xbf16> -> vector<4x128xbf16>
    %318 = vector.extract_strided_slice %5 {offsets = [6, 0], sizes = [1, 128], strides = [1, 1]} : vector<9x128xbf16> to vector<1x128xbf16>
    %319 = vector.broadcast %318 : vector<1x128xbf16> to vector<4x128xbf16>
    %320 = arith.mulf %317, %319 : vector<4x128xbf16>
    %c24_98 = arith.constant 24 : index
    %c0_99 = arith.constant 0 : index
    %321 = vector.load %arg18[%c24_98, %c0_99] : memref<108x128xbf16, #tpu.memory_space<vmem>>, vector<4x128xbf16>
    tpu.vector_store %arg18[%c24_98, %c0_99], %320 {strides = array<i32>} : memref<108x128xbf16, #tpu.memory_space<vmem>>, vector<4x128xbf16>,
    %322 = vector.extract_strided_slice %145 {offsets = [0, 8], sizes = [4, 120], strides = [1, 1]} : vector<4x128xbf16> to vector<4x120xbf16>
    %323 = vector.extract_strided_slice %145 {offsets = [0, 0], sizes = [4, 8], strides = [1, 1]} : vector<4x128xbf16> to vector<4x8xbf16>
    %324 = tpu.concatenate %322, %323 in 1 : vector<4x120xbf16>, vector<4x8xbf16> -> vector<4x128xbf16>
    %325 = vector.extract_strided_slice %5 {offsets = [7, 0], sizes = [1, 128], strides = [1, 1]} : vector<9x128xbf16> to vector<1x128xbf16>
    %326 = vector.broadcast %325 : vector<1x128xbf16> to vector<4x128xbf16>
    %327 = arith.mulf %324, %326 : vector<4x128xbf16>
    %c28 = arith.constant 28 : index
    %c0_100 = arith.constant 0 : index
    %328 = vector.load %arg18[%c28, %c0_100] : memref<108x128xbf16, #tpu.memory_space<vmem>>, vector<4x128xbf16>
    tpu.vector_store %arg18[%c28, %c0_100], %327 {strides = array<i32>} : memref<108x128xbf16, #tpu.memory_space<vmem>>, vector<4x128xbf16>,
    %329 = vector.extract_strided_slice %145 {offsets = [0, 9], sizes = [4, 119], strides = [1, 1]} : vector<4x128xbf16> to vector<4x119xbf16>
    %330 = vector.extract_strided_slice %145 {offsets = [0, 0], sizes = [4, 9], strides = [1, 1]} : vector<4x128xbf16> to vector<4x9xbf16>
    %331 = tpu.concatenate %329, %330 in 1 : vector<4x119xbf16>, vector<4x9xbf16> -> vector<4x128xbf16>
    %332 = vector.extract_strided_slice %5 {offsets = [8, 0], sizes = [1, 128], strides = [1, 1]} : vector<9x128xbf16> to vector<1x128xbf16>
    %333 = vector.broadcast %332 : vector<1x128xbf16> to vector<4x128xbf16>
    %334 = arith.mulf %331, %333 : vector<4x128xbf16>
    %c32_101 = arith.constant 32 : index
    %c0_102 = arith.constant 0 : index
    %335 = vector.load %arg18[%c32_101, %c0_102] : memref<108x128xbf16, #tpu.memory_space<vmem>>, vector<4x128xbf16>
    tpu.vector_store %arg18[%c32_101, %c0_102], %334 {strides = array<i32>} : memref<108x128xbf16, #tpu.memory_space<vmem>>, vector<4x128xbf16>,
    %cst_103 = arith.constant dense<0.000000e+00> : vector<8x128xf32>
    %336 = tpu.matmul %144, %2, %cst_103 {dimension_numbers = #tpu.dot_dimension_numbers<[1], [0], [0], [1], [0, 0, 1, 1], [], []>} : vector<8x512xbf16>, vector<512x128xbf16>, vector<8x128xf32> -> vector<8x128xf32>
    %337 = arith.truncf %336 : vector<8x128xf32> to vector<8x128xbf16>
    %338 = vector.extract_strided_slice %337 {offsets = [0, 119], sizes = [8, 9], strides = [1, 1]} : vector<8x128xbf16> to vector<8x9xbf16>
    %339 = vector.extract_strided_slice %337 {offsets = [0, 0], sizes = [8, 119], strides = [1, 1]} : vector<8x128xbf16> to vector<8x119xbf16>
    %340 = tpu.concatenate %338, %339 in 1 : vector<8x9xbf16>, vector<8x119xbf16> -> vector<8x128xbf16>
    %341 = vector.extract_strided_slice %5 {offsets = [0, 0], sizes = [1, 128], strides = [1, 1]} : vector<9x128xbf16> to vector<1x128xbf16>
    %342 = vector.broadcast %341 : vector<1x128xbf16> to vector<8x128xbf16>
    %343 = arith.mulf %340, %342 : vector<8x128xbf16>
    %c36 = arith.constant 36 : index
    %c0_104 = arith.constant 0 : index
    %344 = vector.load %arg18[%c36, %c0_104] : memref<108x128xbf16, #tpu.memory_space<vmem>>, vector<8x128xbf16>
    tpu.vector_store %arg18[%c36, %c0_104], %343 {strides = array<i32>} : memref<108x128xbf16, #tpu.memory_space<vmem>>, vector<8x128xbf16>,
    %345 = vector.extract_strided_slice %337 {offsets = [0, 120], sizes = [8, 8], strides = [1, 1]} : vector<8x128xbf16> to vector<8x8xbf16>
    %346 = vector.extract_strided_slice %337 {offsets = [0, 0], sizes = [8, 120], strides = [1, 1]} : vector<8x128xbf16> to vector<8x120xbf16>
    %347 = tpu.concatenate %345, %346 in 1 : vector<8x8xbf16>, vector<8x120xbf16> -> vector<8x128xbf16>
    %348 = vector.extract_strided_slice %5 {offsets = [1, 0], sizes = [1, 128], strides = [1, 1]} : vector<9x128xbf16> to vector<1x128xbf16>
    %349 = vector.broadcast %348 : vector<1x128xbf16> to vector<8x128xbf16>
    %350 = arith.mulf %347, %349 : vector<8x128xbf16>
    %c44 = arith.constant 44 : index
    %c0_105 = arith.constant 0 : index
    %351 = vector.load %arg18[%c44, %c0_105] : memref<108x128xbf16, #tpu.memory_space<vmem>>, vector<8x128xbf16>
    tpu.vector_store %arg18[%c44, %c0_105], %350 {strides = array<i32>} : memref<108x128xbf16, #tpu.memory_space<vmem>>, vector<8x128xbf16>,
    %352 = vector.extract_strided_slice %337 {offsets = [0, 121], sizes = [8, 7], strides = [1, 1]} : vector<8x128xbf16> to vector<8x7xbf16>
    %353 = vector.extract_strided_slice %337 {offsets = [0, 0], sizes = [8, 121], strides = [1, 1]} : vector<8x128xbf16> to vector<8x121xbf16>
    %354 = tpu.concatenate %352, %353 in 1 : vector<8x7xbf16>, vector<8x121xbf16> -> vector<8x128xbf16>
    %355 = vector.extract_strided_slice %5 {offsets = [2, 0], sizes = [1, 128], strides = [1, 1]} : vector<9x128xbf16> to vector<1x128xbf16>
    %356 = vector.broadcast %355 : vector<1x128xbf16> to vector<8x128xbf16>
    %357 = arith.mulf %354, %356 : vector<8x128xbf16>
    %c52 = arith.constant 52 : index
    %c0_106 = arith.constant 0 : index
    %358 = vector.load %arg18[%c52, %c0_106] : memref<108x128xbf16, #tpu.memory_space<vmem>>, vector<8x128xbf16>
    tpu.vector_store %arg18[%c52, %c0_106], %357 {strides = array<i32>} : memref<108x128xbf16, #tpu.memory_space<vmem>>, vector<8x128xbf16>,
    %359 = vector.extract_strided_slice %337 {offsets = [0, 127], sizes = [8, 1], strides = [1, 1]} : vector<8x128xbf16> to vector<8x1xbf16>
    %360 = vector.extract_strided_slice %337 {offsets = [0, 0], sizes = [8, 127], strides = [1, 1]} : vector<8x128xbf16> to vector<8x127xbf16>
    %361 = tpu.concatenate %359, %360 in 1 : vector<8x1xbf16>, vector<8x127xbf16> -> vector<8x128xbf16>
    %362 = vector.extract_strided_slice %5 {offsets = [3, 0], sizes = [1, 128], strides = [1, 1]} : vector<9x128xbf16> to vector<1x128xbf16>
    %363 = vector.broadcast %362 : vector<1x128xbf16> to vector<8x128xbf16>
    %364 = arith.mulf %361, %363 : vector<8x128xbf16>
    %c60 = arith.constant 60 : index
    %c0_107 = arith.constant 0 : index
    %365 = vector.load %arg18[%c60, %c0_107] : memref<108x128xbf16, #tpu.memory_space<vmem>>, vector<8x128xbf16>
    tpu.vector_store %arg18[%c60, %c0_107], %364 {strides = array<i32>} : memref<108x128xbf16, #tpu.memory_space<vmem>>, vector<8x128xbf16>,
    %366 = vector.extract_strided_slice %5 {offsets = [4, 0], sizes = [1, 128], strides = [1, 1]} : vector<9x128xbf16> to vector<1x128xbf16>
    %367 = vector.broadcast %366 : vector<1x128xbf16> to vector<8x128xbf16>
    %368 = arith.mulf %337, %367 : vector<8x128xbf16>
    %c68 = arith.constant 68 : index
    %c0_108 = arith.constant 0 : index
    %369 = vector.load %arg18[%c68, %c0_108] : memref<108x128xbf16, #tpu.memory_space<vmem>>, vector<8x128xbf16>
    tpu.vector_store %arg18[%c68, %c0_108], %368 {strides = array<i32>} : memref<108x128xbf16, #tpu.memory_space<vmem>>, vector<8x128xbf16>,
    %370 = vector.extract_strided_slice %337 {offsets = [0, 1], sizes = [8, 127], strides = [1, 1]} : vector<8x128xbf16> to vector<8x127xbf16>
    %371 = vector.extract_strided_slice %337 {offsets = [0, 0], sizes = [8, 1], strides = [1, 1]} : vector<8x128xbf16> to vector<8x1xbf16>
    %372 = tpu.concatenate %370, %371 in 1 : vector<8x127xbf16>, vector<8x1xbf16> -> vector<8x128xbf16>
    %373 = vector.extract_strided_slice %5 {offsets = [5, 0], sizes = [1, 128], strides = [1, 1]} : vector<9x128xbf16> to vector<1x128xbf16>
    %374 = vector.broadcast %373 : vector<1x128xbf16> to vector<8x128xbf16>
    %375 = arith.mulf %372, %374 : vector<8x128xbf16>
    %c76_109 = arith.constant 76 : index
    %c0_110 = arith.constant 0 : index
    %376 = vector.load %arg18[%c76_109, %c0_110] : memref<108x128xbf16, #tpu.memory_space<vmem>>, vector<8x128xbf16>
    tpu.vector_store %arg18[%c76_109, %c0_110], %375 {strides = array<i32>} : memref<108x128xbf16, #tpu.memory_space<vmem>>, vector<8x128xbf16>,
    %377 = vector.extract_strided_slice %337 {offsets = [0, 7], sizes = [8, 121], strides = [1, 1]} : vector<8x128xbf16> to vector<8x121xbf16>
    %378 = vector.extract_strided_slice %337 {offsets = [0, 0], sizes = [8, 7], strides = [1, 1]} : vector<8x128xbf16> to vector<8x7xbf16>
    %379 = tpu.concatenate %377, %378 in 1 : vector<8x121xbf16>, vector<8x7xbf16> -> vector<8x128xbf16>
    %380 = vector.extract_strided_slice %5 {offsets = [6, 0], sizes = [1, 128], strides = [1, 1]} : vector<9x128xbf16> to vector<1x128xbf16>
    %381 = vector.broadcast %380 : vector<1x128xbf16> to vector<8x128xbf16>
    %382 = arith.mulf %379, %381 : vector<8x128xbf16>
    %c84_111 = arith.constant 84 : index
    %c0_112 = arith.constant 0 : index
    %383 = vector.load %arg18[%c84_111, %c0_112] : memref<108x128xbf16, #tpu.memory_space<vmem>>, vector<8x128xbf16>
    tpu.vector_store %arg18[%c84_111, %c0_112], %382 {strides = array<i32>} : memref<108x128xbf16, #tpu.memory_space<vmem>>, vector<8x128xbf16>,
    %384 = vector.extract_strided_slice %337 {offsets = [0, 8], sizes = [8, 120], strides = [1, 1]} : vector<8x128xbf16> to vector<8x120xbf16>
    %385 = vector.extract_strided_slice %337 {offsets = [0, 0], sizes = [8, 8], strides = [1, 1]} : vector<8x128xbf16> to vector<8x8xbf16>
    %386 = tpu.concatenate %384, %385 in 1 : vector<8x120xbf16>, vector<8x8xbf16> -> vector<8x128xbf16>
    %387 = vector.extract_strided_slice %5 {offsets = [7, 0], sizes = [1, 128], strides = [1, 1]} : vector<9x128xbf16> to vector<1x128xbf16>
    %388 = vector.broadcast %387 : vector<1x128xbf16> to vector<8x128xbf16>
    %389 = arith.mulf %386, %388 : vector<8x128xbf16>
    %c92_113 = arith.constant 92 : index
    %c0_114 = arith.constant 0 : index
    %390 = vector.load %arg18[%c92_113, %c0_114] : memref<108x128xbf16, #tpu.memory_space<vmem>>, vector<8x128xbf16>
    tpu.vector_store %arg18[%c92_113, %c0_114], %389 {strides = array<i32>} : memref<108x128xbf16, #tpu.memory_space<vmem>>, vector<8x128xbf16>,
    %391 = vector.extract_strided_slice %337 {offsets = [0, 9], sizes = [8, 119], strides = [1, 1]} : vector<8x128xbf16> to vector<8x119xbf16>
    %392 = vector.extract_strided_slice %337 {offsets = [0, 0], sizes = [8, 9], strides = [1, 1]} : vector<8x128xbf16> to vector<8x9xbf16>
    %393 = tpu.concatenate %391, %392 in 1 : vector<8x119xbf16>, vector<8x9xbf16> -> vector<8x128xbf16>
    %394 = vector.extract_strided_slice %5 {offsets = [8, 0], sizes = [1, 128], strides = [1, 1]} : vector<9x128xbf16> to vector<1x128xbf16>
    %395 = vector.broadcast %394 : vector<1x128xbf16> to vector<8x128xbf16>
    %396 = arith.mulf %393, %395 : vector<8x128xbf16>
    %c100_115 = arith.constant 100 : index
    %c0_116 = arith.constant 0 : index
    %397 = vector.load %arg18[%c100_115, %c0_116] : memref<108x128xbf16, #tpu.memory_space<vmem>>, vector<8x128xbf16>
    tpu.vector_store %arg18[%c100_115, %c0_116], %396 {strides = array<i32>} : memref<108x128xbf16, #tpu.memory_space<vmem>>, vector<8x128xbf16>,
    %c0_117 = arith.constant 0 : index
    %c0_118 = arith.constant 0 : index
    %398 = vector.load %arg12[%c0_117, %c0_118] : memref<4x108xbf16, #tpu.memory_space<vmem>>, vector<4x108xbf16>
    %c0_119 = arith.constant 0 : index
    %c0_120 = arith.constant 0 : index
    %399 = vector.load %arg18[%c0_119, %c0_120] : memref<108x128xbf16, #tpu.memory_space<vmem>>, vector<108x128xbf16>
    %cst_121 = arith.constant dense<0.000000e+00> : vector<4x128xf32>
    %400 = tpu.matmul %398, %399, %cst_121 {dimension_numbers = #tpu.dot_dimension_numbers<[1], [0], [0], [1], [0, 0, 1, 1], [], []>} : vector<4x108xbf16>, vector<108x128xbf16>, vector<4x128xf32> -> vector<4x128xf32>
    %c0_122 = arith.constant 0 : index
    %c0_123 = arith.constant 0 : index
    %401 = vector.load %arg13[%c0_122, %c0_123] : memref<4x1xf32, #tpu.memory_space<vmem>>, vector<4x1xf32>
    %402 = vector.broadcast %401 : vector<4x1xf32> to vector<4x128xf32>
    %403 = arith.addf %400, %402 : vector<4x128xf32>
    %cst_124 = arith.constant 0.000000e+00 : f32
    %404 = vector.broadcast %cst_124 : f32 to vector<4x128xf32>
    %405 = arith.maximumf %403, %404 : vector<4x128xf32>
    %406 = arith.truncf %275 : vector<8x512xf32> to vector<8x512xbf16>
    %407 = arith.truncf %405 : vector<4x128xf32> to vector<4x128xbf16>
    %408 = vector.extract_strided_slice %406 {offsets = [0, 495], sizes = [8, 17], strides = [1, 1]} : vector<8x512xbf16> to vector<8x17xbf16>
    %409 = vector.extract_strided_slice %406 {offsets = [0, 0], sizes = [8, 495], strides = [1, 1]} : vector<8x512xbf16> to vector<8x495xbf16>
    %410 = tpu.concatenate %408, %409 in 1 : vector<8x17xbf16>, vector<8x495xbf16> -> vector<8x512xbf16>
    %411 = vector.extract_strided_slice %4 {offsets = [0, 0], sizes = [1, 512], strides = [1, 1]} : vector<9x512xbf16> to vector<1x512xbf16>
    %412 = vector.broadcast %411 : vector<1x512xbf16> to vector<8x512xbf16>
    %413 = arith.mulf %410, %412 : vector<8x512xbf16>
    %c0_125 = arith.constant 0 : index
    %c0_126 = arith.constant 0 : index
    %414 = vector.load %arg17[%c0_125, %c0_126] : memref<108x512xbf16, #tpu.memory_space<vmem>>, vector<8x512xbf16>
    tpu.vector_store %arg17[%c0_125, %c0_126], %413 {strides = array<i32>} : memref<108x512xbf16, #tpu.memory_space<vmem>>, vector<8x512xbf16>,
    %415 = vector.extract_strided_slice %406 {offsets = [0, 496], sizes = [8, 16], strides = [1, 1]} : vector<8x512xbf16> to vector<8x16xbf16>
    %416 = vector.extract_strided_slice %406 {offsets = [0, 0], sizes = [8, 496], strides = [1, 1]} : vector<8x512xbf16> to vector<8x496xbf16>
    %417 = tpu.concatenate %415, %416 in 1 : vector<8x16xbf16>, vector<8x496xbf16> -> vector<8x512xbf16>
    %418 = vector.extract_strided_slice %4 {offsets = [1, 0], sizes = [1, 512], strides = [1, 1]} : vector<9x512xbf16> to vector<1x512xbf16>
    %419 = vector.broadcast %418 : vector<1x512xbf16> to vector<8x512xbf16>
    %420 = arith.mulf %417, %419 : vector<8x512xbf16>
    %c8_127 = arith.constant 8 : index
    %c0_128 = arith.constant 0 : index
    %421 = vector.load %arg17[%c8_127, %c0_128] : memref<108x512xbf16, #tpu.memory_space<vmem>>, vector<8x512xbf16>
    tpu.vector_store %arg17[%c8_127, %c0_128], %420 {strides = array<i32>} : memref<108x512xbf16, #tpu.memory_space<vmem>>, vector<8x512xbf16>,
    %422 = vector.extract_strided_slice %406 {offsets = [0, 497], sizes = [8, 15], strides = [1, 1]} : vector<8x512xbf16> to vector<8x15xbf16>
    %423 = vector.extract_strided_slice %406 {offsets = [0, 0], sizes = [8, 497], strides = [1, 1]} : vector<8x512xbf16> to vector<8x497xbf16>
    %424 = tpu.concatenate %422, %423 in 1 : vector<8x15xbf16>, vector<8x497xbf16> -> vector<8x512xbf16>
    %425 = vector.extract_strided_slice %4 {offsets = [2, 0], sizes = [1, 512], strides = [1, 1]} : vector<9x512xbf16> to vector<1x512xbf16>
    %426 = vector.broadcast %425 : vector<1x512xbf16> to vector<8x512xbf16>
    %427 = arith.mulf %424, %426 : vector<8x512xbf16>
    %c16_129 = arith.constant 16 : index
    %c0_130 = arith.constant 0 : index
    %428 = vector.load %arg17[%c16_129, %c0_130] : memref<108x512xbf16, #tpu.memory_space<vmem>>, vector<8x512xbf16>
    tpu.vector_store %arg17[%c16_129, %c0_130], %427 {strides = array<i32>} : memref<108x512xbf16, #tpu.memory_space<vmem>>, vector<8x512xbf16>,
    %429 = vector.extract_strided_slice %406 {offsets = [0, 511], sizes = [8, 1], strides = [1, 1]} : vector<8x512xbf16> to vector<8x1xbf16>
    %430 = vector.extract_strided_slice %406 {offsets = [0, 0], sizes = [8, 511], strides = [1, 1]} : vector<8x512xbf16> to vector<8x511xbf16>
    %431 = tpu.concatenate %429, %430 in 1 : vector<8x1xbf16>, vector<8x511xbf16> -> vector<8x512xbf16>
    %432 = vector.extract_strided_slice %4 {offsets = [3, 0], sizes = [1, 512], strides = [1, 1]} : vector<9x512xbf16> to vector<1x512xbf16>
    %433 = vector.broadcast %432 : vector<1x512xbf16> to vector<8x512xbf16>
    %434 = arith.mulf %431, %433 : vector<8x512xbf16>
    %c24_131 = arith.constant 24 : index
    %c0_132 = arith.constant 0 : index
    %435 = vector.load %arg17[%c24_131, %c0_132] : memref<108x512xbf16, #tpu.memory_space<vmem>>, vector<8x512xbf16>
    tpu.vector_store %arg17[%c24_131, %c0_132], %434 {strides = array<i32>} : memref<108x512xbf16, #tpu.memory_space<vmem>>, vector<8x512xbf16>,
    %436 = vector.extract_strided_slice %4 {offsets = [4, 0], sizes = [1, 512], strides = [1, 1]} : vector<9x512xbf16> to vector<1x512xbf16>
    %437 = vector.broadcast %436 : vector<1x512xbf16> to vector<8x512xbf16>
    %438 = arith.mulf %406, %437 : vector<8x512xbf16>
    %c32_133 = arith.constant 32 : index
    %c0_134 = arith.constant 0 : index
    %439 = vector.load %arg17[%c32_133, %c0_134] : memref<108x512xbf16, #tpu.memory_space<vmem>>, vector<8x512xbf16>
    tpu.vector_store %arg17[%c32_133, %c0_134], %438 {strides = array<i32>} : memref<108x512xbf16, #tpu.memory_space<vmem>>, vector<8x512xbf16>,
    %440 = vector.extract_strided_slice %406 {offsets = [0, 1], sizes = [8, 511], strides = [1, 1]} : vector<8x512xbf16> to vector<8x511xbf16>
    %441 = vector.extract_strided_slice %406 {offsets = [0, 0], sizes = [8, 1], strides = [1, 1]} : vector<8x512xbf16> to vector<8x1xbf16>
    %442 = tpu.concatenate %440, %441 in 1 : vector<8x511xbf16>, vector<8x1xbf16> -> vector<8x512xbf16>
    %443 = vector.extract_strided_slice %4 {offsets = [5, 0], sizes = [1, 512], strides = [1, 1]} : vector<9x512xbf16> to vector<1x512xbf16>
    %444 = vector.broadcast %443 : vector<1x512xbf16> to vector<8x512xbf16>
    %445 = arith.mulf %442, %444 : vector<8x512xbf16>
    %c40_135 = arith.constant 40 : index
    %c0_136 = arith.constant 0 : index
    %446 = vector.load %arg17[%c40_135, %c0_136] : memref<108x512xbf16, #tpu.memory_space<vmem>>, vector<8x512xbf16>
    tpu.vector_store %arg17[%c40_135, %c0_136], %445 {strides = array<i32>} : memref<108x512xbf16, #tpu.memory_space<vmem>>, vector<8x512xbf16>,
    %447 = vector.extract_strided_slice %406 {offsets = [0, 15], sizes = [8, 497], strides = [1, 1]} : vector<8x512xbf16> to vector<8x497xbf16>
    %448 = vector.extract_strided_slice %406 {offsets = [0, 0], sizes = [8, 15], strides = [1, 1]} : vector<8x512xbf16> to vector<8x15xbf16>
    %449 = tpu.concatenate %447, %448 in 1 : vector<8x497xbf16>, vector<8x15xbf16> -> vector<8x512xbf16>
    %450 = vector.extract_strided_slice %4 {offsets = [6, 0], sizes = [1, 512], strides = [1, 1]} : vector<9x512xbf16> to vector<1x512xbf16>
    %451 = vector.broadcast %450 : vector<1x512xbf16> to vector<8x512xbf16>
    %452 = arith.mulf %449, %451 : vector<8x512xbf16>
    %c48_137 = arith.constant 48 : index
    %c0_138 = arith.constant 0 : index
    %453 = vector.load %arg17[%c48_137, %c0_138] : memref<108x512xbf16, #tpu.memory_space<vmem>>, vector<8x512xbf16>
    tpu.vector_store %arg17[%c48_137, %c0_138], %452 {strides = array<i32>} : memref<108x512xbf16, #tpu.memory_space<vmem>>, vector<8x512xbf16>,
    %454 = vector.extract_strided_slice %406 {offsets = [0, 16], sizes = [8, 496], strides = [1, 1]} : vector<8x512xbf16> to vector<8x496xbf16>
    %455 = vector.extract_strided_slice %406 {offsets = [0, 0], sizes = [8, 16], strides = [1, 1]} : vector<8x512xbf16> to vector<8x16xbf16>
    %456 = tpu.concatenate %454, %455 in 1 : vector<8x496xbf16>, vector<8x16xbf16> -> vector<8x512xbf16>
    %457 = vector.extract_strided_slice %4 {offsets = [7, 0], sizes = [1, 512], strides = [1, 1]} : vector<9x512xbf16> to vector<1x512xbf16>
    %458 = vector.broadcast %457 : vector<1x512xbf16> to vector<8x512xbf16>
    %459 = arith.mulf %456, %458 : vector<8x512xbf16>
    %c56_139 = arith.constant 56 : index
    %c0_140 = arith.constant 0 : index
    %460 = vector.load %arg17[%c56_139, %c0_140] : memref<108x512xbf16, #tpu.memory_space<vmem>>, vector<8x512xbf16>
    tpu.vector_store %arg17[%c56_139, %c0_140], %459 {strides = array<i32>} : memref<108x512xbf16, #tpu.memory_space<vmem>>, vector<8x512xbf16>,
    %461 = vector.extract_strided_slice %406 {offsets = [0, 17], sizes = [8, 495], strides = [1, 1]} : vector<8x512xbf16> to vector<8x495xbf16>
    %462 = vector.extract_strided_slice %406 {offsets = [0, 0], sizes = [8, 17], strides = [1, 1]} : vector<8x512xbf16> to vector<8x17xbf16>
    %463 = tpu.concatenate %461, %462 in 1 : vector<8x495xbf16>, vector<8x17xbf16> -> vector<8x512xbf16>
    %464 = vector.extract_strided_slice %4 {offsets = [8, 0], sizes = [1, 512], strides = [1, 1]} : vector<9x512xbf16> to vector<1x512xbf16>
    %465 = vector.broadcast %464 : vector<1x512xbf16> to vector<8x512xbf16>
    %466 = arith.mulf %463, %465 : vector<8x512xbf16>
    %c64_141 = arith.constant 64 : index
    %c0_142 = arith.constant 0 : index
    %467 = vector.load %arg17[%c64_141, %c0_142] : memref<108x512xbf16, #tpu.memory_space<vmem>>, vector<8x512xbf16>
    tpu.vector_store %arg17[%c64_141, %c0_142], %466 {strides = array<i32>} : memref<108x512xbf16, #tpu.memory_space<vmem>>, vector<8x512xbf16>,
    %cst_143 = arith.constant dense<0.000000e+00> : vector<4x512xf32>
    %468 = tpu.matmul %407, %3, %cst_143 {dimension_numbers = #tpu.dot_dimension_numbers<[1], [0], [0], [1], [0, 0, 1, 1], [], []>} : vector<4x128xbf16>, vector<128x512xbf16>, vector<4x512xf32> -> vector<4x512xf32>
    %469 = arith.truncf %468 : vector<4x512xf32> to vector<4x512xbf16>
    %470 = vector.extract_strided_slice %469 {offsets = [0, 495], sizes = [4, 17], strides = [1, 1]} : vector<4x512xbf16> to vector<4x17xbf16>
    %471 = vector.extract_strided_slice %469 {offsets = [0, 0], sizes = [4, 495], strides = [1, 1]} : vector<4x512xbf16> to vector<4x495xbf16>
    %472 = tpu.concatenate %470, %471 in 1 : vector<4x17xbf16>, vector<4x495xbf16> -> vector<4x512xbf16>
    %473 = vector.extract_strided_slice %4 {offsets = [0, 0], sizes = [1, 512], strides = [1, 1]} : vector<9x512xbf16> to vector<1x512xbf16>
    %474 = vector.broadcast %473 : vector<1x512xbf16> to vector<4x512xbf16>
    %475 = arith.mulf %472, %474 : vector<4x512xbf16>
    %c72_144 = arith.constant 72 : index
    %c0_145 = arith.constant 0 : index
    %476 = vector.load %arg17[%c72_144, %c0_145] : memref<108x512xbf16, #tpu.memory_space<vmem>>, vector<4x512xbf16>
    tpu.vector_store %arg17[%c72_144, %c0_145], %475 {strides = array<i32>} : memref<108x512xbf16, #tpu.memory_space<vmem>>, vector<4x512xbf16>,
    %477 = vector.extract_strided_slice %469 {offsets = [0, 496], sizes = [4, 16], strides = [1, 1]} : vector<4x512xbf16> to vector<4x16xbf16>
    %478 = vector.extract_strided_slice %469 {offsets = [0, 0], sizes = [4, 496], strides = [1, 1]} : vector<4x512xbf16> to vector<4x496xbf16>
    %479 = tpu.concatenate %477, %478 in 1 : vector<4x16xbf16>, vector<4x496xbf16> -> vector<4x512xbf16>
    %480 = vector.extract_strided_slice %4 {offsets = [1, 0], sizes = [1, 512], strides = [1, 1]} : vector<9x512xbf16> to vector<1x512xbf16>
    %481 = vector.broadcast %480 : vector<1x512xbf16> to vector<4x512xbf16>
    %482 = arith.mulf %479, %481 : vector<4x512xbf16>
    %c76_146 = arith.constant 76 : index
    %c0_147 = arith.constant 0 : index
    %483 = vector.load %arg17[%c76_146, %c0_147] : memref<108x512xbf16, #tpu.memory_space<vmem>>, vector<4x512xbf16>
    tpu.vector_store %arg17[%c76_146, %c0_147], %482 {strides = array<i32>} : memref<108x512xbf16, #tpu.memory_space<vmem>>, vector<4x512xbf16>,
    %484 = vector.extract_strided_slice %469 {offsets = [0, 497], sizes = [4, 15], strides = [1, 1]} : vector<4x512xbf16> to vector<4x15xbf16>
    %485 = vector.extract_strided_slice %469 {offsets = [0, 0], sizes = [4, 497], strides = [1, 1]} : vector<4x512xbf16> to vector<4x497xbf16>
    %486 = tpu.concatenate %484, %485 in 1 : vector<4x15xbf16>, vector<4x497xbf16> -> vector<4x512xbf16>
    %487 = vector.extract_strided_slice %4 {offsets = [2, 0], sizes = [1, 512], strides = [1, 1]} : vector<9x512xbf16> to vector<1x512xbf16>
    %488 = vector.broadcast %487 : vector<1x512xbf16> to vector<4x512xbf16>
    %489 = arith.mulf %486, %488 : vector<4x512xbf16>
    %c80_148 = arith.constant 80 : index
    %c0_149 = arith.constant 0 : index
    %490 = vector.load %arg17[%c80_148, %c0_149] : memref<108x512xbf16, #tpu.memory_space<vmem>>, vector<4x512xbf16>
    tpu.vector_store %arg17[%c80_148, %c0_149], %489 {strides = array<i32>} : memref<108x512xbf16, #tpu.memory_space<vmem>>, vector<4x512xbf16>,
    %491 = vector.extract_strided_slice %469 {offsets = [0, 511], sizes = [4, 1], strides = [1, 1]} : vector<4x512xbf16> to vector<4x1xbf16>
    %492 = vector.extract_strided_slice %469 {offsets = [0, 0], sizes = [4, 511], strides = [1, 1]} : vector<4x512xbf16> to vector<4x511xbf16>
    %493 = tpu.concatenate %491, %492 in 1 : vector<4x1xbf16>, vector<4x511xbf16> -> vector<4x512xbf16>
    %494 = vector.extract_strided_slice %4 {offsets = [3, 0], sizes = [1, 512], strides = [1, 1]} : vector<9x512xbf16> to vector<1x512xbf16>
    %495 = vector.broadcast %494 : vector<1x512xbf16> to vector<4x512xbf16>
    %496 = arith.mulf %493, %495 : vector<4x512xbf16>
    %c84_150 = arith.constant 84 : index
    %c0_151 = arith.constant 0 : index
    %497 = vector.load %arg17[%c84_150, %c0_151] : memref<108x512xbf16, #tpu.memory_space<vmem>>, vector<4x512xbf16>
    tpu.vector_store %arg17[%c84_150, %c0_151], %496 {strides = array<i32>} : memref<108x512xbf16, #tpu.memory_space<vmem>>, vector<4x512xbf16>,
    %498 = vector.extract_strided_slice %4 {offsets = [4, 0], sizes = [1, 512], strides = [1, 1]} : vector<9x512xbf16> to vector<1x512xbf16>
    %499 = vector.broadcast %498 : vector<1x512xbf16> to vector<4x512xbf16>
    %500 = arith.mulf %469, %499 : vector<4x512xbf16>
    %c88_152 = arith.constant 88 : index
    %c0_153 = arith.constant 0 : index
    %501 = vector.load %arg17[%c88_152, %c0_153] : memref<108x512xbf16, #tpu.memory_space<vmem>>, vector<4x512xbf16>
    tpu.vector_store %arg17[%c88_152, %c0_153], %500 {strides = array<i32>} : memref<108x512xbf16, #tpu.memory_space<vmem>>, vector<4x512xbf16>,
    %502 = vector.extract_strided_slice %469 {offsets = [0, 1], sizes = [4, 511], strides = [1, 1]} : vector<4x512xbf16> to vector<4x511xbf16>
    %503 = vector.extract_strided_slice %469 {offsets = [0, 0], sizes = [4, 1], strides = [1, 1]} : vector<4x512xbf16> to vector<4x1xbf16>
    %504 = tpu.concatenate %502, %503 in 1 : vector<4x511xbf16>, vector<4x1xbf16> -> vector<4x512xbf16>
    %505 = vector.extract_strided_slice %4 {offsets = [5, 0], sizes = [1, 512], strides = [1, 1]} : vector<9x512xbf16> to vector<1x512xbf16>
    %506 = vector.broadcast %505 : vector<1x512xbf16> to vector<4x512xbf16>
    %507 = arith.mulf %504, %506 : vector<4x512xbf16>
    %c92_154 = arith.constant 92 : index
    %c0_155 = arith.constant 0 : index
    %508 = vector.load %arg17[%c92_154, %c0_155] : memref<108x512xbf16, #tpu.memory_space<vmem>>, vector<4x512xbf16>
    tpu.vector_store %arg17[%c92_154, %c0_155], %507 {strides = array<i32>} : memref<108x512xbf16, #tpu.memory_space<vmem>>, vector<4x512xbf16>,
    %509 = vector.extract_strided_slice %469 {offsets = [0, 15], sizes = [4, 497], strides = [1, 1]} : vector<4x512xbf16> to vector<4x497xbf16>
    %510 = vector.extract_strided_slice %469 {offsets = [0, 0], sizes = [4, 15], strides = [1, 1]} : vector<4x512xbf16> to vector<4x15xbf16>
    %511 = tpu.concatenate %509, %510 in 1 : vector<4x497xbf16>, vector<4x15xbf16> -> vector<4x512xbf16>
    %512 = vector.extract_strided_slice %4 {offsets = [6, 0], sizes = [1, 512], strides = [1, 1]} : vector<9x512xbf16> to vector<1x512xbf16>
    %513 = vector.broadcast %512 : vector<1x512xbf16> to vector<4x512xbf16>
    %514 = arith.mulf %511, %513 : vector<4x512xbf16>
    %c96_156 = arith.constant 96 : index
    %c0_157 = arith.constant 0 : index
    %515 = vector.load %arg17[%c96_156, %c0_157] : memref<108x512xbf16, #tpu.memory_space<vmem>>, vector<4x512xbf16>
    tpu.vector_store %arg17[%c96_156, %c0_157], %514 {strides = array<i32>} : memref<108x512xbf16, #tpu.memory_space<vmem>>, vector<4x512xbf16>,
    %516 = vector.extract_strided_slice %469 {offsets = [0, 16], sizes = [4, 496], strides = [1, 1]} : vector<4x512xbf16> to vector<4x496xbf16>
    %517 = vector.extract_strided_slice %469 {offsets = [0, 0], sizes = [4, 16], strides = [1, 1]} : vector<4x512xbf16> to vector<4x16xbf16>
    %518 = tpu.concatenate %516, %517 in 1 : vector<4x496xbf16>, vector<4x16xbf16> -> vector<4x512xbf16>
    %519 = vector.extract_strided_slice %4 {offsets = [7, 0], sizes = [1, 512], strides = [1, 1]} : vector<9x512xbf16> to vector<1x512xbf16>
    %520 = vector.broadcast %519 : vector<1x512xbf16> to vector<4x512xbf16>
    %521 = arith.mulf %518, %520 : vector<4x512xbf16>
    %c100_158 = arith.constant 100 : index
    %c0_159 = arith.constant 0 : index
    %522 = vector.load %arg17[%c100_158, %c0_159] : memref<108x512xbf16, #tpu.memory_space<vmem>>, vector<4x512xbf16>
    tpu.vector_store %arg17[%c100_158, %c0_159], %521 {strides = array<i32>} : memref<108x512xbf16, #tpu.memory_space<vmem>>, vector<4x512xbf16>,
    %523 = vector.extract_strided_slice %469 {offsets = [0, 17], sizes = [4, 495], strides = [1, 1]} : vector<4x512xbf16> to vector<4x495xbf16>
    %524 = vector.extract_strided_slice %469 {offsets = [0, 0], sizes = [4, 17], strides = [1, 1]} : vector<4x512xbf16> to vector<4x17xbf16>
    %525 = tpu.concatenate %523, %524 in 1 : vector<4x495xbf16>, vector<4x17xbf16> -> vector<4x512xbf16>
    %526 = vector.extract_strided_slice %4 {offsets = [8, 0], sizes = [1, 512], strides = [1, 1]} : vector<9x512xbf16> to vector<1x512xbf16>
    %527 = vector.broadcast %526 : vector<1x512xbf16> to vector<4x512xbf16>
    %528 = arith.mulf %525, %527 : vector<4x512xbf16>
    %c104_160 = arith.constant 104 : index
    %c0_161 = arith.constant 0 : index
    %529 = vector.load %arg17[%c104_160, %c0_161] : memref<108x512xbf16, #tpu.memory_space<vmem>>, vector<4x512xbf16>
    tpu.vector_store %arg17[%c104_160, %c0_161], %528 {strides = array<i32>} : memref<108x512xbf16, #tpu.memory_space<vmem>>, vector<4x512xbf16>,
    %c0_162 = arith.constant 0 : index
    %c0_163 = arith.constant 0 : index
    %530 = vector.load %arg14[%c0_162, %c0_163] : memref<8x108xbf16, #tpu.memory_space<vmem>>, vector<8x108xbf16>
    %c0_164 = arith.constant 0 : index
    %c0_165 = arith.constant 0 : index
    %531 = vector.load %arg17[%c0_164, %c0_165] : memref<108x512xbf16, #tpu.memory_space<vmem>>, vector<108x512xbf16>
    %cst_166 = arith.constant dense<0.000000e+00> : vector<8x512xf32>
    %532 = tpu.matmul %530, %531, %cst_166 {dimension_numbers = #tpu.dot_dimension_numbers<[1], [0], [0], [1], [0, 0, 1, 1], [], []>} : vector<8x108xbf16>, vector<108x512xbf16>, vector<8x512xf32> -> vector<8x512xf32>
    %c0_167 = arith.constant 0 : index
    %c0_168 = arith.constant 0 : index
    %533 = vector.load %arg15[%c0_167, %c0_168] : memref<8x1xf32, #tpu.memory_space<vmem>>, vector<8x1xf32>
    %534 = vector.broadcast %533 : vector<8x1xf32> to vector<8x512xf32>
    %535 = arith.addf %532, %534 : vector<8x512xf32>
    %cst_169 = arith.constant 0.000000e+00 : f32
    %536 = vector.broadcast %cst_169 : f32 to vector<8x512xf32>
    %537 = arith.maximumf %535, %536 : vector<8x512xf32>
    %c0_170 = arith.constant 0 : index
    %c0_171 = arith.constant 0 : index
    %538 = vector.load %arg16[%c0_170, %c0_171] : memref<8x512xf32, #tpu.memory_space<vmem>>, vector<8x512xf32>
    tpu.vector_store %arg16[%c0_170, %c0_171], %537 {strides = array<i32>} : memref<8x512xf32, #tpu.memory_space<vmem>>, vector<8x512xf32>,
    return
  }
  func.func @transform_0(%arg0: i32) -> (i32, i32) {
    %c0_i32 = arith.constant 0 : i32
    %c0_i32_0 = arith.constant 0 : i32
    return %c0_i32, %arg0 : i32, i32
  }
  func.func @transform_1(%arg0: i32) -> (i32, i32) {
    %c0_i32 = arith.constant 0 : i32
    %c0_i32_0 = arith.constant 0 : i32
    %c0_i32_1 = arith.constant 0 : i32
    return %c0_i32, %c0_i32_0 : i32, i32
  }
  func.func @transform_2(%arg0: i32) -> (i32, i32) {
    %c0_i32 = arith.constant 0 : i32
    %c0_i32_0 = arith.constant 0 : i32
    %c0_i32_1 = arith.constant 0 : i32
    return %c0_i32, %c0_i32_0 : i32, i32
  }
  func.func @transform_3(%arg0: i32) -> (i32, i32) {
    %c0_i32 = arith.constant 0 : i32
    %c0_i32_0 = arith.constant 0 : i32
    %c0_i32_1 = arith.constant 0 : i32
    return %c0_i32, %c0_i32_0 : i32, i32
  }
  func.func @transform_4(%arg0: i32) -> (i32, i32) {
    %c0_i32 = arith.constant 0 : i32
    %c0_i32_0 = arith.constant 0 : i32
    %c0_i32_1 = arith.constant 0 : i32
    return %c0_i32, %c0_i32_0 : i32, i32
  }
  func.func @transform_5(%arg0: i32) -> (i32, i32) {
    %c0_i32 = arith.constant 0 : i32
    %c0_i32_0 = arith.constant 0 : i32
    %c0_i32_1 = arith.constant 0 : i32
    return %c0_i32, %c0_i32_0 : i32, i32
  }
  func.func @transform_6(%arg0: i32) -> (i32, i32) {
    %c0_i32 = arith.constant 0 : i32
    %c0_i32_0 = arith.constant 0 : i32
    %c0_i32_1 = arith.constant 0 : i32
    return %c0_i32, %c0_i32_0 : i32, i32
  }
  func.func @transform_7(%arg0: i32) -> (i32, i32) {
    %c0_i32 = arith.constant 0 : i32
    %c0_i32_0 = arith.constant 0 : i32
    %c0_i32_1 = arith.constant 0 : i32
    return %c0_i32, %c0_i32_0 : i32, i32
  }
  func.func @transform_8(%arg0: i32) -> (i32, i32) {
    %c0_i32 = arith.constant 0 : i32
    %c0_i32_0 = arith.constant 0 : i32
    %c0_i32_1 = arith.constant 0 : i32
    return %c0_i32, %c0_i32_0 : i32, i32
  }
  func.func @transform_9(%arg0: i32) -> (i32, i32) {
    %c0_i32 = arith.constant 0 : i32
    %c0_i32_0 = arith.constant 0 : i32
    %c0_i32_1 = arith.constant 0 : i32
    return %c0_i32, %c0_i32_0 : i32, i32
  }
  func.func @transform_10(%arg0: i32) -> (i32, i32) {
    %c0_i32 = arith.constant 0 : i32
    %c0_i32_0 = arith.constant 0 : i32
    %c0_i32_1 = arith.constant 0 : i32
    return %c0_i32, %c0_i32_0 : i32, i32
  }
  func.func @transform_11(%arg0: i32) -> (i32, i32) {
    %c0_i32 = arith.constant 0 : i32
    %c0_i32_0 = arith.constant 0 : i32
    %c0_i32_1 = arith.constant 0 : i32
    return %c0_i32, %c0_i32_0 : i32, i32
  }
  func.func @transform_12(%arg0: i32) -> (i32, i32) {
    %c0_i32 = arith.constant 0 : i32
    %c0_i32_0 = arith.constant 0 : i32
    %c0_i32_1 = arith.constant 0 : i32
    return %c0_i32, %c0_i32_0 : i32, i32
  }
  func.func @transform_13(%arg0: i32) -> (i32, i32) {
    %c0_i32 = arith.constant 0 : i32
    %c0_i32_0 = arith.constant 0 : i32
    %c0_i32_1 = arith.constant 0 : i32
    return %c0_i32, %c0_i32_0 : i32, i32
  }
  func.func @transform_14(%arg0: i32) -> (i32, i32) {
    %c0_i32 = arith.constant 0 : i32
    %c0_i32_0 = arith.constant 0 : i32
    %c0_i32_1 = arith.constant 0 : i32
    return %c0_i32, %c0_i32_0 : i32, i32
  }
  func.func @transform_15(%arg0: i32) -> (i32, i32) {
    %c0_i32 = arith.constant 0 : i32
    %c0_i32_0 = arith.constant 0 : i32
    return %c0_i32, %arg0 : i32, i32
  }
}

</mosaic_0001>

<llo_original>
// kernel: sim_forward.1
$region0: #{sim_forward.1}
  #allocation0 [shape = 'u32[]', space=smem, size = 0x4, offset = 0x4, fixed_abs, tag = 'smem constant byte address 0x4 - core index']
  #allocation1 [shape = 'u32[144,128]{1,0:T(1,128)}', space=vmem, size = 0x12000, scoped, tag = 'internal scratch']
  #allocation2 [shape = 'bf16[108,512]{1,0:T(8,128)(2,1)}', space=vmem, size = 0x1c000, scoped, tag = 'scratch operand']
  #allocation3 [shape = 'bf16[108,128]{1,0:T(8,128)(2,1)}', space=vmem, size = 0x7000, scoped, tag = 'scratch operand']
  %s0 = inlined_call_operand.vmem [shape: f32[8,512], index: 0, kind: input, shape index: {}]
  %s1 = inlined_call_operand.vmem [shape: bf16[512,128], index: 1, kind: input, shape index: {}]
  %s2 = inlined_call_operand.vmem [shape: bf16[128,512], index: 2, kind: input, shape index: {}]
  %s3 = inlined_call_operand.vmem [shape: bf16[9,512], index: 3, kind: input, shape index: {}]
  %s4 = inlined_call_operand.vmem [shape: bf16[9,128], index: 4, kind: input, shape index: {}]
  %s5 = inlined_call_operand.vmem [shape: bf16[8,72], index: 5, kind: input, shape index: {}]
  %s6 = inlined_call_operand.vmem [shape: f32[8,1], index: 6, kind: input, shape index: {}]
  %s7 = inlined_call_operand.vmem [shape: bf16[4,72], index: 7, kind: input, shape index: {}]
  %s8 = inlined_call_operand.vmem [shape: f32[4,1], index: 8, kind: input, shape index: {}]
  %s9 = inlined_call_operand.vmem [shape: bf16[8,108], index: 9, kind: input, shape index: {}]
  %s10 = inlined_call_operand.vmem [shape: f32[8,1], index: 10, kind: input, shape index: {}]
  %s11 = inlined_call_operand.vmem [shape: bf16[4,108], index: 11, kind: input, shape index: {}]
  %s12 = inlined_call_operand.vmem [shape: f32[4,1], index: 12, kind: input, shape index: {}]
  %s13 = inlined_call_operand.vmem [shape: bf16[8,108], index: 13, kind: input, shape index: {}]
  %s14 = inlined_call_operand.vmem [shape: f32[8,1], index: 14, kind: input, shape index: {}]
  %s15 = inlined_call_operand.vmem [shape: f32[8,512], index: 15, kind: output, shape index: {}]
  %s16 = sld [smem:[#allocation0]]
  $region70: #{sim_forward.1} parent=0
    _
  %s18 = ssub.s32 1, %s16
  %s19 = scalar_select 0, %s18, %s16
  // Predicated region
  $region2: #{sim_forward.1} parent=0 // pred_check
    _
  $region3: #{sim_forward.1} parent=0 // pred_check_branch
    %21 = sbr.rel (0) target = $region5
  $region4: #{sim_forward.1} parent=0 // pred_region
    _
  $region5: #{sim_forward.1} parent=0 // pred_fallthru
    _
  // Predicated region
  $region6: #{sim_forward.1} parent=0 // pred_check
    _
  $region7: #{sim_forward.1} parent=0 // pred_check_branch
    %23 = sbr.rel (0) target = $region9
  $region8: #{sim_forward.1} parent=0 // pred_region
    _
  $region9: #{sim_forward.1} parent=0 // pred_fallthru
    _
  // Predicated region
  $region10: #{sim_forward.1} parent=0 // pred_check
    _
  $region11: #{sim_forward.1} parent=0 // pred_check_branch
    %25 = sbr.rel (0) target = $region13
  $region12: #{sim_forward.1} parent=0 // pred_region
    _
  $region13: #{sim_forward.1} parent=0 // pred_fallthru
    _
  // Predicated region
  $region14: #{sim_forward.1} parent=0 // pred_check
    _
  $region15: #{sim_forward.1} parent=0 // pred_check_branch
    %27 = sbr.rel (0) target = $region17
  $region16: #{sim_forward.1} parent=0 // pred_region
    _
  $region17: #{sim_forward.1} parent=0 // pred_fallthru
    _
  // Predicated region
  $region18: #{sim_forward.1} parent=0 // pred_check
    _
  $region19: #{sim_forward.1} parent=0 // pred_check_branch
    %29 = sbr.rel (0) target = $region21
  $region20: #{sim_forward.1} parent=0 // pred_region
    _
  $region21: #{sim_forward.1} parent=0 // pred_fallthru
    _
  // Predicated region
  $region22: #{sim_forward.1} parent=0 // pred_check
    _
  $region23: #{sim_forward.1} parent=0 // pred_check_branch
    %31 = sbr.rel (0) target = $region25
  $region24: #{sim_forward.1} parent=0 // pred_region
    _
  $region25: #{sim_forward.1} parent=0 // pred_fallthru
    _
  // Predicated region
  $region26: #{sim_forward.1} parent=0 // pred_check
    _
  $region27: #{sim_forward.1} parent=0 // pred_check_branch
    %33 = sbr.rel (0) target = $region29
  $region28: #{sim_forward.1} parent=0 // pred_region
    _
  $region29: #{sim_forward.1} parent=0 // pred_fallthru
    _
  // Predicated region
  $region30: #{sim_forward.1} parent=0 // pred_check
    _
  $region31: #{sim_forward.1} parent=0 // pred_check_branch
    %35 = sbr.rel (0) target = $region33
  $region32: #{sim_forward.1} parent=0 // pred_region
    _
  $region33: #{sim_forward.1} parent=0 // pred_fallthru
    _
  // Predicated region
  $region34: #{sim_forward.1} parent=0 // pred_check
    _
  $region35: #{sim_forward.1} parent=0 // pred_check_branch
    %37 = sbr.rel (0) target = $region37
  $region36: #{sim_forward.1} parent=0 // pred_region
    _
  $region37: #{sim_forward.1} parent=0 // pred_fallthru
    _
  // Predicated region
  $region38: #{sim_forward.1} parent=0 // pred_check
    _
  $region39: #{sim_forward.1} parent=0 // pred_check_branch
    %39 = sbr.rel (0) target = $region41
  $region40: #{sim_forward.1} parent=0 // pred_region
    _
  $region41: #{sim_forward.1} parent=0 // pred_fallthru
    _
  // Predicated region
  $region42: #{sim_forward.1} parent=0 // pred_check
    _
  $region43: #{sim_forward.1} parent=0 // pred_check_branch
    %41 = sbr.rel (0) target = $region45
  $region44: #{sim_forward.1} parent=0 // pred_region
    _
  $region45: #{sim_forward.1} parent=0 // pred_fallthru
    _
  // Predicated region
  $region46: #{sim_forward.1} parent=0 // pred_check
    _
  $region47: #{sim_forward.1} parent=0 // pred_check_branch
    %43 = sbr.rel (0) target = $region49
  $region48: #{sim_forward.1} parent=0 // pred_region
    _
  $region49: #{sim_forward.1} parent=0 // pred_fallthru
    _
  // Predicated region
  $region50: #{sim_forward.1} parent=0 // pred_check
    _
  $region51: #{sim_forward.1} parent=0 // pred_check_branch
    %45 = sbr.rel (0) target = $region53
  $region52: #{sim_forward.1} parent=0 // pred_region
    _
  $region53: #{sim_forward.1} parent=0 // pred_fallthru
    _
  // Predicated region
  $region54: #{sim_forward.1} parent=0 // pred_check
    _
  $region55: #{sim_forward.1} parent=0 // pred_check_branch
    %47 = sbr.rel (0) target = $region57
  $region56: #{sim_forward.1} parent=0 // pred_region
    _
  $region57: #{sim_forward.1} parent=0 // pred_fallthru
    _
  // Predicated region
  $region58: #{sim_forward.1} parent=0 // pred_check
    _
  $region59: #{sim_forward.1} parent=0 // pred_check_branch
    %49 = sbr.rel (0) target = $region61
  $region60: #{sim_forward.1} parent=0 // pred_region
    _
  $region61: #{sim_forward.1} parent=0 // pred_fallthru
    _
  %v51 = vld [vmem:[%s0] sm:$0xff]
  %v52 = vld [vmem:[%s0 + $0x8] sm:$0xff]
  %v53 = vld [vmem:[%s0 + $0x10] sm:$0xff]
  %v54 = vld [vmem:[%s0 + $0x18] sm:$0xff]
  %v55 = vpack.c.bf16 %v51, %v51
  %v56 = vpack.c.bf16 %v52, %v52
  %v57 = vpack.c.bf16 %v53, %v53
  %v58 = vpack.c.bf16 %v54, %v54
  %v59 = vld [vmem:[%s1] sm:$0xf]
  %v60 = vld [vmem:[%s1 + $0x4] sm:$0xf]
  %v61 = vld [vmem:[%s1 + $0x8] sm:$0xf]
  %v62 = vld [vmem:[%s1 + $0xc] sm:$0xf]
  %v63 = vld [vmem:[%s1 + $0x10] sm:$0xf]
  %v64 = vld [vmem:[%s1 + $0x14] sm:$0xf]
  %v65 = vld [vmem:[%s1 + $0x18] sm:$0xf]
  %v66 = vld [vmem:[%s1 + $0x1c] sm:$0xf]
  %v67 = vld [vmem:[%s1 + $0x20] sm:$0xf]
  %v68 = vld [vmem:[%s1 + $0x24] sm:$0xf]
  %v69 = vld [vmem:[%s1 + $0x28] sm:$0xf]
  %v70 = vld [vmem:[%s1 + $0x2c] sm:$0xf]
  %v71 = vld [vmem:[%s1 + $0x30] sm:$0xf]
  %v72 = vld [vmem:[%s1 + $0x34] sm:$0xf]
  %v73 = vld [vmem:[%s1 + $0x38] sm:$0xf]
  %v74 = vld [vmem:[%s1 + $0x3c] sm:$0xf]
  %v75 = vld [vmem:[%s1 + $0x40] sm:$0xf]
  %v76 = vld [vmem:[%s1 + $0x44] sm:$0xf]
  %v77 = vld [vmem:[%s1 + $0x48] sm:$0xf]
  %v78 = vld [vmem:[%s1 + $0x4c] sm:$0xf]
  %v79 = vld [vmem:[%s1 + $0x50] sm:$0xf]
  %v80 = vld [vmem:[%s1 + $0x54] sm:$0xf]
  %v81 = vld [vmem:[%s1 + $0x58] sm:$0xf]
  %v82 = vld [vmem:[%s1 + $0x5c] sm:$0xf]
  %v83 = vld [vmem:[%s1 + $0x60] sm:$0xf]
  %v84 = vld [vmem:[%s1 + $0x64] sm:$0xf]
  %v85 = vld [vmem:[%s1 + $0x68] sm:$0xf]
  %v86 = vld [vmem:[%s1 + $0x6c] sm:$0xf]
  %v87 = vld [vmem:[%s1 + $0x70] sm:$0xf]
  %v88 = vld [vmem:[%s1 + $0x74] sm:$0xf]
  %v89 = vld [vmem:[%s1 + $0x78] sm:$0xf]
  %v90 = vld [vmem:[%s1 + $0x7c] sm:$0xf]
  %v91 = vld [vmem:[%s1 + $0x80] sm:$0xf]
  %v92 = vld [vmem:[%s1 + $0x84] sm:$0xf]
  %v93 = vld [vmem:[%s1 + $0x88] sm:$0xf]
  %v94 = vld [vmem:[%s1 + $0x8c] sm:$0xf]
  %v95 = vld [vmem:[%s1 + $0x90] sm:$0xf]
  %v96 = vld [vmem:[%s1 + $0x94] sm:$0xf]
  %v97 = vld [vmem:[%s1 + $0x98] sm:$0xf]
  %v98 = vld [vmem:[%s1 + $0x9c] sm:$0xf]
  %v99 = vld [vmem:[%s1 + $0xa0] sm:$0xf]
  %v100 = vld [vmem:[%s1 + $0xa4] sm:$0xf]
  %v101 = vld [vmem:[%s1 + $0xa8] sm:$0xf]
  %v102 = vld [vmem:[%s1 + $0xac] sm:$0xf]
  %v103 = vld [vmem:[%s1 + $0xb0] sm:$0xf]
  %v104 = vld [vmem:[%s1 + $0xb4] sm:$0xf]
  %v105 = vld [vmem:[%s1 + $0xb8] sm:$0xf]
  %v106 = vld [vmem:[%s1 + $0xbc] sm:$0xf]
  %v107 = vld [vmem:[%s1 + $0xc0] sm:$0xf]
  %v108 = vld [vmem:[%s1 + $0xc4] sm:$0xf]
  %v109 = vld [vmem:[%s1 + $0xc8] sm:$0xf]
  %v110 = vld [vmem:[%s1 + $0xcc] sm:$0xf]
  %v111 = vld [vmem:[%s1 + $0xd0] sm:$0xf]
  %v112 = vld [vmem:[%s1 + $0xd4] sm:$0xf]
  %v113 = vld [vmem:[%s1 + $0xd8] sm:$0xf]
  %v114 = vld [vmem:[%s1 + $0xdc] sm:$0xf]
  %v115 = vld [vmem:[%s1 + $0xe0] sm:$0xf]
  %v116 = vld [vmem:[%s1 + $0xe4] sm:$0xf]
  %v117 = vld [vmem:[%s1 + $0xe8] sm:$0xf]
  %v118 = vld [vmem:[%s1 + $0xec] sm:$0xf]
  %v119 = vld [vmem:[%s1 + $0xf0] sm:$0xf]
  %v120 = vld [vmem:[%s1 + $0xf4] sm:$0xf]
  %v121 = vld [vmem:[%s1 + $0xf8] sm:$0xf]
  %v122 = vld [vmem:[%s1 + $0xfc] sm:$0xf]
  %v123 = vld [vmem:[%s2] sm:$0xff]
  %v124 = vld [vmem:[%s2 + $0x8] sm:$0xff]
  %v125 = vld [vmem:[%s2 + $0x10] sm:$0xff]
  %v126 = vld [vmem:[%s2 + $0x18] sm:$0xff]
  %v127 = vld [vmem:[%s2 + $0x20] sm:$0xff]
  %v128 = vld [vmem:[%s2 + $0x28] sm:$0xff]
  %v129 = vld [vmem:[%s2 + $0x30] sm:$0xff]
  %v130 = vld [vmem:[%s2 + $0x38] sm:$0xff]
  %v131 = vld [vmem:[%s2 + $0x40] sm:$0xff]
  %v132 = vld [vmem:[%s2 + $0x48] sm:$0xff]
  %v133 = vld [vmem:[%s2 + $0x50] sm:$0xff]
  %v134 = vld [vmem:[%s2 + $0x58] sm:$0xff]
  %v135 = vld [vmem:[%s2 + $0x60] sm:$0xff]
  %v136 = vld [vmem:[%s2 + $0x68] sm:$0xff]
  %v137 = vld [vmem:[%s2 + $0x70] sm:$0xff]
  %v138 = vld [vmem:[%s2 + $0x78] sm:$0xff]
  %v139 = vld [vmem:[%s2 + $0x80] sm:$0xff]
  %v140 = vld [vmem:[%s2 + $0x88] sm:$0xff]
  %v141 = vld [vmem:[%s2 + $0x90] sm:$0xff]
  %v142 = vld [vmem:[%s2 + $0x98] sm:$0xff]
  %v143 = vld [vmem:[%s2 + $0xa0] sm:$0xff]
  %v144 = vld [vmem:[%s2 + $0xa8] sm:$0xff]
  %v145 = vld [vmem:[%s2 + $0xb0] sm:$0xff]
  %v146 = vld [vmem:[%s2 + $0xb8] sm:$0xff]
  %v147 = vld [vmem:[%s2 + $0xc0] sm:$0xff]
  %v148 = vld [vmem:[%s2 + $0xc8] sm:$0xff]
  %v149 = vld [vmem:[%s2 + $0xd0] sm:$0xff]
  %v150 = vld [vmem:[%s2 + $0xd8] sm:$0xff]
  %v151 = vld [vmem:[%s2 + $0xe0] sm:$0xff]
  %v152 = vld [vmem:[%s2 + $0xe8] sm:$0xff]
  %v153 = vld [vmem:[%s2 + $0xf0] sm:$0xff]
  %v154 = vld [vmem:[%s2 + $0xf8] sm:$0xff]
  %v155 = vld [vmem:[%s3] sm:$0xff]
  %v156 = vld [vmem:[%s3 + $0x8] sm:$0xff]
  %v157 = vld [vmem:[%s3 + $0x10] sm:$0x11]
  %v158 = vld [vmem:[%s3 + $0x18] sm:$0x11]
  %v159 = vld [vmem:[%s4] sm:$0xf]
  %v160 = vld [vmem:[%s4 + $0x4] sm:$0x1]
  %162 = vrot.lane.b32.xlu0 %v58, 17
  %v163 = vpop.permute.xlu0 %162
  %167 = vrot.lane.b32.xlu0 %v55, 17
  %v168 = vpop.permute.xlu0 %167
  %169 = vrot.lane.b32.xlu0 %v56, 17
  %v170 = vpop.permute.xlu0 %169
  %171 = vrot.lane.b32.xlu0 %v57, 17
  %v172 = vpop.permute.xlu0 %171
  %vm173 = vcmask 138240
  %v174 = vsel %vm173, %v168, %v170
  %v175 = vsel %vm173, %v170, %v172
  %v176 = vsel %vm173, %v172, %v163
  %vm180 = vcmask 138240
  %v183 = vsel %vm180, %v163, %v168
  %v187 = vunpack.c.l.b16 %v155
  %v188 = vunpack.c.h.b16 %v155
  %v189 = vunpack.c.l.b16 %v156
  %v190 = vunpack.c.h.b16 %v156
  %v191 = vpack.c.b16 %v187, %v187
  %v192 = vpack.c.b16 %v188, %v188
  %v193 = vpack.c.b16 %v189, %v189
  %v194 = vpack.c.b16 %v190, %v190
  %v196 = vpack.i.b16 %v191, %v191
  %v198 = vlaneseq
  %v199 = vshrl.u32 %v198, 7
  %v200 = vsub.s32 0, %v199
  %v201 = vrot.slane %v196, %v200
  %v203 = vpack.i.b16 %v192, %v192
  %v205 = vlaneseq
  %v206 = vshrl.u32 %v205, 7
  %v207 = vsub.s32 0, %v206
  %v208 = vrot.slane %v203, %v207
  %v210 = vpack.i.b16 %v193, %v193
  %v212 = vlaneseq
  %v213 = vshrl.u32 %v212, 7
  %v214 = vsub.s32 0, %v213
  %v215 = vrot.slane %v210, %v214
  %v217 = vpack.i.b16 %v194, %v194
  %v219 = vlaneseq
  %v220 = vshrl.u32 %v219, 7
  %v221 = vsub.s32 0, %v220
  %v222 = vrot.slane %v217, %v221
  %v223 = vmul.bf16 %v183, %v201
  %v224 = vmul.bf16 %v174, %v208
  %v225 = vmul.bf16 %v175, %v215
  %v226 = vmul.bf16 %v176, %v222
  %v231 = vunpack.c.l.b16 %v223
  %v232 = vunpack.c.l.b16 %v224
  %v233 = vunpack.c.l.b16 %v225
  %v234 = vunpack.c.l.b16 %v226
  %v235 = vpack.c.b16 %v232, %v231
  %v236 = vpack.c.b16 %v234, %v233
  %239 = vst [vmem:[#allocation2] sm:$0xff] %v235
  %240 = vst [vmem:[#allocation2 + $0x8] sm:$0xff] %v236
  %241 = vrot.lane.b32.xlu0 %v58, 16
  %v242 = vpop.permute.xlu0 %241
  %243 = vrot.lane.b32.xlu0 %v55, 16
  %v244 = vpop.permute.xlu0 %243
  %245 = vrot.lane.b32.xlu0 %v56, 16
  %v246 = vpop.permute.xlu0 %245
  %247 = vrot.lane.b32.xlu0 %v57, 16
  %v248 = vpop.permute.xlu0 %247
  %vm249 = vcmask 130048
  %v250 = vsel %vm249, %v244, %v246
  %v251 = vsel %vm249, %v246, %v248
  %v252 = vsel %vm249, %v248, %v242
  %vm256 = vcmask 130048
  %v259 = vsel %vm256, %v242, %v244
  %v261 = vshrl.u32 %v191, 16
  %v262 = vpack.i.b16 %v261, %v261
  %v264 = vlaneseq
  %v265 = vshrl.u32 %v264, 7
  %v266 = vsub.s32 0, %v265
  %v267 = vrot.slane %v262, %v266
  %v268 = vshrl.u32 %v192, 16
  %v269 = vpack.i.b16 %v268, %v268
  %v271 = vlaneseq
  %v272 = vshrl.u32 %v271, 7
  %v273 = vsub.s32 0, %v272
  %v274 = vrot.slane %v269, %v273
  %v275 = vshrl.u32 %v193, 16
  %v276 = vpack.i.b16 %v275, %v275
  %v278 = vlaneseq
  %v279 = vshrl.u32 %v278, 7
  %v280 = vsub.s32 0, %v279
  %v281 = vrot.slane %v276, %v280
  %v282 = vshrl.u32 %v194, 16
  %v283 = vpack.i.b16 %v282, %v282
  %v285 = vlaneseq
  %v286 = vshrl.u32 %v285, 7
  %v287 = vsub.s32 0, %v286
  %v288 = vrot.slane %v283, %v287
  %v289 = vmul.bf16 %v259, %v267
  %v290 = vmul.bf16 %v250, %v274
  %v291 = vmul.bf16 %v251, %v281
  %v292 = vmul.bf16 %v252, %v288
  %v297 = vunpack.c.l.b16 %v289
  %v298 = vunpack.c.l.b16 %v290
  %v299 = vunpack.c.l.b16 %v291
  %v300 = vunpack.c.l.b16 %v292
  %v301 = vpack.c.b16 %v298, %v297
  %v302 = vpack.c.b16 %v300, %v299
  %305 = vst [vmem:[#allocation2 + $0x10] sm:$0xff] %v301
  %306 = vst [vmem:[#allocation2 + $0x18] sm:$0xff] %v302
  %307 = vrot.lane.b32.xlu0 %v58, 15
  %v308 = vpop.permute.xlu0 %307
  %309 = vrot.lane.b32.xlu0 %v55, 15
  %v310 = vpop.permute.xlu0 %309
  %311 = vrot.lane.b32.xlu0 %v56, 15
  %v312 = vpop.permute.xlu0 %311
  %313 = vrot.lane.b32.xlu0 %v57, 15
  %v314 = vpop.permute.xlu0 %313
  %vm315 = vcmask 121856
  %v316 = vsel %vm315, %v310, %v312
  %v317 = vsel %vm315, %v312, %v314
  %v318 = vsel %vm315, %v314, %v308
  %vm322 = vcmask 121856
  %v325 = vsel %vm322, %v308, %v310
  %v327 = vlaneseq
  %v328 = vshrl.u32 %v327, 7
  %v329 = vsub.s32 1, %v328
  %v330 = vrot.slane %v196, %v329
  %v331 = vlaneseq
  %v332 = vshrl.u32 %v331, 7
  %v333 = vsub.s32 1, %v332
  %v334 = vrot.slane %v203, %v333
  %v335 = vlaneseq
  %v336 = vshrl.u32 %v335, 7
  %v337 = vsub.s32 1, %v336
  %v338 = vrot.slane %v210, %v337
  %v339 = vlaneseq
  %v340 = vshrl.u32 %v339, 7
  %v341 = vsub.s32 1, %v340
  %v342 = vrot.slane %v217, %v341
  %v343 = vmul.bf16 %v325, %v330
  %v344 = vmul.bf16 %v316, %v334
  %v345 = vmul.bf16 %v317, %v338
  %v346 = vmul.bf16 %v318, %v342
  %v351 = vunpack.c.l.b16 %v343
  %v352 = vunpack.c.l.b16 %v344
  %v353 = vunpack.c.l.b16 %v345
  %v354 = vunpack.c.l.b16 %v346
  %v355 = vpack.c.b16 %v352, %v351
  %v356 = vpack.c.b16 %v354, %v353
  %359 = vst [vmem:[#allocation2 + $0x20] sm:$0xff] %v355
  %360 = vst [vmem:[#allocation2 + $0x28] sm:$0xff] %v356
  %361 = vrot.lane.b32.xlu0 %v58, 1
  %v362 = vpop.permute.xlu0 %361
  %363 = vrot.lane.b32.xlu0 %v55, 1
  %v364 = vpop.permute.xlu0 %363
  %365 = vrot.lane.b32.xlu0 %v56, 1
  %v366 = vpop.permute.xlu0 %365
  %367 = vrot.lane.b32.xlu0 %v57, 1
  %v368 = vpop.permute.xlu0 %367
  %vm369 = vcmask 7168
  %v370 = vsel %vm369, %v364, %v366
  %v371 = vsel %vm369, %v366, %v368
  %v372 = vsel %vm369, %v368, %v362
  %vm376 = vcmask 7168
  %v379 = vsel %vm376, %v362, %v364
  %v381 = vlaneseq
  %v382 = vshrl.u32 %v381, 7
  %v383 = vsub.s32 1, %v382
  %v384 = vrot.slane %v262, %v383
  %v385 = vlaneseq
  %v386 = vshrl.u32 %v385, 7
  %v387 = vsub.s32 1, %v386
  %v388 = vrot.slane %v269, %v387
  %v389 = vlaneseq
  %v390 = vshrl.u32 %v389, 7
  %v391 = vsub.s32 1, %v390
  %v392 = vrot.slane %v276, %v391
  %v393 = vlaneseq
  %v394 = vshrl.u32 %v393, 7
  %v395 = vsub.s32 1, %v394
  %v396 = vrot.slane %v283, %v395
  %v397 = vmul.bf16 %v379, %v384
  %v398 = vmul.bf16 %v370, %v388
  %v399 = vmul.bf16 %v371, %v392
  %v400 = vmul.bf16 %v372, %v396
  %v405 = vunpack.c.l.b16 %v397
  %v406 = vunpack.c.l.b16 %v398
  %v407 = vunpack.c.l.b16 %v399
  %v408 = vunpack.c.l.b16 %v400
  %v409 = vpack.c.b16 %v406, %v405
  %v410 = vpack.c.b16 %v408, %v407
  %413 = vst [vmem:[#allocation2 + $0x30] sm:$0xff] %v409
  %414 = vst [vmem:[#allocation2 + $0x38] sm:$0xff] %v410
  %v415 = vlaneseq
  %v416 = vshrl.u32 %v415, 7
  %v417 = vsub.s32 2, %v416
  %v418 = vrot.slane %v196, %v417
  %v419 = vlaneseq
  %v420 = vshrl.u32 %v419, 7
  %v421 = vsub.s32 2, %v420
  %v422 = vrot.slane %v203, %v421
  %v423 = vlaneseq
  %v424 = vshrl.u32 %v423, 7
  %v425 = vsub.s32 2, %v424
  %v426 = vrot.slane %v210, %v425
  %v427 = vlaneseq
  %v428 = vshrl.u32 %v427, 7
  %v429 = vsub.s32 2, %v428
  %v430 = vrot.slane %v217, %v429
  %v431 = vmul.bf16 %v55, %v418
  %v432 = vmul.bf16 %v56, %v422
  %v433 = vmul.bf16 %v57, %v426
  %v434 = vmul.bf16 %v58, %v430
  %v439 = vunpack.c.l.b16 %v431
  %v440 = vunpack.c.l.b16 %v432
  %v441 = vunpack.c.l.b16 %v433
  %v442 = vunpack.c.l.b16 %v434
  %v443 = vpack.c.b16 %v440, %v439
  %v444 = vpack.c.b16 %v442, %v441
  %447 = vst [vmem:[#allocation2 + $0x40] sm:$0xff] %v443
  %448 = vst [vmem:[#allocation2 + $0x48] sm:$0xff] %v444
  %449 = vrot.lane.b32.xlu0 %v55, 127
  %v450 = vpop.permute.xlu0 %449
  %451 = vrot.lane.b32.xlu0 %v56, 127
  %v452 = vpop.permute.xlu0 %451
  %453 = vrot.lane.b32.xlu0 %v57, 127
  %v454 = vpop.permute.xlu0 %453
  %455 = vrot.lane.b32.xlu0 %v58, 127
  %v456 = vpop.permute.xlu0 %455
  %vm457 = vcmask 1039360
  %v458 = vsel %vm457, %v450, %v452
  %v459 = vsel %vm457, %v452, %v454
  %v460 = vsel %vm457, %v454, %v456
  %vm464 = vcmask 1039360
  %v467 = vsel %vm464, %v456, %v450
  %v469 = vlaneseq
  %v470 = vshrl.u32 %v469, 7
  %v471 = vsub.s32 2, %v470
  %v472 = vrot.slane %v262, %v471
  %v473 = vlaneseq
  %v474 = vshrl.u32 %v473, 7
  %v475 = vsub.s32 2, %v474
  %v476 = vrot.slane %v269, %v475
  %v477 = vlaneseq
  %v478 = vshrl.u32 %v477, 7
  %v479 = vsub.s32 2, %v478
  %v480 = vrot.slane %v276, %v479
  %v481 = vlaneseq
  %v482 = vshrl.u32 %v481, 7
  %v483 = vsub.s32 2, %v482
  %v484 = vrot.slane %v283, %v483
  %v485 = vmul.bf16 %v458, %v472
  %v486 = vmul.bf16 %v459, %v476
  %v487 = vmul.bf16 %v460, %v480
  %v488 = vmul.bf16 %v467, %v484
  %v493 = vunpack.c.l.b16 %v485
  %v494 = vunpack.c.l.b16 %v486
  %v495 = vunpack.c.l.b16 %v487
  %v496 = vunpack.c.l.b16 %v488
  %v497 = vpack.c.b16 %v494, %v493
  %v498 = vpack.c.b16 %v496, %v495
  %501 = vst [vmem:[#allocation2 + $0x50] sm:$0xff] %v497
  %502 = vst [vmem:[#allocation2 + $0x58] sm:$0xff] %v498
  %503 = vrot.lane.b32.xlu0 %v55, 113
  %v504 = vpop.permute.xlu0 %503
  %505 = vrot.lane.b32.xlu0 %v56, 113
  %v506 = vpop.permute.xlu0 %505
  %507 = vrot.lane.b32.xlu0 %v57, 113
  %v508 = vpop.permute.xlu0 %507
  %509 = vrot.lane.b32.xlu0 %v58, 113
  %v510 = vpop.permute.xlu0 %509
  %vm511 = vcmask 924672
  %v512 = vsel %vm511, %v504, %v506
  %v513 = vsel %vm511, %v506, %v508
  %v514 = vsel %vm511, %v508, %v510
  %vm518 = vcmask 924672
  %v521 = vsel %vm518, %v510, %v504
  %v523 = vlaneseq
  %v524 = vshrl.u32 %v523, 7
  %v525 = vsub.s32 3, %v524
  %v526 = vrot.slane %v196, %v525
  %v527 = vlaneseq
  %v528 = vshrl.u32 %v527, 7
  %v529 = vsub.s32 3, %v528
  %v530 = vrot.slane %v203, %v529
  %v531 = vlaneseq
  %v532 = vshrl.u32 %v531, 7
  %v533 = vsub.s32 3, %v532
  %v534 = vrot.slane %v210, %v533
  %v535 = vlaneseq
  %v536 = vshrl.u32 %v535, 7
  %v537 = vsub.s32 3, %v536
  %v538 = vrot.slane %v217, %v537
  %v539 = vmul.bf16 %v512, %v526
  %v540 = vmul.bf16 %v513, %v530
  %v541 = vmul.bf16 %v514, %v534
  %v542 = vmul.bf16 %v521, %v538
  %v547 = vunpack.c.l.b16 %v539
  %v548 = vunpack.c.l.b16 %v540
  %v549 = vunpack.c.l.b16 %v541
  %v550 = vunpack.c.l.b16 %v542
  %v551 = vpack.c.b16 %v548, %v547
  %v552 = vpack.c.b16 %v550, %v549
  %555 = vst [vmem:[#allocation2 + $0x60] sm:$0xff] %v551
  %556 = vst [vmem:[#allocation2 + $0x68] sm:$0xff] %v552
  %557 = vrot.lane.b32.xlu0 %v55, 112
  %v558 = vpop.permute.xlu0 %557
  %559 = vrot.lane.b32.xlu0 %v56, 112
  %v560 = vpop.permute.xlu0 %559
  %561 = vrot.lane.b32.xlu0 %v57, 112
  %v562 = vpop.permute.xlu0 %561
  %563 = vrot.lane.b32.xlu0 %v58, 112
  %v564 = vpop.permute.xlu0 %563
  %vm565 = vcmask 916480
  %v566 = vsel %vm565, %v558, %v560
  %v567 = vsel %vm565, %v560, %v562
  %v568 = vsel %vm565, %v562, %v564
  %vm572 = vcmask 916480
  %v575 = vsel %vm572, %v564, %v558
  %v577 = vlaneseq
  %v578 = vshrl.u32 %v577, 7
  %v579 = vsub.s32 3, %v578
  %v580 = vrot.slane %v262, %v579
  %v581 = vlaneseq
  %v582 = vshrl.u32 %v581, 7
  %v583 = vsub.s32 3, %v582
  %v584 = vrot.slane %v269, %v583
  %v585 = vlaneseq
  %v586 = vshrl.u32 %v585, 7
  %v587 = vsub.s32 3, %v586
  %v588 = vrot.slane %v276, %v587
  %v589 = vlaneseq
  %v590 = vshrl.u32 %v589, 7
  %v591 = vsub.s32 3, %v590
  %v592 = vrot.slane %v283, %v591
  %v593 = vmul.bf16 %v566, %v580
  %v594 = vmul.bf16 %v567, %v584
  %v595 = vmul.bf16 %v568, %v588
  %v596 = vmul.bf16 %v575, %v592
  %v601 = vunpack.c.l.b16 %v593
  %v602 = vunpack.c.l.b16 %v594
  %v603 = vunpack.c.l.b16 %v595
  %v604 = vunpack.c.l.b16 %v596
  %v605 = vpack.c.b16 %v602, %v601
  %v606 = vpack.c.b16 %v604, %v603
  %609 = vst [vmem:[#allocation2 + $0x70] sm:$0xff] %v605
  %610 = vst [vmem:[#allocation2 + $0x78] sm:$0xff] %v606
  %611 = vrot.lane.b32.xlu0 %v55, 111
  %v612 = vpop.permute.xlu0 %611
  %613 = vrot.lane.b32.xlu0 %v56, 111
  %v614 = vpop.permute.xlu0 %613
  %615 = vrot.lane.b32.xlu0 %v57, 111
  %v616 = vpop.permute.xlu0 %615
  %617 = vrot.lane.b32.xlu0 %v58, 111
  %v618 = vpop.permute.xlu0 %617
  %vm619 = vcmask 908288
  %v620 = vsel %vm619, %v612, %v614
  %v621 = vsel %vm619, %v614, %v616
  %v622 = vsel %vm619, %v616, %v618
  %vm626 = vcmask 908288
  %v629 = vsel %vm626, %v618, %v612
  %v633 = vunpack.c.l.b16 %v157
  %v634 = vunpack.c.h.b16 %v157
  %v635 = vunpack.c.l.b16 %v158
  %v636 = vunpack.c.h.b16 %v158
  %v637 = vpack.c.b16 %v633, %v633
  %v638 = vpack.c.b16 %v634, %v634
  %v639 = vpack.c.b16 %v635, %v635
  %v640 = vpack.c.b16 %v636, %v636
  %v642 = vpack.i.b16 %v637, %v637
  %v644 = vlaneseq
  %v645 = vshrl.u32 %v644, 7
  %v646 = vsub.s32 0, %v645
  %v647 = vrot.slane %v642, %v646
  %v649 = vpack.i.b16 %v638, %v638
  %v651 = vlaneseq
  %v652 = vshrl.u32 %v651, 7
  %v653 = vsub.s32 0, %v652
  %v654 = vrot.slane %v649, %v653
  %v656 = vpack.i.b16 %v639, %v639
  %v658 = vlaneseq
  %v659 = vshrl.u32 %v658, 7
  %v660 = vsub.s32 0, %v659
  %v661 = vrot.slane %v656, %v660
  %v663 = vpack.i.b16 %v640, %v640
  %v665 = vlaneseq
  %v666 = vshrl.u32 %v665, 7
  %v667 = vsub.s32 0, %v666
  %v668 = vrot.slane %v663, %v667
  %v669 = vmul.bf16 %v620, %v647
  %v670 = vmul.bf16 %v621, %v654
  %v671 = vmul.bf16 %v622, %v661
  %v672 = vmul.bf16 %v629, %v668
  %v677 = vunpack.c.l.b16 %v669
  %v678 = vunpack.c.l.b16 %v670
  %v679 = vunpack.c.l.b16 %v671
  %v680 = vunpack.c.l.b16 %v672
  %v681 = vpack.c.b16 %v678, %v677
  %v682 = vpack.c.b16 %v680, %v679
  %685 = vst [vmem:[#allocation2 + $0x80] sm:$0xff] %v681
  %686 = vst [vmem:[#allocation2 + $0x88] sm:$0xff] %v682
  %v687 = vld [vmem:[%s5] sm:$0xf]
  %v688 = vld [vmem:[#allocation2] sm:$0xff]
  %v689 = vld [vmem:[#allocation2 + $0x8] sm:$0xff]
  %v690 = vld [vmem:[#allocation2 + $0x10] sm:$0xff]
  %v691 = vld [vmem:[#allocation2 + $0x18] sm:$0xff]
  %v692 = vld [vmem:[#allocation2 + $0x20] sm:$0xff]
  %v693 = vld [vmem:[#allocation2 + $0x28] sm:$0xff]
  %v694 = vld [vmem:[#allocation2 + $0x30] sm:$0xff]
  %v695 = vld [vmem:[#allocation2 + $0x38] sm:$0xff]
  %v696 = vld [vmem:[#allocation2 + $0x40] sm:$0xff]
  %v697 = vld [vmem:[#allocation2 + $0x48] sm:$0xff]
  %v698 = vld [vmem:[#allocation2 + $0x50] sm:$0xff]
  %v699 = vld [vmem:[#allocation2 + $0x58] sm:$0xff]
  %v700 = vld [vmem:[#allocation2 + $0x60] sm:$0xff]
  %v701 = vld [vmem:[#allocation2 + $0x68] sm:$0xff]
  %v702 = vld [vmem:[#allocation2 + $0x70] sm:$0xff]
  %v703 = vld [vmem:[#allocation2 + $0x78] sm:$0xff]
  %v704 = vld [vmem:[#allocation2 + $0x80] sm:$0xff]
  %v705 = vld [vmem:[#allocation2 + $0x88] sm:$0xff]
  %v706 = vld [vmem:[%s6] sm:$0xff]
  %708 = vset.pattern.permute.xlu0 0
  %709 = vperm.xlu0 %708, %v706
  %v710 = vpop.permute.xlu0 %709
  %v730 = vunpack.c.l.b16 %v688
  %v731 = vunpack.c.h.b16 %v688
  %v732 = vunpack.c.l.b16 %v689
  %v733 = vunpack.c.h.b16 %v689
  %v734 = vunpack.c.l.b16 %v690
  %v735 = vunpack.c.h.b16 %v690
  %v736 = vunpack.c.l.b16 %v691
  %v737 = vunpack.c.h.b16 %v691
  %v738 = vunpack.c.l.b16 %v692
  %v739 = vunpack.c.h.b16 %v692
  %v740 = vunpack.c.l.b16 %v693
  %v741 = vunpack.c.h.b16 %v693
  %v742 = vunpack.c.l.b16 %v694
  %v743 = vunpack.c.h.b16 %v694
  %v744 = vunpack.c.l.b16 %v695
  %v745 = vunpack.c.h.b16 %v695
  %v746 = vunpack.c.l.b16 %v696
  %v747 = vunpack.c.h.b16 %v696
  %v748 = vunpack.c.l.b16 %v697
  %v749 = vunpack.c.h.b16 %v697
  %v750 = vunpack.c.l.b16 %v698
  %v751 = vunpack.c.h.b16 %v698
  %v752 = vunpack.c.l.b16 %v699
  %v753 = vunpack.c.h.b16 %v699
  %v754 = vunpack.c.l.b16 %v700
  %v755 = vunpack.c.h.b16 %v700
  %v756 = vunpack.c.l.b16 %v701
  %v757 = vunpack.c.h.b16 %v701
  %v758 = vunpack.c.l.b16 %v702
  %v759 = vunpack.c.h.b16 %v702
  %v760 = vunpack.c.l.b16 %v703
  %v761 = vunpack.c.h.b16 %v703
  %v762 = vunpack.c.l.b16 %v704
  %v763 = vunpack.c.h.b16 %v704
  %v764 = vunpack.c.l.b16 %v705
  %v765 = vunpack.c.h.b16 %v705
  %v766 = vpack.c.b16 %v734, %v730
  %v767 = vpack.c.b16 %v735, %v731
  %v768 = vpack.c.b16 %v736, %v732
  %v769 = vpack.c.b16 %v737, %v733
  %v770 = vpack.c.b16 %v742, %v738
  %v771 = vpack.c.b16 %v743, %v739
  %v772 = vpack.c.b16 %v744, %v740
  %v773 = vpack.c.b16 %v745, %v741
  %v774 = vpack.c.b16 %v750, %v746
  %v775 = vpack.c.b16 %v751, %v747
  %v776 = vpack.c.b16 %v752, %v748
  %v777 = vpack.c.b16 %v753, %v749
  %v778 = vpack.c.b16 %v758, %v754
  %v779 = vpack.c.b16 %v759, %v755
  %v780 = vpack.c.b16 %v760, %v756
  %v781 = vpack.c.b16 %v761, %v757
  %v782 = vpack.c.b16 %v762, %v762
  %v783 = vpack.c.b16 %v763, %v763
  %v784 = vpack.c.b16 %v764, %v764
  %v785 = vpack.c.b16 %v765, %v765
  %vm802 = vcmask 588800
  %v804 = vsel %vm802, %v687, 0
  %vm806 = vcmask 1043456
  %v808 = vsel %vm806, %v782, 0
  %v811 = vsel %vm806, %v783, 0
  %v814 = vsel %vm806, %v784, 0
  %v817 = vsel %vm806, %v785, 0
  %819 = vmatprep.subr.bf16.mxu0 %v767
  %820 = vmatpush1.bf16.msra.mxu0 %v766
  %821 = vmatprep.subr.bf16.mxu0 %v771
  %822 = vmatpush1.bf16.msra.mxu0 %v770
  %823 = vmatprep.subr.bf16.mxu0 %v775
  %824 = vmatpush1.bf16.msra.mxu0 %v774
  %825 = vmatprep.subr.bf16.mxu0 %v779
  %826 = vmatpush1.bf16.msra.mxu0 %v778
  %827 = vmatprep.subr.bf16.mxu0 %v811
  %828 = vmatpush1.bf16.msra.mxu0 %v808
  %829 = vmatprep.subr.bf16.mxu0 0
  %830 = vmatpush1.bf16.msra.mxu0 0
  %831 = vmatprep.subr.bf16.mxu0 0
  %832 = vmatpush1.bf16.msra.mxu0 0
  %833 = vmatprep.subr.bf16.mxu0 0
  %834 = vmatpush1.bf16.msra.mxu0 0
  %835 = vmatprep.subr.bf16.mxu0 0
  %836 = vmatpush1.bf16.msra.mxu0 0
  %837 = vmatprep.subr.bf16.mxu0 0
  %838 = vmatpush1.bf16.msra.mxu0 0
  %839 = vmatprep.subr.bf16.mxu0 0
  %840 = vmatpush1.bf16.msra.mxu0 0
  %841 = vmatprep.subr.bf16.mxu0 0
  %842 = vmatpush1.bf16.msra.mxu0 0
  %843 = vmatprep.subr.bf16.mxu0 0
  %844 = vmatpush1.bf16.msra.mxu0 0
  %845 = vmatprep.subr.bf16.mxu0 0
  %846 = vmatpush1.bf16.msra.mxu0 0
  %847 = vmatprep.subr.bf16.mxu0 0
  %848 = vmatpush1.bf16.msra.mxu0 0
  %849 = vmatprep.subr.bf16.mxu0 0
  %850 = vmatpush1.bf16.msra.mxu0 0
  %851 = vmatprep.mubr.bf16.mxu0 0
  %852 = vmatmul.mubr.bf16.gmra.mrb[0].mxu0 %v804
  %v853 = vpop.f32.mrb[0].mxu0
  %v854 = vadd.f32 %v710, %v853
  %v855 = vpop.f32.mrb[0].mxu0
  %v856 = vadd.f32 %v710, %v855
  %v857 = vpop.f32.mrb[0].mxu0
  %v858 = vpop.f32.mrb[0].mxu0
  %859 = vdwg.mxu0
  %860 = vmatprep.subr.bf16.mxu0 %v769
  %861 = vmatpush1.bf16.msra.mxu0 %v768
  %862 = vmatprep.subr.bf16.mxu0 %v773
  %863 = vmatpush1.bf16.msra.mxu0 %v772
  %864 = vmatprep.subr.bf16.mxu0 %v777
  %865 = vmatpush1.bf16.msra.mxu0 %v776
  %866 = vmatprep.subr.bf16.mxu0 %v781
  %867 = vmatpush1.bf16.msra.mxu0 %v780
  %868 = vmatprep.subr.bf16.mxu0 %v817
  %869 = vmatpush1.bf16.msra.mxu0 %v814
  %870 = vmatprep.subr.bf16.mxu0 0
  %871 = vmatpush1.bf16.msra.mxu0 0
  %872 = vmatprep.subr.bf16.mxu0 0
  %873 = vmatpush1.bf16.msra.mxu0 0
  %874 = vmatprep.subr.bf16.mxu0 0
  %875 = vmatpush1.bf16.msra.mxu0 0
  %876 = vmatprep.subr.bf16.mxu0 0
  %877 = vmatpush1.bf16.msra.mxu0 0
  %878 = vmatprep.subr.bf16.mxu0 0
  %879 = vmatpush1.bf16.msra.mxu0 0
  %880 = vmatprep.subr.bf16.mxu0 0
  %881 = vmatpush1.bf16.msra.mxu0 0
  %882 = vmatprep.subr.bf16.mxu0 0
  %883 = vmatpush1.bf16.msra.mxu0 0
  %884 = vmatprep.subr.bf16.mxu0 0
  %885 = vmatpush1.bf16.msra.mxu0 0
  %886 = vmatprep.subr.bf16.mxu0 0
  %887 = vmatpush1.bf16.msra.mxu0 0
  %888 = vmatprep.subr.bf16.mxu0 0
  %889 = vmatpush1.bf16.msra.mxu0 0
  %890 = vmatprep.subr.bf16.mxu0 0
  %891 = vmatpush1.bf16.msra.mxu0 0
  %892 = vmatprep.mubr.bf16.mxu0 0
  %893 = vmatmul.mubr.bf16.gmra.mrb[0].mxu0 %v804
  %v894 = vpop.f32.mrb[0].mxu0
  %v895 = vadd.f32 %v710, %v894
  %v896 = vpop.f32.mrb[0].mxu0
  %v897 = vadd.f32 %v710, %v896
  %v898 = vpop.f32.mrb[0].mxu0
  %v899 = vpop.f32.mrb[0].mxu0
  %900 = vdwg.mxu0
  %v901 = vmax.f32 %v854, 0.0
  %v902 = vmax.f32 %v856, 0.0
  %v903 = vmax.f32 %v895, 0.0
  %v904 = vmax.f32 %v897, 0.0
  %v969 = vunpack.c.l.b16 %v59
  %v970 = vunpack.c.l.b16 %v60
  %v971 = vunpack.c.l.b16 %v61
  %v972 = vunpack.c.l.b16 %v62
  %v973 = vunpack.c.l.b16 %v63
  %v974 = vunpack.c.l.b16 %v64
  %v975 = vunpack.c.l.b16 %v65
  %v976 = vunpack.c.l.b16 %v66
  %v977 = vunpack.c.l.b16 %v67
  %v978 = vunpack.c.l.b16 %v68
  %v979 = vunpack.c.l.b16 %v69
  %v980 = vunpack.c.l.b16 %v70
  %v981 = vunpack.c.l.b16 %v71
  %v982 = vunpack.c.l.b16 %v72
  %v983 = vunpack.c.l.b16 %v73
  %v984 = vunpack.c.l.b16 %v74
  %v985 = vunpack.c.l.b16 %v75
  %v986 = vunpack.c.l.b16 %v76
  %v987 = vunpack.c.l.b16 %v77
  %v988 = vunpack.c.l.b16 %v78
  %v989 = vunpack.c.l.b16 %v79
  %v990 = vunpack.c.l.b16 %v80
  %v991 = vunpack.c.l.b16 %v81
  %v992 = vunpack.c.l.b16 %v82
  %v993 = vunpack.c.l.b16 %v83
  %v994 = vunpack.c.l.b16 %v84
  %v995 = vunpack.c.l.b16 %v85
  %v996 = vunpack.c.l.b16 %v86
  %v997 = vunpack.c.l.b16 %v87
  %v998 = vunpack.c.l.b16 %v88
  %v999 = vunpack.c.l.b16 %v89
  %v1000 = vunpack.c.l.b16 %v90
  %v1001 = vunpack.c.l.b16 %v91
  %v1002 = vunpack.c.l.b16 %v92
  %v1003 = vunpack.c.l.b16 %v93
  %v1004 = vunpack.c.l.b16 %v94
  %v1005 = vunpack.c.l.b16 %v95
  %v1006 = vunpack.c.l.b16 %v96
  %v1007 = vunpack.c.l.b16 %v97
  %v1008 = vunpack.c.l.b16 %v98
  %v1009 = vunpack.c.l.b16 %v99
  %v1010 = vunpack.c.l.b16 %v100
  %v1011 = vunpack.c.l.b16 %v101
  %v1012 = vunpack.c.l.b16 %v102
  %v1013 = vunpack.c.l.b16 %v103
  %v1014 = vunpack.c.l.b16 %v104
  %v1015 = vunpack.c.l.b16 %v105
  %v1016 = vunpack.c.l.b16 %v106
  %v1017 = vunpack.c.l.b16 %v107
  %v1018 = vunpack.c.l.b16 %v108
  %v1019 = vunpack.c.l.b16 %v109
  %v1020 = vunpack.c.l.b16 %v110
  %v1021 = vunpack.c.l.b16 %v111
  %v1022 = vunpack.c.l.b16 %v112
  %v1023 = vunpack.c.l.b16 %v113
  %v1024 = vunpack.c.l.b16 %v114
  %v1025 = vunpack.c.l.b16 %v115
  %v1026 = vunpack.c.l.b16 %v116
  %v1027 = vunpack.c.l.b16 %v117
  %v1028 = vunpack.c.l.b16 %v118
  %v1029 = vunpack.c.l.b16 %v119
  %v1030 = vunpack.c.l.b16 %v120
  %v1031 = vunpack.c.l.b16 %v121
  %v1032 = vunpack.c.l.b16 %v122
  %v1033 = vpack.c.b16 %v970, %v969
  %v1034 = vpack.c.b16 %v972, %v971
  %v1035 = vpack.c.b16 %v974, %v973
  %v1036 = vpack.c.b16 %v976, %v975
  %v1037 = vpack.c.b16 %v978, %v977
  %v1038 = vpack.c.b16 %v980, %v979
  %v1039 = vpack.c.b16 %v982, %v981
  %v1040 = vpack.c.b16 %v984, %v983
  %v1041 = vpack.c.b16 %v986, %v985
  %v1042 = vpack.c.b16 %v988, %v987
  %v1043 = vpack.c.b16 %v990, %v989
  %v1044 = vpack.c.b16 %v992, %v991
  %v1045 = vpack.c.b16 %v994, %v993
  %v1046 = vpack.c.b16 %v996, %v995
  %v1047 = vpack.c.b16 %v998, %v997
  %v1048 = vpack.c.b16 %v1000, %v999
  %v1049 = vpack.c.b16 %v1002, %v1001
  %v1050 = vpack.c.b16 %v1004, %v1003
  %v1051 = vpack.c.b16 %v1006, %v1005
  %v1052 = vpack.c.b16 %v1008, %v1007
  %v1053 = vpack.c.b16 %v1010, %v1009
  %v1054 = vpack.c.b16 %v1012, %v1011
  %v1055 = vpack.c.b16 %v1014, %v1013
  %v1056 = vpack.c.b16 %v1016, %v1015
  %v1057 = vpack.c.b16 %v1018, %v1017
  %v1058 = vpack.c.b16 %v1020, %v1019
  %v1059 = vpack.c.b16 %v1022, %v1021
  %v1060 = vpack.c.b16 %v1024, %v1023
  %v1061 = vpack.c.b16 %v1026, %v1025
  %v1062 = vpack.c.b16 %v1028, %v1027
  %v1063 = vpack.c.b16 %v1030, %v1029
  %v1064 = vpack.c.b16 %v1032, %v1031
  %1097 = vmatprep.subr.bf16.mxu0 0
  %1098 = vmatpush1.bf16.msra.mxu0 %v1033
  %1099 = vmatprep.subr.bf16.mxu0 0
  %1100 = vmatpush1.bf16.msra.mxu0 %v1034
  %1101 = vmatprep.subr.bf16.mxu0 0
  %1102 = vmatpush1.bf16.msra.mxu0 %v1035
  %1103 = vmatprep.subr.bf16.mxu0 0
  %1104 = vmatpush1.bf16.msra.mxu0 %v1036
  %1105 = vmatprep.subr.bf16.mxu0 0
  %1106 = vmatpush1.bf16.msra.mxu0 %v1037
  %1107 = vmatprep.subr.bf16.mxu0 0
  %1108 = vmatpush1.bf16.msra.mxu0 %v1038
  %1109 = vmatprep.subr.bf16.mxu0 0
  %1110 = vmatpush1.bf16.msra.mxu0 %v1039
  %1111 = vmatprep.subr.bf16.mxu0 0
  %1112 = vmatpush1.bf16.msra.mxu0 %v1040
  %1113 = vmatprep.subr.bf16.mxu0 0
  %1114 = vmatpush1.bf16.msra.mxu0 %v1041
  %1115 = vmatprep.subr.bf16.mxu0 0
  %1116 = vmatpush1.bf16.msra.mxu0 %v1042
  %1117 = vmatprep.subr.bf16.mxu0 0
  %1118 = vmatpush1.bf16.msra.mxu0 %v1043
  %1119 = vmatprep.subr.bf16.mxu0 0
  %1120 = vmatpush1.bf16.msra.mxu0 %v1044
  %1121 = vmatprep.subr.bf16.mxu0 0
  %1122 = vmatpush1.bf16.msra.mxu0 %v1045
  %1123 = vmatprep.subr.bf16.mxu0 0
  %1124 = vmatpush1.bf16.msra.mxu0 %v1046
  %1125 = vmatprep.subr.bf16.mxu0 0
  %1126 = vmatpush1.bf16.msra.mxu0 %v1047
  %1127 = vmatprep.subr.bf16.mxu0 0
  %1128 = vmatpush1.bf16.msra.mxu0 %v1048
  %1129 = vmatprep.mubr.bf16.mxu0 %v56
  %1130 = vmatmul.mubr.bf16.gmra.mrb[0].mxu0 %v55
  %v1131 = vpop.f32.mrb[0].mxu0
  %v1132 = vadd.f32 0.0, %v1131
  %v1133 = vpop.f32.mrb[0].mxu0
  %v1134 = vpop.f32.mrb[0].mxu0
  %v1135 = vpop.f32.mrb[0].mxu0
  %1136 = vdwg.mxu0
  %1137 = vmatprep.subr.bf16.mxu0 0
  %1138 = vmatpush1.bf16.msra.mxu0 %v1049
  %1139 = vmatprep.subr.bf16.mxu0 0
  %1140 = vmatpush1.bf16.msra.mxu0 %v1050
  %1141 = vmatprep.subr.bf16.mxu0 0
  %1142 = vmatpush1.bf16.msra.mxu0 %v1051
  %1143 = vmatprep.subr.bf16.mxu0 0
  %1144 = vmatpush1.bf16.msra.mxu0 %v1052
  %1145 = vmatprep.subr.bf16.mxu0 0
  %1146 = vmatpush1.bf16.msra.mxu0 %v1053
  %1147 = vmatprep.subr.bf16.mxu0 0
  %1148 = vmatpush1.bf16.msra.mxu0 %v1054
  %1149 = vmatprep.subr.bf16.mxu0 0
  %1150 = vmatpush1.bf16.msra.mxu0 %v1055
  %1151 = vmatprep.subr.bf16.mxu0 0
  %1152 = vmatpush1.bf16.msra.mxu0 %v1056
  %1153 = vmatprep.subr.bf16.mxu0 0
  %1154 = vmatpush1.bf16.msra.mxu0 %v1057
  %1155 = vmatprep.subr.bf16.mxu0 0
  %1156 = vmatpush1.bf16.msra.mxu0 %v1058
  %1157 = vmatprep.subr.bf16.mxu0 0
  %1158 = vmatpush1.bf16.msra.mxu0 %v1059
  %1159 = vmatprep.subr.bf16.mxu0 0
  %1160 = vmatpush1.bf16.msra.mxu0 %v1060
  %1161 = vmatprep.subr.bf16.mxu0 0
  %1162 = vmatpush1.bf16.msra.mxu0 %v1061
  %1163 = vmatprep.subr.bf16.mxu0 0
  %1164 = vmatpush1.bf16.msra.mxu0 %v1062
  %1165 = vmatprep.subr.bf16.mxu0 0
  %1166 = vmatpush1.bf16.msra.mxu0 %v1063
  %1167 = vmatprep.subr.bf16.mxu0 0
  %1168 = vmatpush1.bf16.msra.mxu0 %v1064
  %1169 = vmatprep.mubr.bf16.mxu0 %v58
  %1170 = vmatmul.mubr.bf16.gmra.mrb[0].mxu0 %v57
  %v1171 = vpop.f32.mrb[0].mxu0
  %v1172 = vadd.f32 %v1132, %v1171
  %v1173 = vpop.f32.mrb[0].mxu0
  %v1174 = vpop.f32.mrb[0].mxu0
  %v1175 = vpop.f32.mrb[0].mxu0
  %1176 = vdwg.mxu0
  %v1177 = vpack.c.bf16 %v1172, %v1172
  %1179 = vrot.lane.b32.xlu0 %v1177, 9
  %v1180 = vpop.permute.xlu0 %1179
  %v1184 = vpack.i.b16 %v159, %v159
  %v1186 = vlaneseq
  %v1187 = vshrl.u32 %v1186, 7
  %v1188 = vsub.s32 0, %v1187
  %v1189 = vrot.slane %v1184, %v1188
  %v1190 = vmul.bf16 %v1180, %v1189
  %1191 = vst [vmem:[#allocation3] sm:$0xf] %v1190
  %1192 = vrot.lane.b32.xlu0 %v1177, 8
  %v1193 = vpop.permute.xlu0 %1192
  %v1196 = vshrl.u32 %v159, 16
  %v1197 = vpack.i.b16 %v1196, %v1196
  %v1199 = vlaneseq
  %v1200 = vshrl.u32 %v1199, 7
  %v1201 = vsub.s32 0, %v1200
  %v1202 = vrot.slane %v1197, %v1201
  %v1203 = vmul.bf16 %v1193, %v1202
  %1204 = vst [vmem:[#allocation3 + $0x4] sm:$0xf] %v1203
  %1205 = vrot.lane.b32.xlu0 %v1177, 7
  %v1206 = vpop.permute.xlu0 %1205
  %v1209 = vlaneseq
  %v1210 = vshrl.u32 %v1209, 7
  %v1211 = vsub.s32 1, %v1210
  %v1212 = vrot.slane %v1184, %v1211
  %v1213 = vmul.bf16 %v1206, %v1212
  %1214 = vst [vmem:[#allocation3 + $0x8] sm:$0xf] %v1213
  %1215 = vrot.lane.b32.xlu0 %v1177, 1
  %v1216 = vpop.permute.xlu0 %1215
  %v1219 = vlaneseq
  %v1220 = vshrl.u32 %v1219, 7
  %v1221 = vsub.s32 1, %v1220
  %v1222 = vrot.slane %v1197, %v1221
  %v1223 = vmul.bf16 %v1216, %v1222
  %1224 = vst [vmem:[#allocation3 + $0xc] sm:$0xf] %v1223
  %v1225 = vlaneseq
  %v1226 = vshrl.u32 %v1225, 7
  %v1227 = vsub.s32 2, %v1226
  %v1228 = vrot.slane %v1184, %v1227
  %v1229 = vmul.bf16 %v1177, %v1228
  %1230 = vst [vmem:[#allocation3 + $0x10] sm:$0xf] %v1229
  %1231 = vrot.lane.b32.xlu0 %v1177, 127
  %v1232 = vpop.permute.xlu0 %1231
  %v1235 = vlaneseq
  %v1236 = vshrl.u32 %v1235, 7
  %v1237 = vsub.s32 2, %v1236
  %v1238 = vrot.slane %v1197, %v1237
  %v1239 = vmul.bf16 %v1232, %v1238
  %1240 = vst [vmem:[#allocation3 + $0x14] sm:$0xf] %v1239
  %1241 = vrot.lane.b32.xlu0 %v1177, 121
  %v1242 = vpop.permute.xlu0 %1241
  %v1245 = vlaneseq
  %v1246 = vshrl.u32 %v1245, 7
  %v1247 = vsub.s32 3, %v1246
  %v1248 = vrot.slane %v1184, %v1247
  %v1249 = vmul.bf16 %v1242, %v1248
  %1250 = vst [vmem:[#allocation3 + $0x18] sm:$0xf] %v1249
  %1251 = vrot.lane.b32.xlu0 %v1177, 120
  %v1252 = vpop.permute.xlu0 %1251
  %v1255 = vlaneseq
  %v1256 = vshrl.u32 %v1255, 7
  %v1257 = vsub.s32 3, %v1256
  %v1258 = vrot.slane %v1197, %v1257
  %v1259 = vmul.bf16 %v1252, %v1258
  %1260 = vst [vmem:[#allocation3 + $0x1c] sm:$0xf] %v1259
  %1261 = vrot.lane.b32.xlu0 %v1177, 119
  %v1262 = vpop.permute.xlu0 %1261
  %v1266 = vpack.i.b16 %v160, %v160
  %v1268 = vlaneseq
  %v1269 = vshrl.u32 %v1268, 7
  %v1270 = vsub.s32 0, %v1269
  %v1271 = vrot.slane %v1266, %v1270
  %v1272 = vmul.bf16 %v1262, %v1271
  %1273 = vst [vmem:[#allocation3 + $0x20] sm:$0xf] %v1272
  %v1274 = vld [vmem:[%s7] sm:$0x3]
  %v1275 = vld [vmem:[#allocation3] sm:$0xf]
  %v1276 = vld [vmem:[#allocation3 + $0x4] sm:$0xf]
  %v1277 = vld [vmem:[#allocation3 + $0x8] sm:$0xf]
  %v1278 = vld [vmem:[#allocation3 + $0xc] sm:$0xf]
  %v1279 = vld [vmem:[#allocation3 + $0x10] sm:$0xf]
  %v1280 = vld [vmem:[#allocation3 + $0x14] sm:$0xf]
  %v1281 = vld [vmem:[#allocation3 + $0x18] sm:$0xf]
  %v1282 = vld [vmem:[#allocation3 + $0x1c] sm:$0xf]
  %v1283 = vld [vmem:[#allocation3 + $0x20] sm:$0xf]
  %v1284 = vld [vmem:[%s8] sm:$0xf]
  %1286 = vset.pattern.permute.xlu0 0
  %1287 = vperm.xlu0 %1286, %v1284
  %v1288 = vpop.permute.xlu0 %1287
  %v1299 = vunpack.c.l.b16 %v1275
  %v1300 = vunpack.c.l.b16 %v1276
  %v1301 = vunpack.c.l.b16 %v1277
  %v1302 = vunpack.c.l.b16 %v1278
  %v1303 = vunpack.c.l.b16 %v1279
  %v1304 = vunpack.c.l.b16 %v1280
  %v1305 = vunpack.c.l.b16 %v1281
  %v1306 = vunpack.c.l.b16 %v1282
  %v1307 = vunpack.c.l.b16 %v1283
  %v1308 = vpack.c.b16 %v1300, %v1299
  %v1309 = vpack.c.b16 %v1302, %v1301
  %v1310 = vpack.c.b16 %v1304, %v1303
  %v1311 = vpack.c.b16 %v1306, %v1305
  %v1312 = vpack.c.b16 %v1307, %v1307
  %v1318 = vsel %vm802, %v1274, 0
  %v1321 = vsel %vm806, %v1312, 0
  %1323 = vmatprep.subr.bf16.mxu0 0
  %1324 = vmatpush1.bf16.msra.mxu0 %v1308
  %1325 = vmatprep.subr.bf16.mxu0 0
  %1326 = vmatpush1.bf16.msra.mxu0 %v1309
  %1327 = vmatprep.subr.bf16.mxu0 0
  %1328 = vmatpush1.bf16.msra.mxu0 %v1310
  %1329 = vmatprep.subr.bf16.mxu0 0
  %1330 = vmatpush1.bf16.msra.mxu0 %v1311
  %1331 = vmatprep.subr.bf16.mxu0 0
  %1332 = vmatpush1.bf16.msra.mxu0 %v1321
  %1333 = vmatprep.subr.bf16.mxu0 0
  %1334 = vmatpush1.bf16.msra.mxu0 0
  %1335 = vmatprep.subr.bf16.mxu0 0
  %1336 = vmatpush1.bf16.msra.mxu0 0
  %1337 = vmatprep.subr.bf16.mxu0 0
  %1338 = vmatpush1.bf16.msra.mxu0 0
  %1339 = vmatprep.subr.bf16.mxu0 0
  %1340 = vmatpush1.bf16.msra.mxu0 0
  %1341 = vmatprep.subr.bf16.mxu0 0
  %1342 = vmatpush1.bf16.msra.mxu0 0
  %1343 = vmatprep.subr.bf16.mxu0 0
  %1344 = vmatpush1.bf16.msra.mxu0 0
  %1345 = vmatprep.subr.bf16.mxu0 0
  %1346 = vmatpush1.bf16.msra.mxu0 0
  %1347 = vmatprep.subr.bf16.mxu0 0
  %1348 = vmatpush1.bf16.msra.mxu0 0
  %1349 = vmatprep.subr.bf16.mxu0 0
  %1350 = vmatpush1.bf16.msra.mxu0 0
  %1351 = vmatprep.subr.bf16.mxu0 0
  %1352 = vmatpush1.bf16.msra.mxu0 0
  %1353 = vmatprep.subr.bf16.mxu0 0
  %1354 = vmatpush1.bf16.msra.mxu0 0
  %1355 = vmatprep.mubr.bf16.mxu0 0
  %1356 = vmatmul.mubr.bf16.gmra.mrb[0].mxu0 %v1318
  %v1357 = vpop.f32.mrb[0].mxu0
  %v1358 = vadd.f32 %v1288, %v1357
  %v1359 = vpop.f32.mrb[0].mxu0
  %v1360 = vpop.f32.mrb[0].mxu0
  %v1361 = vpop.f32.mrb[0].mxu0
  %1362 = vdwg.mxu0
  %v1363 = vmax.f32 %v1358, 0.0
  %v1364 = vpack.c.bf16 %v901, %v901
  %v1365 = vpack.c.bf16 %v902, %v902
  %v1366 = vpack.c.bf16 %v903, %v903
  %v1367 = vpack.c.bf16 %v904, %v904
  %v1368 = vpack.c.bf16 %v1363, %v1363
  %1370 = vrot.lane.b32.xlu0 %v1367, 17
  %v1371 = vpop.permute.xlu0 %1370
  %1375 = vrot.lane.b32.xlu0 %v1364, 17
  %v1376 = vpop.permute.xlu0 %1375
  %1377 = vrot.lane.b32.xlu0 %v1365, 17
  %v1378 = vpop.permute.xlu0 %1377
  %1379 = vrot.lane.b32.xlu0 %v1366, 17
  %v1380 = vpop.permute.xlu0 %1379
  %v1381 = vsel %vm173, %v1376, %v1378
  %v1382 = vsel %vm173, %v1378, %v1380
  %v1383 = vsel %vm173, %v1380, %v1371
  %v1389 = vsel %vm180, %v1371, %v1376
  %v1391 = vmul.bf16 %v1389, %v201
  %v1392 = vmul.bf16 %v1381, %v208
  %v1393 = vmul.bf16 %v1382, %v215
  %v1394 = vmul.bf16 %v1383, %v222
  %v1399 = vunpack.c.l.b16 %v1391
  %v1400 = vunpack.c.l.b16 %v1392
  %v1401 = vunpack.c.l.b16 %v1393
  %v1402 = vunpack.c.l.b16 %v1394
  %v1403 = vpack.c.b16 %v1400, %v1399
  %v1404 = vpack.c.b16 %v1402, %v1401
  %1407 = vst [vmem:[#allocation2] sm:$0xff] %v1403
  %1408 = vst [vmem:[#allocation2 + $0x8] sm:$0xff] %v1404
  %1409 = vrot.lane.b32.xlu0 %v1367, 16
  %v1410 = vpop.permute.xlu0 %1409
  %1411 = vrot.lane.b32.xlu0 %v1364, 16
  %v1412 = vpop.permute.xlu0 %1411
  %1413 = vrot.lane.b32.xlu0 %v1365, 16
  %v1414 = vpop.permute.xlu0 %1413
  %1415 = vrot.lane.b32.xlu0 %v1366, 16
  %v1416 = vpop.permute.xlu0 %1415
  %v1417 = vsel %vm249, %v1412, %v1414
  %v1418 = vsel %vm249, %v1414, %v1416
  %v1419 = vsel %vm249, %v1416, %v1410
  %v1425 = vsel %vm256, %v1410, %v1412
  %v1427 = vmul.bf16 %v1425, %v267
  %v1428 = vmul.bf16 %v1417, %v274
  %v1429 = vmul.bf16 %v1418, %v281
  %v1430 = vmul.bf16 %v1419, %v288
  %v1435 = vunpack.c.l.b16 %v1427
  %v1436 = vunpack.c.l.b16 %v1428
  %v1437 = vunpack.c.l.b16 %v1429
  %v1438 = vunpack.c.l.b16 %v1430
  %v1439 = vpack.c.b16 %v1436, %v1435
  %v1440 = vpack.c.b16 %v1438, %v1437
  %1443 = vst [vmem:[#allocation2 + $0x10] sm:$0xff] %v1439
  %1444 = vst [vmem:[#allocation2 + $0x18] sm:$0xff] %v1440
  %1445 = vrot.lane.b32.xlu0 %v1367, 15
  %v1446 = vpop.permute.xlu0 %1445
  %1447 = vrot.lane.b32.xlu0 %v1364, 15
  %v1448 = vpop.permute.xlu0 %1447
  %1449 = vrot.lane.b32.xlu0 %v1365, 15
  %v1450 = vpop.permute.xlu0 %1449
  %1451 = vrot.lane.b32.xlu0 %v1366, 15
  %v1452 = vpop.permute.xlu0 %1451
  %v1453 = vsel %vm315, %v1448, %v1450
  %v1454 = vsel %vm315, %v1450, %v1452
  %v1455 = vsel %vm315, %v1452, %v1446
  %v1461 = vsel %vm322, %v1446, %v1448
  %v1463 = vmul.bf16 %v1461, %v330
  %v1464 = vmul.bf16 %v1453, %v334
  %v1465 = vmul.bf16 %v1454, %v338
  %v1466 = vmul.bf16 %v1455, %v342
  %v1471 = vunpack.c.l.b16 %v1463
  %v1472 = vunpack.c.l.b16 %v1464
  %v1473 = vunpack.c.l.b16 %v1465
  %v1474 = vunpack.c.l.b16 %v1466
  %v1475 = vpack.c.b16 %v1472, %v1471
  %v1476 = vpack.c.b16 %v1474, %v1473
  %1479 = vst [vmem:[#allocation2 + $0x20] sm:$0xff] %v1475
  %1480 = vst [vmem:[#allocation2 + $0x28] sm:$0xff] %v1476
  %1481 = vrot.lane.b32.xlu0 %v1367, 1
  %v1482 = vpop.permute.xlu0 %1481
  %1483 = vrot.lane.b32.xlu0 %v1364, 1
  %v1484 = vpop.permute.xlu0 %1483
  %1485 = vrot.lane.b32.xlu0 %v1365, 1
  %v1486 = vpop.permute.xlu0 %1485
  %1487 = vrot.lane.b32.xlu0 %v1366, 1
  %v1488 = vpop.permute.xlu0 %1487
  %v1489 = vsel %vm369, %v1484, %v1486
  %v1490 = vsel %vm369, %v1486, %v1488
  %v1491 = vsel %vm369, %v1488, %v1482
  %v1497 = vsel %vm376, %v1482, %v1484
  %v1499 = vmul.bf16 %v1497, %v384
  %v1500 = vmul.bf16 %v1489, %v388
  %v1501 = vmul.bf16 %v1490, %v392
  %v1502 = vmul.bf16 %v1491, %v396
  %v1507 = vunpack.c.l.b16 %v1499
  %v1508 = vunpack.c.l.b16 %v1500
  %v1509 = vunpack.c.l.b16 %v1501
  %v1510 = vunpack.c.l.b16 %v1502
  %v1511 = vpack.c.b16 %v1508, %v1507
  %v1512 = vpack.c.b16 %v1510, %v1509
  %1515 = vst [vmem:[#allocation2 + $0x30] sm:$0xff] %v1511
  %1516 = vst [vmem:[#allocation2 + $0x38] sm:$0xff] %v1512
  %v1517 = vmul.bf16 %v1364, %v418
  %v1518 = vmul.bf16 %v1365, %v422
  %v1519 = vmul.bf16 %v1366, %v426
  %v1520 = vmul.bf16 %v1367, %v430
  %v1525 = vunpack.c.l.b16 %v1517
  %v1526 = vunpack.c.l.b16 %v1518
  %v1527 = vunpack.c.l.b16 %v1519
  %v1528 = vunpack.c.l.b16 %v1520
  %v1529 = vpack.c.b16 %v1526, %v1525
  %v1530 = vpack.c.b16 %v1528, %v1527
  %1533 = vst [vmem:[#allocation2 + $0x40] sm:$0xff] %v1529
  %1534 = vst [vmem:[#allocation2 + $0x48] sm:$0xff] %v1530
  %1535 = vrot.lane.b32.xlu0 %v1364, 127
  %v1536 = vpop.permute.xlu0 %1535
  %1537 = vrot.lane.b32.xlu0 %v1365, 127
  %v1538 = vpop.permute.xlu0 %1537
  %1539 = vrot.lane.b32.xlu0 %v1366, 127
  %v1540 = vpop.permute.xlu0 %1539
  %1541 = vrot.lane.b32.xlu0 %v1367, 127
  %v1542 = vpop.permute.xlu0 %1541
  %v1543 = vsel %vm457, %v1536, %v1538
  %v1544 = vsel %vm457, %v1538, %v1540
  %v1545 = vsel %vm457, %v1540, %v1542
  %v1551 = vsel %vm464, %v1542, %v1536
  %v1553 = vmul.bf16 %v1543, %v472
  %v1554 = vmul.bf16 %v1544, %v476
  %v1555 = vmul.bf16 %v1545, %v480
  %v1556 = vmul.bf16 %v1551, %v484
  %v1561 = vunpack.c.l.b16 %v1553
  %v1562 = vunpack.c.l.b16 %v1554
  %v1563 = vunpack.c.l.b16 %v1555
  %v1564 = vunpack.c.l.b16 %v1556
  %v1565 = vpack.c.b16 %v1562, %v1561
  %v1566 = vpack.c.b16 %v1564, %v1563
  %1569 = vst [vmem:[#allocation2 + $0x50] sm:$0xff] %v1565
  %1570 = vst [vmem:[#allocation2 + $0x58] sm:$0xff] %v1566
  %1571 = vrot.lane.b32.xlu0 %v1364, 113
  %v1572 = vpop.permute.xlu0 %1571
  %1573 = vrot.lane.b32.xlu0 %v1365, 113
  %v1574 = vpop.permute.xlu0 %1573
  %1575 = vrot.lane.b32.xlu0 %v1366, 113
  %v1576 = vpop.permute.xlu0 %1575
  %1577 = vrot.lane.b32.xlu0 %v1367, 113
  %v1578 = vpop.permute.xlu0 %1577
  %v1579 = vsel %vm511, %v1572, %v1574
  %v1580 = vsel %vm511, %v1574, %v1576
  %v1581 = vsel %vm511, %v1576, %v1578
  %v1587 = vsel %vm518, %v1578, %v1572
  %v1589 = vmul.bf16 %v1579, %v526
  %v1590 = vmul.bf16 %v1580, %v530
  %v1591 = vmul.bf16 %v1581, %v534
  %v1592 = vmul.bf16 %v1587, %v538
  %v1597 = vunpack.c.l.b16 %v1589
  %v1598 = vunpack.c.l.b16 %v1590
  %v1599 = vunpack.c.l.b16 %v1591
  %v1600 = vunpack.c.l.b16 %v1592
  %v1601 = vpack.c.b16 %v1598, %v1597
  %v1602 = vpack.c.b16 %v1600, %v1599
  %1605 = vst [vmem:[#allocation2 + $0x60] sm:$0xff] %v1601
  %1606 = vst [vmem:[#allocation2 + $0x68] sm:$0xff] %v1602
  %1607 = vrot.lane.b32.xlu0 %v1364, 112
  %v1608 = vpop.permute.xlu0 %1607
  %1609 = vrot.lane.b32.xlu0 %v1365, 112
  %v1610 = vpop.permute.xlu0 %1609
  %1611 = vrot.lane.b32.xlu0 %v1366, 112
  %v1612 = vpop.permute.xlu0 %1611
  %1613 = vrot.lane.b32.xlu0 %v1367, 112
  %v1614 = vpop.permute.xlu0 %1613
  %v1615 = vsel %vm565, %v1608, %v1610
  %v1616 = vsel %vm565, %v1610, %v1612
  %v1617 = vsel %vm565, %v1612, %v1614
  %v1623 = vsel %vm572, %v1614, %v1608
  %v1625 = vmul.bf16 %v1615, %v580
  %v1626 = vmul.bf16 %v1616, %v584
  %v1627 = vmul.bf16 %v1617, %v588
  %v1628 = vmul.bf16 %v1623, %v592
  %v1633 = vunpack.c.l.b16 %v1625
  %v1634 = vunpack.c.l.b16 %v1626
  %v1635 = vunpack.c.l.b16 %v1627
  %v1636 = vunpack.c.l.b16 %v1628
  %v1637 = vpack.c.b16 %v1634, %v1633
  %v1638 = vpack.c.b16 %v1636, %v1635
  %1641 = vst [vmem:[#allocation2 + $0x70] sm:$0xff] %v1637
  %1642 = vst [vmem:[#allocation2 + $0x78] sm:$0xff] %v1638
  %1643 = vrot.lane.b32.xlu0 %v1364, 111
  %v1644 = vpop.permute.xlu0 %1643
  %1645 = vrot.lane.b32.xlu0 %v1365, 111
  %v1646 = vpop.permute.xlu0 %1645
  %1647 = vrot.lane.b32.xlu0 %v1366, 111
  %v1648 = vpop.permute.xlu0 %1647
  %1649 = vrot.lane.b32.xlu0 %v1367, 111
  %v1650 = vpop.permute.xlu0 %1649
  %v1651 = vsel %vm619, %v1644, %v1646
  %v1652 = vsel %vm619, %v1646, %v1648
  %v1653 = vsel %vm619, %v1648, %v1650
  %v1659 = vsel %vm626, %v1650, %v1644
  %v1661 = vmul.bf16 %v1651, %v647
  %v1662 = vmul.bf16 %v1652, %v654
  %v1663 = vmul.bf16 %v1653, %v661
  %v1664 = vmul.bf16 %v1659, %v668
  %v1669 = vunpack.c.l.b16 %v1661
  %v1670 = vunpack.c.l.b16 %v1662
  %v1671 = vunpack.c.l.b16 %v1663
  %v1672 = vunpack.c.l.b16 %v1664
  %v1673 = vpack.c.b16 %v1670, %v1669
  %v1674 = vpack.c.b16 %v1672, %v1671
  %1677 = vst [vmem:[#allocation2 + $0x80] sm:$0xff] %v1673
  %1678 = vst [vmem:[#allocation2 + $0x88] sm:$0xff] %v1674
  %v1711 = vunpack.c.l.b16 %v123
  %v1712 = vunpack.c.h.b16 %v123
  %v1713 = vunpack.c.l.b16 %v124
  %v1714 = vunpack.c.h.b16 %v124
  %v1715 = vunpack.c.l.b16 %v125
  %v1716 = vunpack.c.h.b16 %v125
  %v1717 = vunpack.c.l.b16 %v126
  %v1718 = vunpack.c.h.b16 %v126
  %v1719 = vunpack.c.l.b16 %v127
  %v1720 = vunpack.c.h.b16 %v127
  %v1721 = vunpack.c.l.b16 %v128
  %v1722 = vunpack.c.h.b16 %v128
  %v1723 = vunpack.c.l.b16 %v129
  %v1724 = vunpack.c.h.b16 %v129
  %v1725 = vunpack.c.l.b16 %v130
  %v1726 = vunpack.c.h.b16 %v130
  %v1727 = vunpack.c.l.b16 %v131
  %v1728 = vunpack.c.h.b16 %v131
  %v1729 = vunpack.c.l.b16 %v132
  %v1730 = vunpack.c.h.b16 %v132
  %v1731 = vunpack.c.l.b16 %v133
  %v1732 = vunpack.c.h.b16 %v133
  %v1733 = vunpack.c.l.b16 %v134
  %v1734 = vunpack.c.h.b16 %v134
  %v1735 = vunpack.c.l.b16 %v135
  %v1736 = vunpack.c.h.b16 %v135
  %v1737 = vunpack.c.l.b16 %v136
  %v1738 = vunpack.c.h.b16 %v136
  %v1739 = vunpack.c.l.b16 %v137
  %v1740 = vunpack.c.h.b16 %v137
  %v1741 = vunpack.c.l.b16 %v138
  %v1742 = vunpack.c.h.b16 %v138
  %v1743 = vunpack.c.l.b16 %v139
  %v1744 = vunpack.c.h.b16 %v139
  %v1745 = vunpack.c.l.b16 %v140
  %v1746 = vunpack.c.h.b16 %v140
  %v1747 = vunpack.c.l.b16 %v141
  %v1748 = vunpack.c.h.b16 %v141
  %v1749 = vunpack.c.l.b16 %v142
  %v1750 = vunpack.c.h.b16 %v142
  %v1751 = vunpack.c.l.b16 %v143
  %v1752 = vunpack.c.h.b16 %v143
  %v1753 = vunpack.c.l.b16 %v144
  %v1754 = vunpack.c.h.b16 %v144
  %v1755 = vunpack.c.l.b16 %v145
  %v1756 = vunpack.c.h.b16 %v145
  %v1757 = vunpack.c.l.b16 %v146
  %v1758 = vunpack.c.h.b16 %v146
  %v1759 = vunpack.c.l.b16 %v147
  %v1760 = vunpack.c.h.b16 %v147
  %v1761 = vunpack.c.l.b16 %v148
  %v1762 = vunpack.c.h.b16 %v148
  %v1763 = vunpack.c.l.b16 %v149
  %v1764 = vunpack.c.h.b16 %v149
  %v1765 = vunpack.c.l.b16 %v150
  %v1766 = vunpack.c.h.b16 %v150
  %v1767 = vunpack.c.l.b16 %v151
  %v1768 = vunpack.c.h.b16 %v151
  %v1769 = vunpack.c.l.b16 %v152
  %v1770 = vunpack.c.h.b16 %v152
  %v1771 = vunpack.c.l.b16 %v153
  %v1772 = vunpack.c.h.b16 %v153
  %v1773 = vunpack.c.l.b16 %v154
  %v1774 = vunpack.c.h.b16 %v154
  %v1775 = vpack.c.b16 %v1715, %v1711
  %v1776 = vpack.c.b16 %v1716, %v1712
  %v1777 = vpack.c.b16 %v1717, %v1713
  %v1778 = vpack.c.b16 %v1718, %v1714
  %v1779 = vpack.c.b16 %v1723, %v1719
  %v1780 = vpack.c.b16 %v1724, %v1720
  %v1781 = vpack.c.b16 %v1725, %v1721
  %v1782 = vpack.c.b16 %v1726, %v1722
  %v1783 = vpack.c.b16 %v1731, %v1727
  %v1784 = vpack.c.b16 %v1732, %v1728
  %v1785 = vpack.c.b16 %v1733, %v1729
  %v1786 = vpack.c.b16 %v1734, %v1730
  %v1787 = vpack.c.b16 %v1739, %v1735
  %v1788 = vpack.c.b16 %v1740, %v1736
  %v1789 = vpack.c.b16 %v1741, %v1737
  %v1790 = vpack.c.b16 %v1742, %v1738
  %v1791 = vpack.c.b16 %v1747, %v1743
  %v1792 = vpack.c.b16 %v1748, %v1744
  %v1793 = vpack.c.b16 %v1749, %v1745
  %v1794 = vpack.c.b16 %v1750, %v1746
  %v1795 = vpack.c.b16 %v1755, %v1751
  %v1796 = vpack.c.b16 %v1756, %v1752
  %v1797 = vpack.c.b16 %v1757, %v1753
  %v1798 = vpack.c.b16 %v1758, %v1754
  %v1799 = vpack.c.b16 %v1763, %v1759
  %v1800 = vpack.c.b16 %v1764, %v1760
  %v1801 = vpack.c.b16 %v1765, %v1761
  %v1802 = vpack.c.b16 %v1766, %v1762
  %v1803 = vpack.c.b16 %v1771, %v1767
  %v1804 = vpack.c.b16 %v1772, %v1768
  %v1805 = vpack.c.b16 %v1773, %v1769
  %v1806 = vpack.c.b16 %v1774, %v1770
  %1839 = vmatprep.subr.bf16.mxu0 %v1776
  %1840 = vmatpush1.bf16.msra.mxu0 %v1775
  %1841 = vmatprep.subr.bf16.mxu0 %v1780
  %1842 = vmatpush1.bf16.msra.mxu0 %v1779
  %1843 = vmatprep.subr.bf16.mxu0 %v1784
  %1844 = vmatpush1.bf16.msra.mxu0 %v1783
  %1845 = vmatprep.subr.bf16.mxu0 %v1788
  %1846 = vmatpush1.bf16.msra.mxu0 %v1787
  %1847 = vmatprep.subr.bf16.mxu0 %v1792
  %1848 = vmatpush1.bf16.msra.mxu0 %v1791
  %1849 = vmatprep.subr.bf16.mxu0 %v1796
  %1850 = vmatpush1.bf16.msra.mxu0 %v1795
  %1851 = vmatprep.subr.bf16.mxu0 %v1800
  %1852 = vmatpush1.bf16.msra.mxu0 %v1799
  %1853 = vmatprep.subr.bf16.mxu0 %v1804
  %1854 = vmatpush1.bf16.msra.mxu0 %v1803
  %1855 = vmatprep.subr.bf16.mxu0 0
  %1856 = vmatpush1.bf16.msra.mxu0 0
  %1857 = vmatprep.subr.bf16.mxu0 0
  %1858 = vmatpush1.bf16.msra.mxu0 0
  %1859 = vmatprep.subr.bf16.mxu0 0
  %1860 = vmatpush1.bf16.msra.mxu0 0
  %1861 = vmatprep.subr.bf16.mxu0 0
  %1862 = vmatpush1.bf16.msra.mxu0 0
  %1863 = vmatprep.subr.bf16.mxu0 0
  %1864 = vmatpush1.bf16.msra.mxu0 0
  %1865 = vmatprep.subr.bf16.mxu0 0
  %1866 = vmatpush1.bf16.msra.mxu0 0
  %1867 = vmatprep.subr.bf16.mxu0 0
  %1868 = vmatpush1.bf16.msra.mxu0 0
  %1869 = vmatprep.subr.bf16.mxu0 0
  %1870 = vmatpush1.bf16.msra.mxu0 0
  %1871 = vmatprep.mubr.bf16.mxu0 0
  %1872 = vmatmul.mubr.bf16.gmra.mrb[0].mxu0 %v1368
  %v1873 = vpop.f32.mrb[0].mxu0
  %v1874 = vadd.f32 0.0, %v1873
  %v1875 = vpop.f32.mrb[0].mxu0
  %v1876 = vadd.f32 0.0, %v1875
  %v1877 = vpop.f32.mrb[0].mxu0
  %v1878 = vpop.f32.mrb[0].mxu0
  %1879 = vdwg.mxu0
  %1880 = vmatprep.subr.bf16.mxu0 %v1778
  %1881 = vmatpush1.bf16.msra.mxu0 %v1777
  %1882 = vmatprep.subr.bf16.mxu0 %v1782
  %1883 = vmatpush1.bf16.msra.mxu0 %v1781
  %1884 = vmatprep.subr.bf16.mxu0 %v1786
  %1885 = vmatpush1.bf16.msra.mxu0 %v1785
  %1886 = vmatprep.subr.bf16.mxu0 %v1790
  %1887 = vmatpush1.bf16.msra.mxu0 %v1789
  %1888 = vmatprep.subr.bf16.mxu0 %v1794
  %1889 = vmatpush1.bf16.msra.mxu0 %v1793
  %1890 = vmatprep.subr.bf16.mxu0 %v1798
  %1891 = vmatpush1.bf16.msra.mxu0 %v1797
  %1892 = vmatprep.subr.bf16.mxu0 %v1802
  %1893 = vmatpush1.bf16.msra.mxu0 %v1801
  %1894 = vmatprep.subr.bf16.mxu0 %v1806
  %1895 = vmatpush1.bf16.msra.mxu0 %v1805
  %1896 = vmatprep.subr.bf16.mxu0 0
  %1897 = vmatpush1.bf16.msra.mxu0 0
  %1898 = vmatprep.subr.bf16.mxu0 0
  %1899 = vmatpush1.bf16.msra.mxu0 0
  %1900 = vmatprep.subr.bf16.mxu0 0
  %1901 = vmatpush1.bf16.msra.mxu0 0
  %1902 = vmatprep.subr.bf16.mxu0 0
  %1903 = vmatpush1.bf16.msra.mxu0 0
  %1904 = vmatprep.subr.bf16.mxu0 0
  %1905 = vmatpush1.bf16.msra.mxu0 0
  %1906 = vmatprep.subr.bf16.mxu0 0
  %1907 = vmatpush1.bf16.msra.mxu0 0
  %1908 = vmatprep.subr.bf16.mxu0 0
  %1909 = vmatpush1.bf16.msra.mxu0 0
  %1910 = vmatprep.subr.bf16.mxu0 0
  %1911 = vmatpush1.bf16.msra.mxu0 0
  %1912 = vmatprep.mubr.bf16.mxu0 0
  %1913 = vmatmul.mubr.bf16.gmra.mrb[0].mxu0 %v1368
  %v1914 = vpop.f32.mrb[0].mxu0
  %v1915 = vadd.f32 0.0, %v1914
  %v1916 = vpop.f32.mrb[0].mxu0
  %v1917 = vadd.f32 0.0, %v1916
  %v1918 = vpop.f32.mrb[0].mxu0
  %v1919 = vpop.f32.mrb[0].mxu0
  %1920 = vdwg.mxu0
  %v1921 = vpack.c.bf16 %v1874, %v1874
  %v1922 = vpack.c.bf16 %v1876, %v1876
  %v1923 = vpack.c.bf16 %v1915, %v1915
  %v1924 = vpack.c.bf16 %v1917, %v1917
  %1926 = vrot.lane.b32.xlu0 %v1924, 17
  %v1927 = vpop.permute.xlu0 %1926
  %1931 = vrot.lane.b32.xlu0 %v1921, 17
  %v1932 = vpop.permute.xlu0 %1931
  %1933 = vrot.lane.b32.xlu0 %v1922, 17
  %v1934 = vpop.permute.xlu0 %1933
  %1935 = vrot.lane.b32.xlu0 %v1923, 17
  %v1936 = vpop.permute.xlu0 %1935
  %v1937 = vsel %vm173, %v1932, %v1934
  %v1938 = vsel %vm173, %v1934, %v1936
  %v1939 = vsel %vm173, %v1936, %v1927
  %v1945 = vsel %vm180, %v1927, %v1932
  %v1947 = vmul.bf16 %v1945, %v201
  %v1948 = vmul.bf16 %v1937, %v208
  %v1949 = vmul.bf16 %v1938, %v215
  %v1950 = vmul.bf16 %v1939, %v222
  %v1955 = vunpack.c.l.b16 %v1947
  %v1956 = vunpack.c.l.b16 %v1948
  %v1957 = vunpack.c.l.b16 %v1949
  %v1958 = vunpack.c.l.b16 %v1950
  %v1959 = vpack.c.b16 %v1956, %v1955
  %v1960 = vpack.c.b16 %v1958, %v1957
  %1963 = vst [vmem:[#allocation2 + $0x90] sm:$0x33] %v1959
  %1964 = vst [vmem:[#allocation2 + $0x98] sm:$0x33] %v1960
  %1965 = vrot.lane.b32.xlu0 %v1924, 16
  %v1966 = vpop.permute.xlu0 %1965
  %1967 = vrot.lane.b32.xlu0 %v1921, 16
  %v1968 = vpop.permute.xlu0 %1967
  %1969 = vrot.lane.b32.xlu0 %v1922, 16
  %v1970 = vpop.permute.xlu0 %1969
  %1971 = vrot.lane.b32.xlu0 %v1923, 16
  %v1972 = vpop.permute.xlu0 %1971
  %v1973 = vsel %vm249, %v1968, %v1970
  %v1974 = vsel %vm249, %v1970, %v1972
  %v1975 = vsel %vm249, %v1972, %v1966
  %v1981 = vsel %vm256, %v1966, %v1968
  %v1983 = vmul.bf16 %v1981, %v267
  %v1984 = vmul.bf16 %v1973, %v274
  %v1985 = vmul.bf16 %v1974, %v281
  %v1986 = vmul.bf16 %v1975, %v288
  %v1991 = vunpack.c.l.b16 %v1983
  %v1992 = vunpack.c.l.b16 %v1984
  %v1993 = vunpack.c.l.b16 %v1985
  %v1994 = vunpack.c.l.b16 %v1986
  %v1995 = vpack.c.b16 %v1992, %v1991
  %v1996 = vpack.c.b16 %v1994, %v1993
  %v1997 = vrot.slane %v1995, 6
  %v1998 = vrot.slane %v1996, 6
  %2001 = vst [vmem:[#allocation2 + $0x90] sm:$0xcc] %v1997
  %2002 = vst [vmem:[#allocation2 + $0x98] sm:$0xcc] %v1998
  %2003 = vrot.lane.b32.xlu0 %v1924, 15
  %v2004 = vpop.permute.xlu0 %2003
  %2005 = vrot.lane.b32.xlu0 %v1921, 15
  %v2006 = vpop.permute.xlu0 %2005
  %2007 = vrot.lane.b32.xlu0 %v1922, 15
  %v2008 = vpop.permute.xlu0 %2007
  %2009 = vrot.lane.b32.xlu0 %v1923, 15
  %v2010 = vpop.permute.xlu0 %2009
  %v2011 = vsel %vm315, %v2006, %v2008
  %v2012 = vsel %vm315, %v2008, %v2010
  %v2013 = vsel %vm315, %v2010, %v2004
  %v2019 = vsel %vm322, %v2004, %v2006
  %v2021 = vmul.bf16 %v2019, %v330
  %v2022 = vmul.bf16 %v2011, %v334
  %v2023 = vmul.bf16 %v2012, %v338
  %v2024 = vmul.bf16 %v2013, %v342
  %v2029 = vunpack.c.l.b16 %v2021
  %v2030 = vunpack.c.l.b16 %v2022
  %v2031 = vunpack.c.l.b16 %v2023
  %v2032 = vunpack.c.l.b16 %v2024
  %v2033 = vpack.c.b16 %v2030, %v2029
  %v2034 = vpack.c.b16 %v2032, %v2031
  %2037 = vst [vmem:[#allocation2 + $0xa0] sm:$0x33] %v2033
  %2038 = vst [vmem:[#allocation2 + $0xa8] sm:$0x33] %v2034
  %2039 = vrot.lane.b32.xlu0 %v1924, 1
  %v2040 = vpop.permute.xlu0 %2039
  %2041 = vrot.lane.b32.xlu0 %v1921, 1
  %v2042 = vpop.permute.xlu0 %2041
  %2043 = vrot.lane.b32.xlu0 %v1922, 1
  %v2044 = vpop.permute.xlu0 %2043
  %2045 = vrot.lane.b32.xlu0 %v1923, 1
  %v2046 = vpop.permute.xlu0 %2045
  %v2047 = vsel %vm369, %v2042, %v2044
  %v2048 = vsel %vm369, %v2044, %v2046
  %v2049 = vsel %vm369, %v2046, %v2040
  %v2055 = vsel %vm376, %v2040, %v2042
  %v2057 = vmul.bf16 %v2055, %v384
  %v2058 = vmul.bf16 %v2047, %v388
  %v2059 = vmul.bf16 %v2048, %v392
  %v2060 = vmul.bf16 %v2049, %v396
  %v2065 = vunpack.c.l.b16 %v2057
  %v2066 = vunpack.c.l.b16 %v2058
  %v2067 = vunpack.c.l.b16 %v2059
  %v2068 = vunpack.c.l.b16 %v2060
  %v2069 = vpack.c.b16 %v2066, %v2065
  %v2070 = vpack.c.b16 %v2068, %v2067
  %v2071 = vrot.slane %v2069, 6
  %v2072 = vrot.slane %v2070, 6
  %2075 = vst [vmem:[#allocation2 + $0xa0] sm:$0xcc] %v2071
  %2076 = vst [vmem:[#allocation2 + $0xa8] sm:$0xcc] %v2072
  %v2077 = vmul.bf16 %v1921, %v418
  %v2078 = vmul.bf16 %v1922, %v422
  %v2079 = vmul.bf16 %v1923, %v426
  %v2080 = vmul.bf16 %v1924, %v430
  %v2085 = vunpack.c.l.b16 %v2077
  %v2086 = vunpack.c.l.b16 %v2078
  %v2087 = vunpack.c.l.b16 %v2079
  %v2088 = vunpack.c.l.b16 %v2080
  %v2089 = vpack.c.b16 %v2086, %v2085
  %v2090 = vpack.c.b16 %v2088, %v2087
  %2093 = vst [vmem:[#allocation2 + $0xb0] sm:$0x33] %v2089
  %2094 = vst [vmem:[#allocation2 + $0xb8] sm:$0x33] %v2090
  %2095 = vrot.lane.b32.xlu0 %v1921, 127
  %v2096 = vpop.permute.xlu0 %2095
  %2097 = vrot.lane.b32.xlu0 %v1922, 127
  %v2098 = vpop.permute.xlu0 %2097
  %2099 = vrot.lane.b32.xlu0 %v1923, 127
  %v2100 = vpop.permute.xlu0 %2099
  %2101 = vrot.lane.b32.xlu0 %v1924, 127
  %v2102 = vpop.permute.xlu0 %2101
  %v2103 = vsel %vm457, %v2096, %v2098
  %v2104 = vsel %vm457, %v2098, %v2100
  %v2105 = vsel %vm457, %v2100, %v2102
  %v2111 = vsel %vm464, %v2102, %v2096
  %v2113 = vmul.bf16 %v2103, %v472
  %v2114 = vmul.bf16 %v2104, %v476
  %v2115 = vmul.bf16 %v2105, %v480
  %v2116 = vmul.bf16 %v2111, %v484
  %v2121 = vunpack.c.l.b16 %v2113
  %v2122 = vunpack.c.l.b16 %v2114
  %v2123 = vunpack.c.l.b16 %v2115
  %v2124 = vunpack.c.l.b16 %v2116
  %v2125 = vpack.c.b16 %v2122, %v2121
  %v2126 = vpack.c.b16 %v2124, %v2123
  %v2127 = vrot.slane %v2125, 6
  %v2128 = vrot.slane %v2126, 6
  %2131 = vst [vmem:[#allocation2 + $0xb0] sm:$0xcc] %v2127
  %2132 = vst [vmem:[#allocation2 + $0xb8] sm:$0xcc] %v2128
  %2133 = vrot.lane.b32.xlu0 %v1921, 113
  %v2134 = vpop.permute.xlu0 %2133
  %2135 = vrot.lane.b32.xlu0 %v1922, 113
  %v2136 = vpop.permute.xlu0 %2135
  %2137 = vrot.lane.b32.xlu0 %v1923, 113
  %v2138 = vpop.permute.xlu0 %2137
  %2139 = vrot.lane.b32.xlu0 %v1924, 113
  %v2140 = vpop.permute.xlu0 %2139
  %v2141 = vsel %vm511, %v2134, %v2136
  %v2142 = vsel %vm511, %v2136, %v2138
  %v2143 = vsel %vm511, %v2138, %v2140
  %v2149 = vsel %vm518, %v2140, %v2134
  %v2151 = vmul.bf16 %v2141, %v526
  %v2152 = vmul.bf16 %v2142, %v530
  %v2153 = vmul.bf16 %v2143, %v534
  %v2154 = vmul.bf16 %v2149, %v538
  %v2159 = vunpack.c.l.b16 %v2151
  %v2160 = vunpack.c.l.b16 %v2152
  %v2161 = vunpack.c.l.b16 %v2153
  %v2162 = vunpack.c.l.b16 %v2154
  %v2163 = vpack.c.b16 %v2160, %v2159
  %v2164 = vpack.c.b16 %v2162, %v2161
  %2167 = vst [vmem:[#allocation2 + $0xc0] sm:$0x33] %v2163
  %2168 = vst [vmem:[#allocation2 + $0xc8] sm:$0x33] %v2164
  %2169 = vrot.lane.b32.xlu0 %v1921, 112
  %v2170 = vpop.permute.xlu0 %2169
  %2171 = vrot.lane.b32.xlu0 %v1922, 112
  %v2172 = vpop.permute.xlu0 %2171
  %2173 = vrot.lane.b32.xlu0 %v1923, 112
  %v2174 = vpop.permute.xlu0 %2173
  %2175 = vrot.lane.b32.xlu0 %v1924, 112
  %v2176 = vpop.permute.xlu0 %2175
  %v2177 = vsel %vm565, %v2170, %v2172
  %v2178 = vsel %vm565, %v2172, %v2174
  %v2179 = vsel %vm565, %v2174, %v2176
  %v2185 = vsel %vm572, %v2176, %v2170
  %v2187 = vmul.bf16 %v2177, %v580
  %v2188 = vmul.bf16 %v2178, %v584
  %v2189 = vmul.bf16 %v2179, %v588
  %v2190 = vmul.bf16 %v2185, %v592
  %v2195 = vunpack.c.l.b16 %v2187
  %v2196 = vunpack.c.l.b16 %v2188
  %v2197 = vunpack.c.l.b16 %v2189
  %v2198 = vunpack.c.l.b16 %v2190
  %v2199 = vpack.c.b16 %v2196, %v2195
  %v2200 = vpack.c.b16 %v2198, %v2197
  %v2201 = vrot.slane %v2199, 6
  %v2202 = vrot.slane %v2200, 6
  %2205 = vst [vmem:[#allocation2 + $0xc0] sm:$0xcc] %v2201
  %2206 = vst [vmem:[#allocation2 + $0xc8] sm:$0xcc] %v2202
  %2207 = vrot.lane.b32.xlu0 %v1921, 111
  %v2208 = vpop.permute.xlu0 %2207
  %2209 = vrot.lane.b32.xlu0 %v1922, 111
  %v2210 = vpop.permute.xlu0 %2209
  %2211 = vrot.lane.b32.xlu0 %v1923, 111
  %v2212 = vpop.permute.xlu0 %2211
  %2213 = vrot.lane.b32.xlu0 %v1924, 111
  %v2214 = vpop.permute.xlu0 %2213
  %v2215 = vsel %vm619, %v2208, %v2210
  %v2216 = vsel %vm619, %v2210, %v2212
  %v2217 = vsel %vm619, %v2212, %v2214
  %v2223 = vsel %vm626, %v2214, %v2208
  %v2225 = vmul.bf16 %v2215, %v647
  %v2226 = vmul.bf16 %v2216, %v654
  %v2227 = vmul.bf16 %v2217, %v661
  %v2228 = vmul.bf16 %v2223, %v668
  %v2233 = vunpack.c.l.b16 %v2225
  %v2234 = vunpack.c.l.b16 %v2226
  %v2235 = vunpack.c.l.b16 %v2227
  %v2236 = vunpack.c.l.b16 %v2228
  %v2237 = vpack.c.b16 %v2234, %v2233
  %v2238 = vpack.c.b16 %v2236, %v2235
  %2241 = vst [vmem:[#allocation2 + $0xd0] sm:$0x33] %v2237
  %2242 = vst [vmem:[#allocation2 + $0xd8] sm:$0x33] %v2238
  %v2243 = vld [vmem:[%s9] sm:$0xf]
  %v2244 = vld [vmem:[#allocation2] sm:$0xff]
  %v2245 = vld [vmem:[#allocation2 + $0x8] sm:$0xff]
  %v2246 = vld [vmem:[#allocation2 + $0x10] sm:$0xff]
  %v2247 = vld [vmem:[#allocation2 + $0x18] sm:$0xff]
  %v2248 = vld [vmem:[#allocation2 + $0x20] sm:$0xff]
  %v2249 = vld [vmem:[#allocation2 + $0x28] sm:$0xff]
  %v2250 = vld [vmem:[#allocation2 + $0x30] sm:$0xff]
  %v2251 = vld [vmem:[#allocation2 + $0x38] sm:$0xff]
  %v2252 = vld [vmem:[#allocation2 + $0x40] sm:$0xff]
  %v2253 = vld [vmem:[#allocation2 + $0x48] sm:$0xff]
  %v2254 = vld [vmem:[#allocation2 + $0x50] sm:$0xff]
  %v2255 = vld [vmem:[#allocation2 + $0x58] sm:$0xff]
  %v2256 = vld [vmem:[#allocation2 + $0x60] sm:$0xff]
  %v2257 = vld [vmem:[#allocation2 + $0x68] sm:$0xff]
  %v2258 = vld [vmem:[#allocation2 + $0x70] sm:$0xff]
  %v2259 = vld [vmem:[#allocation2 + $0x78] sm:$0xff]
  %v2260 = vld [vmem:[#allocation2 + $0x80] sm:$0xff]
  %v2261 = vld [vmem:[#allocation2 + $0x88] sm:$0xff]
  %v2262 = vld [vmem:[#allocation2 + $0x90] sm:$0xff]
  %v2263 = vld [vmem:[#allocation2 + $0x98] sm:$0xff]
  %v2264 = vld [vmem:[#allocation2 + $0xa0] sm:$0xff]
  %v2265 = vld [vmem:[#allocation2 + $0xa8] sm:$0xff]
  %v2266 = vld [vmem:[#allocation2 + $0xb0] sm:$0xff]
  %v2267 = vld [vmem:[#allocation2 + $0xb8] sm:$0xff]
  %v2268 = vld [vmem:[#allocation2 + $0xc0] sm:$0xff]
  %v2269 = vld [vmem:[#allocation2 + $0xc8] sm:$0xff]
  %v2270 = vld [vmem:[#allocation2 + $0xd0] sm:$0x33]
  %v2271 = vld [vmem:[#allocation2 + $0xd8] sm:$0x33]
  %v2272 = vld [vmem:[%s10] sm:$0xff]
  %2274 = vset.pattern.permute.xlu0 0
  %2275 = vperm.xlu0 %2274, %v2272
  %v2276 = vpop.permute.xlu0 %2275
  %v2306 = vunpack.c.l.b16 %v2244
  %v2307 = vunpack.c.h.b16 %v2244
  %v2308 = vunpack.c.l.b16 %v2245
  %v2309 = vunpack.c.h.b16 %v2245
  %v2310 = vunpack.c.l.b16 %v2246
  %v2311 = vunpack.c.h.b16 %v2246
  %v2312 = vunpack.c.l.b16 %v2247
  %v2313 = vunpack.c.h.b16 %v2247
  %v2314 = vunpack.c.l.b16 %v2248
  %v2315 = vunpack.c.h.b16 %v2248
  %v2316 = vunpack.c.l.b16 %v2249
  %v2317 = vunpack.c.h.b16 %v2249
  %v2318 = vunpack.c.l.b16 %v2250
  %v2319 = vunpack.c.h.b16 %v2250
  %v2320 = vunpack.c.l.b16 %v2251
  %v2321 = vunpack.c.h.b16 %v2251
  %v2322 = vunpack.c.l.b16 %v2252
  %v2323 = vunpack.c.h.b16 %v2252
  %v2324 = vunpack.c.l.b16 %v2253
  %v2325 = vunpack.c.h.b16 %v2253
  %v2326 = vunpack.c.l.b16 %v2254
  %v2327 = vunpack.c.h.b16 %v2254
  %v2328 = vunpack.c.l.b16 %v2255
  %v2329 = vunpack.c.h.b16 %v2255
  %v2330 = vunpack.c.l.b16 %v2256
  %v2331 = vunpack.c.h.b16 %v2256
  %v2332 = vunpack.c.l.b16 %v2257
  %v2333 = vunpack.c.h.b16 %v2257
  %v2334 = vunpack.c.l.b16 %v2258
  %v2335 = vunpack.c.h.b16 %v2258
  %v2336 = vunpack.c.l.b16 %v2259
  %v2337 = vunpack.c.h.b16 %v2259
  %v2338 = vunpack.c.l.b16 %v2260
  %v2339 = vunpack.c.h.b16 %v2260
  %v2340 = vunpack.c.l.b16 %v2261
  %v2341 = vunpack.c.h.b16 %v2261
  %v2342 = vunpack.c.l.b16 %v2262
  %v2343 = vunpack.c.h.b16 %v2262
  %v2344 = vunpack.c.l.b16 %v2263
  %v2345 = vunpack.c.h.b16 %v2263
  %v2346 = vunpack.c.l.b16 %v2264
  %v2347 = vunpack.c.h.b16 %v2264
  %v2348 = vunpack.c.l.b16 %v2265
  %v2349 = vunpack.c.h.b16 %v2265
  %v2350 = vunpack.c.l.b16 %v2266
  %v2351 = vunpack.c.h.b16 %v2266
  %v2352 = vunpack.c.l.b16 %v2267
  %v2353 = vunpack.c.h.b16 %v2267
  %v2354 = vunpack.c.l.b16 %v2268
  %v2355 = vunpack.c.h.b16 %v2268
  %v2356 = vunpack.c.l.b16 %v2269
  %v2357 = vunpack.c.h.b16 %v2269
  %v2358 = vunpack.c.l.b16 %v2270
  %v2359 = vunpack.c.h.b16 %v2270
  %v2360 = vunpack.c.l.b16 %v2271
  %v2361 = vunpack.c.h.b16 %v2271
  %v2362 = vpack.c.b16 %v2310, %v2306
  %v2363 = vpack.c.b16 %v2311, %v2307
  %v2364 = vpack.c.b16 %v2312, %v2308
  %v2365 = vpack.c.b16 %v2313, %v2309
  %v2366 = vpack.c.b16 %v2318, %v2314
  %v2367 = vpack.c.b16 %v2319, %v2315
  %v2368 = vpack.c.b16 %v2320, %v2316
  %v2369 = vpack.c.b16 %v2321, %v2317
  %v2370 = vpack.c.b16 %v2326, %v2322
  %v2371 = vpack.c.b16 %v2327, %v2323
  %v2372 = vpack.c.b16 %v2328, %v2324
  %v2373 = vpack.c.b16 %v2329, %v2325
  %v2374 = vpack.c.b16 %v2334, %v2330
  %v2375 = vpack.c.b16 %v2335, %v2331
  %v2376 = vpack.c.b16 %v2336, %v2332
  %v2377 = vpack.c.b16 %v2337, %v2333
  %v2378 = vpack.c.b16 %v2342, %v2338
  %v2379 = vpack.c.b16 %v2343, %v2339
  %v2380 = vpack.c.b16 %v2344, %v2340
  %v2381 = vpack.c.b16 %v2345, %v2341
  %v2382 = vpack.c.b16 %v2350, %v2346
  %v2383 = vpack.c.b16 %v2351, %v2347
  %v2384 = vpack.c.b16 %v2352, %v2348
  %v2385 = vpack.c.b16 %v2353, %v2349
  %v2386 = vpack.c.b16 %v2358, %v2354
  %v2387 = vpack.c.b16 %v2359, %v2355
  %v2388 = vpack.c.b16 %v2360, %v2356
  %v2389 = vpack.c.b16 %v2361, %v2357
  %vm2414 = vcmask 883712
  %v2416 = vsel %vm2414, %v2243, 0
  %vm2418 = vcmask 1045504
  %v2420 = vsel %vm2418, %v2386, 0
  %v2423 = vsel %vm2418, %v2387, 0
  %v2426 = vsel %vm2418, %v2388, 0
  %v2429 = vsel %vm2418, %v2389, 0
  %2431 = vmatprep.subr.bf16.mxu0 %v2363
  %2432 = vmatpush1.bf16.msra.mxu0 %v2362
  %2433 = vmatprep.subr.bf16.mxu0 %v2367
  %2434 = vmatpush1.bf16.msra.mxu0 %v2366
  %2435 = vmatprep.subr.bf16.mxu0 %v2371
  %2436 = vmatpush1.bf16.msra.mxu0 %v2370
  %2437 = vmatprep.subr.bf16.mxu0 %v2375
  %2438 = vmatpush1.bf16.msra.mxu0 %v2374
  %2439 = vmatprep.subr.bf16.mxu0 %v2379
  %2440 = vmatpush1.bf16.msra.mxu0 %v2378
  %2441 = vmatprep.subr.bf16.mxu0 %v2383
  %2442 = vmatpush1.bf16.msra.mxu0 %v2382
  %2443 = vmatprep.subr.bf16.mxu0 %v2423
  %2444 = vmatpush1.bf16.msra.mxu0 %v2420
  %2445 = vmatprep.subr.bf16.mxu0 0
  %2446 = vmatpush1.bf16.msra.mxu0 0
  %2447 = vmatprep.subr.bf16.mxu0 0
  %2448 = vmatpush1.bf16.msra.mxu0 0
  %2449 = vmatprep.subr.bf16.mxu0 0
  %2450 = vmatpush1.bf16.msra.mxu0 0
  %2451 = vmatprep.subr.bf16.mxu0 0
  %2452 = vmatpush1.bf16.msra.mxu0 0
  %2453 = vmatprep.subr.bf16.mxu0 0
  %2454 = vmatpush1.bf16.msra.mxu0 0
  %2455 = vmatprep.subr.bf16.mxu0 0
  %2456 = vmatpush1.bf16.msra.mxu0 0
  %2457 = vmatprep.subr.bf16.mxu0 0
  %2458 = vmatpush1.bf16.msra.mxu0 0
  %2459 = vmatprep.subr.bf16.mxu0 0
  %2460 = vmatpush1.bf16.msra.mxu0 0
  %2461 = vmatprep.subr.bf16.mxu0 0
  %2462 = vmatpush1.bf16.msra.mxu0 0
  %2463 = vmatprep.mubr.bf16.mxu0 0
  %2464 = vmatmul.mubr.bf16.gmra.mrb[0].mxu0 %v2416
  %v2465 = vpop.f32.mrb[0].mxu0
  %v2466 = vadd.f32 %v2276, %v2465
  %v2467 = vpop.f32.mrb[0].mxu0
  %v2468 = vadd.f32 %v2276, %v2467
  %v2469 = vpop.f32.mrb[0].mxu0
  %v2470 = vpop.f32.mrb[0].mxu0
  %2471 = vdwg.mxu0
  %2472 = vmatprep.subr.bf16.mxu0 %v2365
  %2473 = vmatpush1.bf16.msra.mxu0 %v2364
  %2474 = vmatprep.subr.bf16.mxu0 %v2369
  %2475 = vmatpush1.bf16.msra.mxu0 %v2368
  %2476 = vmatprep.subr.bf16.mxu0 %v2373
  %2477 = vmatpush1.bf16.msra.mxu0 %v2372
  %2478 = vmatprep.subr.bf16.mxu0 %v2377
  %2479 = vmatpush1.bf16.msra.mxu0 %v2376
  %2480 = vmatprep.subr.bf16.mxu0 %v2381
  %2481 = vmatpush1.bf16.msra.mxu0 %v2380
  %2482 = vmatprep.subr.bf16.mxu0 %v2385
  %2483 = vmatpush1.bf16.msra.mxu0 %v2384
  %2484 = vmatprep.subr.bf16.mxu0 %v2429
  %2485 = vmatpush1.bf16.msra.mxu0 %v2426
  %2486 = vmatprep.subr.bf16.mxu0 0
  %2487 = vmatpush1.bf16.msra.mxu0 0
  %2488 = vmatprep.subr.bf16.mxu0 0
  %2489 = vmatpush1.bf16.msra.mxu0 0
  %2490 = vmatprep.subr.bf16.mxu0 0
  %2491 = vmatpush1.bf16.msra.mxu0 0
  %2492 = vmatprep.subr.bf16.mxu0 0
  %2493 = vmatpush1.bf16.msra.mxu0 0
  %2494 = vmatprep.subr.bf16.mxu0 0
  %2495 = vmatpush1.bf16.msra.mxu0 0
  %2496 = vmatprep.subr.bf16.mxu0 0
  %2497 = vmatpush1.bf16.msra.mxu0 0
  %2498 = vmatprep.subr.bf16.mxu0 0
  %2499 = vmatpush1.bf16.msra.mxu0 0
  %2500 = vmatprep.subr.bf16.mxu0 0
  %2501 = vmatpush1.bf16.msra.mxu0 0
  %2502 = vmatprep.subr.bf16.mxu0 0
  %2503 = vmatpush1.bf16.msra.mxu0 0
  %2504 = vmatprep.mubr.bf16.mxu0 0
  %2505 = vmatmul.mubr.bf16.gmra.mrb[0].mxu0 %v2416
  %v2506 = vpop.f32.mrb[0].mxu0
  %v2507 = vadd.f32 %v2276, %v2506
  %v2508 = vpop.f32.mrb[0].mxu0
  %v2509 = vadd.f32 %v2276, %v2508
  %v2510 = vpop.f32.mrb[0].mxu0
  %v2511 = vpop.f32.mrb[0].mxu0
  %2512 = vdwg.mxu0
  %v2513 = vmax.f32 %v2466, 0.0
  %v2514 = vmax.f32 %v2468, 0.0
  %v2515 = vmax.f32 %v2507, 0.0
  %v2516 = vmax.f32 %v2509, 0.0
  %2518 = vrot.lane.b32.xlu0 %v1368, 9
  %v2519 = vpop.permute.xlu0 %2518
  %v2522 = vmul.bf16 %v2519, %v1189
  %2523 = vst [vmem:[#allocation3] sm:$0x3] %v2522
  %2524 = vrot.lane.b32.xlu0 %v1368, 8
  %v2525 = vpop.permute.xlu0 %2524
  %v2528 = vmul.bf16 %v2525, %v1202
  %v2530 = vunpack.c.l.b16 %v2528
  %v2531 = vpack.c.b16 %v2530, %v2530
  %v2532 = vrot.slane %v2531, 6
  %2534 = vst [vmem:[#allocation3] sm:$0xc] %v2532
  %2535 = vrot.lane.b32.xlu0 %v1368, 7
  %v2536 = vpop.permute.xlu0 %2535
  %v2539 = vmul.bf16 %v2536, %v1212
  %2540 = vst [vmem:[#allocation3 + $0x4] sm:$0x3] %v2539
  %2541 = vrot.lane.b32.xlu0 %v1368, 1
  %v2542 = vpop.permute.xlu0 %2541
  %v2545 = vmul.bf16 %v2542, %v1222
  %v2547 = vunpack.c.l.b16 %v2545
  %v2548 = vpack.c.b16 %v2547, %v2547
  %v2549 = vrot.slane %v2548, 6
  %2551 = vst [vmem:[#allocation3 + $0x4] sm:$0xc] %v2549
  %v2552 = vmul.bf16 %v1368, %v1228
  %2553 = vst [vmem:[#allocation3 + $0x8] sm:$0x3] %v2552
  %2554 = vrot.lane.b32.xlu0 %v1368, 127
  %v2555 = vpop.permute.xlu0 %2554
  %v2558 = vmul.bf16 %v2555, %v1238
  %v2560 = vunpack.c.l.b16 %v2558
  %v2561 = vpack.c.b16 %v2560, %v2560
  %v2562 = vrot.slane %v2561, 6
  %2564 = vst [vmem:[#allocation3 + $0x8] sm:$0xc] %v2562
  %2565 = vrot.lane.b32.xlu0 %v1368, 121
  %v2566 = vpop.permute.xlu0 %2565
  %v2569 = vmul.bf16 %v2566, %v1248
  %2570 = vst [vmem:[#allocation3 + $0xc] sm:$0x3] %v2569
  %2571 = vrot.lane.b32.xlu0 %v1368, 120
  %v2572 = vpop.permute.xlu0 %2571
  %v2575 = vmul.bf16 %v2572, %v1258
  %v2577 = vunpack.c.l.b16 %v2575
  %v2578 = vpack.c.b16 %v2577, %v2577
  %v2579 = vrot.slane %v2578, 6
  %2581 = vst [vmem:[#allocation3 + $0xc] sm:$0xc] %v2579
  %2582 = vrot.lane.b32.xlu0 %v1368, 119
  %v2583 = vpop.permute.xlu0 %2582
  %v2586 = vmul.bf16 %v2583, %v1271
  %2587 = vst [vmem:[#allocation3 + $0x10] sm:$0x3] %v2586
  %2588 = vmatprep.subr.bf16.mxu0 0
  %2589 = vmatpush1.bf16.msra.mxu0 %v1033
  %2590 = vmatprep.subr.bf16.mxu0 0
  %2591 = vmatpush1.bf16.msra.mxu0 %v1034
  %2592 = vmatprep.subr.bf16.mxu0 0
  %2593 = vmatpush1.bf16.msra.mxu0 %v1035
  %2594 = vmatprep.subr.bf16.mxu0 0
  %2595 = vmatpush1.bf16.msra.mxu0 %v1036
  %2596 = vmatprep.subr.bf16.mxu0 0
  %2597 = vmatpush1.bf16.msra.mxu0 %v1037
  %2598 = vmatprep.subr.bf16.mxu0 0
  %2599 = vmatpush1.bf16.msra.mxu0 %v1038
  %2600 = vmatprep.subr.bf16.mxu0 0
  %2601 = vmatpush1.bf16.msra.mxu0 %v1039
  %2602 = vmatprep.subr.bf16.mxu0 0
  %2603 = vmatpush1.bf16.msra.mxu0 %v1040
  %2604 = vmatprep.subr.bf16.mxu0 0
  %2605 = vmatpush1.bf16.msra.mxu0 %v1041
  %2606 = vmatprep.subr.bf16.mxu0 0
  %2607 = vmatpush1.bf16.msra.mxu0 %v1042
  %2608 = vmatprep.subr.bf16.mxu0 0
  %2609 = vmatpush1.bf16.msra.mxu0 %v1043
  %2610 = vmatprep.subr.bf16.mxu0 0
  %2611 = vmatpush1.bf16.msra.mxu0 %v1044
  %2612 = vmatprep.subr.bf16.mxu0 0
  %2613 = vmatpush1.bf16.msra.mxu0 %v1045
  %2614 = vmatprep.subr.bf16.mxu0 0
  %2615 = vmatpush1.bf16.msra.mxu0 %v1046
  %2616 = vmatprep.subr.bf16.mxu0 0
  %2617 = vmatpush1.bf16.msra.mxu0 %v1047
  %2618 = vmatprep.subr.bf16.mxu0 0
  %2619 = vmatpush1.bf16.msra.mxu0 %v1048
  %2620 = vmatprep.mubr.bf16.mxu0 %v1365
  %2621 = vmatmul.mubr.bf16.gmra.mrb[0].mxu0 %v1364
  %v2622 = vpop.f32.mrb[0].mxu0
  %v2623 = vadd.f32 0.0, %v2622
  %v2624 = vpop.f32.mrb[0].mxu0
  %v2625 = vpop.f32.mrb[0].mxu0
  %v2626 = vpop.f32.mrb[0].mxu0
  %2627 = vdwg.mxu0
  %2628 = vmatprep.subr.bf16.mxu0 0
  %2629 = vmatpush1.bf16.msra.mxu0 %v1049
  %2630 = vmatprep.subr.bf16.mxu0 0
  %2631 = vmatpush1.bf16.msra.mxu0 %v1050
  %2632 = vmatprep.subr.bf16.mxu0 0
  %2633 = vmatpush1.bf16.msra.mxu0 %v1051
  %2634 = vmatprep.subr.bf16.mxu0 0
  %2635 = vmatpush1.bf16.msra.mxu0 %v1052
  %2636 = vmatprep.subr.bf16.mxu0 0
  %2637 = vmatpush1.bf16.msra.mxu0 %v1053
  %2638 = vmatprep.subr.bf16.mxu0 0
  %2639 = vmatpush1.bf16.msra.mxu0 %v1054
  %2640 = vmatprep.subr.bf16.mxu0 0
  %2641 = vmatpush1.bf16.msra.mxu0 %v1055
  %2642 = vmatprep.subr.bf16.mxu0 0
  %2643 = vmatpush1.bf16.msra.mxu0 %v1056
  %2644 = vmatprep.subr.bf16.mxu0 0
  %2645 = vmatpush1.bf16.msra.mxu0 %v1057
  %2646 = vmatprep.subr.bf16.mxu0 0
  %2647 = vmatpush1.bf16.msra.mxu0 %v1058
  %2648 = vmatprep.subr.bf16.mxu0 0
  %2649 = vmatpush1.bf16.msra.mxu0 %v1059
  %2650 = vmatprep.subr.bf16.mxu0 0
  %2651 = vmatpush1.bf16.msra.mxu0 %v1060
  %2652 = vmatprep.subr.bf16.mxu0 0
  %2653 = vmatpush1.bf16.msra.mxu0 %v1061
  %2654 = vmatprep.subr.bf16.mxu0 0
  %2655 = vmatpush1.bf16.msra.mxu0 %v1062
  %2656 = vmatprep.subr.bf16.mxu0 0
  %2657 = vmatpush1.bf16.msra.mxu0 %v1063
  %2658 = vmatprep.subr.bf16.mxu0 0
  %2659 = vmatpush1.bf16.msra.mxu0 %v1064
  %2660 = vmatprep.mubr.bf16.mxu0 %v1367
  %2661 = vmatmul.mubr.bf16.gmra.mrb[0].mxu0 %v1366
  %v2662 = vpop.f32.mrb[0].mxu0
  %v2663 = vadd.f32 %v2623, %v2662
  %v2664 = vpop.f32.mrb[0].mxu0
  %v2665 = vpop.f32.mrb[0].mxu0
  %v2666 = vpop.f32.mrb[0].mxu0
  %2667 = vdwg.mxu0
  %v2668 = vpack.c.bf16 %v2663, %v2663
  %2670 = vrot.lane.b32.xlu0 %v2668, 9
  %v2671 = vpop.permute.xlu0 %2670
  %v2674 = vmul.bf16 %v2671, %v1189
  %v2676 = vunpack.c.l.b16 %v2674
  %v2677 = vpack.c.b16 %v2676, %v2676
  %v2678 = vrot.slane %v2677, 6
  %v2679 = vrot.slane %v2678, 4
  %2682 = vst [vmem:[#allocation3 + $0x10] sm:$0xc] %v2678
  %2683 = vst [vmem:[#allocation3 + $0x14] sm:$0x3] %v2679
  %2684 = vrot.lane.b32.xlu0 %v2668, 8
  %v2685 = vpop.permute.xlu0 %2684
  %v2688 = vmul.bf16 %v2685, %v1202
  %v2690 = vunpack.c.l.b16 %v2688
  %v2691 = vpack.c.b16 %v2690, %v2690
  %v2692 = vrot.slane %v2691, 6
  %v2693 = vrot.slane %v2692, 4
  %2696 = vst [vmem:[#allocation3 + $0x14] sm:$0xc] %v2692
  %2697 = vst [vmem:[#allocation3 + $0x18] sm:$0x3] %v2693
  %2698 = vrot.lane.b32.xlu0 %v2668, 7
  %v2699 = vpop.permute.xlu0 %2698
  %v2702 = vmul.bf16 %v2699, %v1212
  %v2704 = vunpack.c.l.b16 %v2702
  %v2705 = vpack.c.b16 %v2704, %v2704
  %v2706 = vrot.slane %v2705, 6
  %v2707 = vrot.slane %v2706, 4
  %2710 = vst [vmem:[#allocation3 + $0x18] sm:$0xc] %v2706
  %2711 = vst [vmem:[#allocation3 + $0x1c] sm:$0x3] %v2707
  %2712 = vrot.lane.b32.xlu0 %v2668, 1
  %v2713 = vpop.permute.xlu0 %2712
  %v2716 = vmul.bf16 %v2713, %v1222
  %v2718 = vunpack.c.l.b16 %v2716
  %v2719 = vpack.c.b16 %v2718, %v2718
  %v2720 = vrot.slane %v2719, 6
  %v2721 = vrot.slane %v2720, 4
  %2724 = vst [vmem:[#allocation3 + $0x1c] sm:$0xc] %v2720
  %2725 = vst [vmem:[#allocation3 + $0x20] sm:$0x3] %v2721
  %v2726 = vmul.bf16 %v2668, %v1228
  %v2728 = vunpack.c.l.b16 %v2726
  %v2729 = vpack.c.b16 %v2728, %v2728
  %v2730 = vrot.slane %v2729, 6
  %v2731 = vrot.slane %v2730, 4
  %2734 = vst [vmem:[#allocation3 + $0x20] sm:$0xc] %v2730
  %2735 = vst [vmem:[#allocation3 + $0x24] sm:$0x3] %v2731
  %2736 = vrot.lane.b32.xlu0 %v2668, 127
  %v2737 = vpop.permute.xlu0 %2736
  %v2740 = vmul.bf16 %v2737, %v1238
  %v2742 = vunpack.c.l.b16 %v2740
  %v2743 = vpack.c.b16 %v2742, %v2742
  %v2744 = vrot.slane %v2743, 6
  %v2745 = vrot.slane %v2744, 4
  %2748 = vst [vmem:[#allocation3 + $0x24] sm:$0xc] %v2744
  %2749 = vst [vmem:[#allocation3 + $0x28] sm:$0x3] %v2745
  %2750 = vrot.lane.b32.xlu0 %v2668, 121
  %v2751 = vpop.permute.xlu0 %2750
  %v2754 = vmul.bf16 %v2751, %v1248
  %v2756 = vunpack.c.l.b16 %v2754
  %v2757 = vpack.c.b16 %v2756, %v2756
  %v2758 = vrot.slane %v2757, 6
  %v2759 = vrot.slane %v2758, 4
  %2762 = vst [vmem:[#allocation3 + $0x28] sm:$0xc] %v2758
  %2763 = vst [vmem:[#allocation3 + $0x2c] sm:$0x3] %v2759
  %2764 = vrot.lane.b32.xlu0 %v2668, 120
  %v2765 = vpop.permute.xlu0 %2764
  %v2768 = vmul.bf16 %v2765, %v1258
  %v2770 = vunpack.c.l.b16 %v2768
  %v2771 = vpack.c.b16 %v2770, %v2770
  %v2772 = vrot.slane %v2771, 6
  %v2773 = vrot.slane %v2772, 4
  %2776 = vst [vmem:[#allocation3 + $0x2c] sm:$0xc] %v2772
  %2777 = vst [vmem:[#allocation3 + $0x30] sm:$0x3] %v2773
  %2778 = vrot.lane.b32.xlu0 %v2668, 119
  %v2779 = vpop.permute.xlu0 %2778
  %v2782 = vmul.bf16 %v2779, %v1271
  %v2784 = vunpack.c.l.b16 %v2782
  %v2785 = vpack.c.b16 %v2784, %v2784
  %v2786 = vrot.slane %v2785, 6
  %v2787 = vrot.slane %v2786, 4
  %2790 = vst [vmem:[#allocation3 + $0x30] sm:$0xc] %v2786
  %2791 = vst [vmem:[#allocation3 + $0x34] sm:$0x3] %v2787
  %v2792 = vld [vmem:[%s11] sm:$0x3]
  %v2793 = vld [vmem:[#allocation3] sm:$0xf]
  %v2794 = vld [vmem:[#allocation3 + $0x4] sm:$0xf]
  %v2795 = vld [vmem:[#allocation3 + $0x8] sm:$0xf]
  %v2796 = vld [vmem:[#allocation3 + $0xc] sm:$0xf]
  %v2797 = vld [vmem:[#allocation3 + $0x10] sm:$0xf]
  %v2798 = vld [vmem:[#allocation3 + $0x14] sm:$0xf]
  %v2799 = vld [vmem:[#allocation3 + $0x18] sm:$0xf]
  %v2800 = vld [vmem:[#allocation3 + $0x1c] sm:$0xf]
  %v2801 = vld [vmem:[#allocation3 + $0x20] sm:$0xf]
  %v2802 = vld [vmem:[#allocation3 + $0x24] sm:$0xf]
  %v2803 = vld [vmem:[#allocation3 + $0x28] sm:$0xf]
  %v2804 = vld [vmem:[#allocation3 + $0x2c] sm:$0xf]
  %v2805 = vld [vmem:[#allocation3 + $0x30] sm:$0xf]
  %v2806 = vld [vmem:[#allocation3 + $0x34] sm:$0x3]
  %v2807 = vld [vmem:[%s12] sm:$0xf]
  %2809 = vset.pattern.permute.xlu0 0
  %2810 = vperm.xlu0 %2809, %v2807
  %v2811 = vpop.permute.xlu0 %2810
  %v2827 = vunpack.c.l.b16 %v2793
  %v2828 = vunpack.c.l.b16 %v2794
  %v2829 = vunpack.c.l.b16 %v2795
  %v2830 = vunpack.c.l.b16 %v2796
  %v2831 = vunpack.c.l.b16 %v2797
  %v2832 = vunpack.c.l.b16 %v2798
  %v2833 = vunpack.c.l.b16 %v2799
  %v2834 = vunpack.c.l.b16 %v2800
  %v2835 = vunpack.c.l.b16 %v2801
  %v2836 = vunpack.c.l.b16 %v2802
  %v2837 = vunpack.c.l.b16 %v2803
  %v2838 = vunpack.c.l.b16 %v2804
  %v2839 = vunpack.c.l.b16 %v2805
  %v2840 = vunpack.c.l.b16 %v2806
  %v2841 = vpack.c.b16 %v2828, %v2827
  %v2842 = vpack.c.b16 %v2830, %v2829
  %v2843 = vpack.c.b16 %v2832, %v2831
  %v2844 = vpack.c.b16 %v2834, %v2833
  %v2845 = vpack.c.b16 %v2836, %v2835
  %v2846 = vpack.c.b16 %v2838, %v2837
  %v2847 = vpack.c.b16 %v2840, %v2839
  %v2855 = vsel %vm2414, %v2792, 0
  %v2858 = vsel %vm2418, %v2847, 0
  %2860 = vmatprep.subr.bf16.mxu0 0
  %2861 = vmatpush1.bf16.msra.mxu0 %v2841
  %2862 = vmatprep.subr.bf16.mxu0 0
  %2863 = vmatpush1.bf16.msra.mxu0 %v2842
  %2864 = vmatprep.subr.bf16.mxu0 0
  %2865 = vmatpush1.bf16.msra.mxu0 %v2843
  %2866 = vmatprep.subr.bf16.mxu0 0
  %2867 = vmatpush1.bf16.msra.mxu0 %v2844
  %2868 = vmatprep.subr.bf16.mxu0 0
  %2869 = vmatpush1.bf16.msra.mxu0 %v2845
  %2870 = vmatprep.subr.bf16.mxu0 0
  %2871 = vmatpush1.bf16.msra.mxu0 %v2846
  %2872 = vmatprep.subr.bf16.mxu0 0
  %2873 = vmatpush1.bf16.msra.mxu0 %v2858
  %2874 = vmatprep.subr.bf16.mxu0 0
  %2875 = vmatpush1.bf16.msra.mxu0 0
  %2876 = vmatprep.subr.bf16.mxu0 0
  %2877 = vmatpush1.bf16.msra.mxu0 0
  %2878 = vmatprep.subr.bf16.mxu0 0
  %2879 = vmatpush1.bf16.msra.mxu0 0
  %2880 = vmatprep.subr.bf16.mxu0 0
  %2881 = vmatpush1.bf16.msra.mxu0 0
  %2882 = vmatprep.subr.bf16.mxu0 0
  %2883 = vmatpush1.bf16.msra.mxu0 0
  %2884 = vmatprep.subr.bf16.mxu0 0
  %2885 = vmatpush1.bf16.msra.mxu0 0
  %2886 = vmatprep.subr.bf16.mxu0 0
  %2887 = vmatpush1.bf16.msra.mxu0 0
  %2888 = vmatprep.subr.bf16.mxu0 0
  %2889 = vmatpush1.bf16.msra.mxu0 0
  %2890 = vmatprep.subr.bf16.mxu0 0
  %2891 = vmatpush1.bf16.msra.mxu0 0
  %2892 = vmatprep.mubr.bf16.mxu0 0
  %2893 = vmatmul.mubr.bf16.gmra.mrb[0].mxu0 %v2855
  %v2894 = vpop.f32.mrb[0].mxu0
  %v2895 = vadd.f32 %v2811, %v2894
  %v2896 = vpop.f32.mrb[0].mxu0
  %v2897 = vpop.f32.mrb[0].mxu0
  %v2898 = vpop.f32.mrb[0].mxu0
  %2899 = vdwg.mxu0
  %v2900 = vmax.f32 %v2895, 0.0
  %v2901 = vpack.c.bf16 %v2513, %v2513
  %v2902 = vpack.c.bf16 %v2514, %v2514
  %v2903 = vpack.c.bf16 %v2515, %v2515
  %v2904 = vpack.c.bf16 %v2516, %v2516
  %v2905 = vpack.c.bf16 %v2900, %v2900
  %2907 = vrot.lane.b32.xlu0 %v2904, 17
  %v2908 = vpop.permute.xlu0 %2907
  %2912 = vrot.lane.b32.xlu0 %v2901, 17
  %v2913 = vpop.permute.xlu0 %2912
  %2914 = vrot.lane.b32.xlu0 %v2902, 17
  %v2915 = vpop.permute.xlu0 %2914
  %2916 = vrot.lane.b32.xlu0 %v2903, 17
  %v2917 = vpop.permute.xlu0 %2916
  %v2918 = vsel %vm173, %v2913, %v2915
  %v2919 = vsel %vm173, %v2915, %v2917
  %v2920 = vsel %vm173, %v2917, %v2908
  %v2926 = vsel %vm180, %v2908, %v2913
  %v2928 = vmul.bf16 %v2926, %v201
  %v2929 = vmul.bf16 %v2918, %v208
  %v2930 = vmul.bf16 %v2919, %v215
  %v2931 = vmul.bf16 %v2920, %v222
  %v2936 = vunpack.c.l.b16 %v2928
  %v2937 = vunpack.c.l.b16 %v2929
  %v2938 = vunpack.c.l.b16 %v2930
  %v2939 = vunpack.c.l.b16 %v2931
  %v2940 = vpack.c.b16 %v2937, %v2936
  %v2941 = vpack.c.b16 %v2939, %v2938
  %2944 = vst [vmem:[#allocation2] sm:$0xff] %v2940
  %2945 = vst [vmem:[#allocation2 + $0x8] sm:$0xff] %v2941
  %2946 = vrot.lane.b32.xlu0 %v2904, 16
  %v2947 = vpop.permute.xlu0 %2946
  %2948 = vrot.lane.b32.xlu0 %v2901, 16
  %v2949 = vpop.permute.xlu0 %2948
  %2950 = vrot.lane.b32.xlu0 %v2902, 16
  %v2951 = vpop.permute.xlu0 %2950
  %2952 = vrot.lane.b32.xlu0 %v2903, 16
  %v2953 = vpop.permute.xlu0 %2952
  %v2954 = vsel %vm249, %v2949, %v2951
  %v2955 = vsel %vm249, %v2951, %v2953
  %v2956 = vsel %vm249, %v2953, %v2947
  %v2962 = vsel %vm256, %v2947, %v2949
  %v2964 = vmul.bf16 %v2962, %v267
  %v2965 = vmul.bf16 %v2954, %v274
  %v2966 = vmul.bf16 %v2955, %v281
  %v2967 = vmul.bf16 %v2956, %v288
  %v2972 = vunpack.c.l.b16 %v2964
  %v2973 = vunpack.c.l.b16 %v2965
  %v2974 = vunpack.c.l.b16 %v2966
  %v2975 = vunpack.c.l.b16 %v2967
  %v2976 = vpack.c.b16 %v2973, %v2972
  %v2977 = vpack.c.b16 %v2975, %v2974
  %2980 = vst [vmem:[#allocation2 + $0x10] sm:$0xff] %v2976
  %2981 = vst [vmem:[#allocation2 + $0x18] sm:$0xff] %v2977
  %2982 = vrot.lane.b32.xlu0 %v2904, 15
  %v2983 = vpop.permute.xlu0 %2982
  %2984 = vrot.lane.b32.xlu0 %v2901, 15
  %v2985 = vpop.permute.xlu0 %2984
  %2986 = vrot.lane.b32.xlu0 %v2902, 15
  %v2987 = vpop.permute.xlu0 %2986
  %2988 = vrot.lane.b32.xlu0 %v2903, 15
  %v2989 = vpop.permute.xlu0 %2988
  %v2990 = vsel %vm315, %v2985, %v2987
  %v2991 = vsel %vm315, %v2987, %v2989
  %v2992 = vsel %vm315, %v2989, %v2983
  %v2998 = vsel %vm322, %v2983, %v2985
  %v3000 = vmul.bf16 %v2998, %v330
  %v3001 = vmul.bf16 %v2990, %v334
  %v3002 = vmul.bf16 %v2991, %v338
  %v3003 = vmul.bf16 %v2992, %v342
  %v3008 = vunpack.c.l.b16 %v3000
  %v3009 = vunpack.c.l.b16 %v3001
  %v3010 = vunpack.c.l.b16 %v3002
  %v3011 = vunpack.c.l.b16 %v3003
  %v3012 = vpack.c.b16 %v3009, %v3008
  %v3013 = vpack.c.b16 %v3011, %v3010
  %3016 = vst [vmem:[#allocation2 + $0x20] sm:$0xff] %v3012
  %3017 = vst [vmem:[#allocation2 + $0x28] sm:$0xff] %v3013
  %3018 = vrot.lane.b32.xlu0 %v2904, 1
  %v3019 = vpop.permute.xlu0 %3018
  %3020 = vrot.lane.b32.xlu0 %v2901, 1
  %v3021 = vpop.permute.xlu0 %3020
  %3022 = vrot.lane.b32.xlu0 %v2902, 1
  %v3023 = vpop.permute.xlu0 %3022
  %3024 = vrot.lane.b32.xlu0 %v2903, 1
  %v3025 = vpop.permute.xlu0 %3024
  %v3026 = vsel %vm369, %v3021, %v3023
  %v3027 = vsel %vm369, %v3023, %v3025
  %v3028 = vsel %vm369, %v3025, %v3019
  %v3034 = vsel %vm376, %v3019, %v3021
  %v3036 = vmul.bf16 %v3034, %v384
  %v3037 = vmul.bf16 %v3026, %v388
  %v3038 = vmul.bf16 %v3027, %v392
  %v3039 = vmul.bf16 %v3028, %v396
  %v3044 = vunpack.c.l.b16 %v3036
  %v3045 = vunpack.c.l.b16 %v3037
  %v3046 = vunpack.c.l.b16 %v3038
  %v3047 = vunpack.c.l.b16 %v3039
  %v3048 = vpack.c.b16 %v3045, %v3044
  %v3049 = vpack.c.b16 %v3047, %v3046
  %3052 = vst [vmem:[#allocation2 + $0x30] sm:$0xff] %v3048
  %3053 = vst [vmem:[#allocation2 + $0x38] sm:$0xff] %v3049
  %v3054 = vmul.bf16 %v2901, %v418
  %v3055 = vmul.bf16 %v2902, %v422
  %v3056 = vmul.bf16 %v2903, %v426
  %v3057 = vmul.bf16 %v2904, %v430
  %v3062 = vunpack.c.l.b16 %v3054
  %v3063 = vunpack.c.l.b16 %v3055
  %v3064 = vunpack.c.l.b16 %v3056
  %v3065 = vunpack.c.l.b16 %v3057
  %v3066 = vpack.c.b16 %v3063, %v3062
  %v3067 = vpack.c.b16 %v3065, %v3064
  %3070 = vst [vmem:[#allocation2 + $0x40] sm:$0xff] %v3066
  %3071 = vst [vmem:[#allocation2 + $0x48] sm:$0xff] %v3067
  %3072 = vrot.lane.b32.xlu0 %v2901, 127
  %v3073 = vpop.permute.xlu0 %3072
  %3074 = vrot.lane.b32.xlu0 %v2902, 127
  %v3075 = vpop.permute.xlu0 %3074
  %3076 = vrot.lane.b32.xlu0 %v2903, 127
  %v3077 = vpop.permute.xlu0 %3076
  %3078 = vrot.lane.b32.xlu0 %v2904, 127
  %v3079 = vpop.permute.xlu0 %3078
  %v3080 = vsel %vm457, %v3073, %v3075
  %v3081 = vsel %vm457, %v3075, %v3077
  %v3082 = vsel %vm457, %v3077, %v3079
  %v3088 = vsel %vm464, %v3079, %v3073
  %v3090 = vmul.bf16 %v3080, %v472
  %v3091 = vmul.bf16 %v3081, %v476
  %v3092 = vmul.bf16 %v3082, %v480
  %v3093 = vmul.bf16 %v3088, %v484
  %v3098 = vunpack.c.l.b16 %v3090
  %v3099 = vunpack.c.l.b16 %v3091
  %v3100 = vunpack.c.l.b16 %v3092
  %v3101 = vunpack.c.l.b16 %v3093
  %v3102 = vpack.c.b16 %v3099, %v3098
  %v3103 = vpack.c.b16 %v3101, %v3100
  %3106 = vst [vmem:[#allocation2 + $0x50] sm:$0xff] %v3102
  %3107 = vst [vmem:[#allocation2 + $0x58] sm:$0xff] %v3103
  %3108 = vrot.lane.b32.xlu0 %v2901, 113
  %v3109 = vpop.permute.xlu0 %3108
  %3110 = vrot.lane.b32.xlu0 %v2902, 113
  %v3111 = vpop.permute.xlu0 %3110
  %3112 = vrot.lane.b32.xlu0 %v2903, 113
  %v3113 = vpop.permute.xlu0 %3112
  %3114 = vrot.lane.b32.xlu0 %v2904, 113
  %v3115 = vpop.permute.xlu0 %3114
  %v3116 = vsel %vm511, %v3109, %v3111
  %v3117 = vsel %vm511, %v3111, %v3113
  %v3118 = vsel %vm511, %v3113, %v3115
  %v3124 = vsel %vm518, %v3115, %v3109
  %v3126 = vmul.bf16 %v3116, %v526
  %v3127 = vmul.bf16 %v3117, %v530
  %v3128 = vmul.bf16 %v3118, %v534
  %v3129 = vmul.bf16 %v3124, %v538
  %v3134 = vunpack.c.l.b16 %v3126
  %v3135 = vunpack.c.l.b16 %v3127
  %v3136 = vunpack.c.l.b16 %v3128
  %v3137 = vunpack.c.l.b16 %v3129
  %v3138 = vpack.c.b16 %v3135, %v3134
  %v3139 = vpack.c.b16 %v3137, %v3136
  %3142 = vst [vmem:[#allocation2 + $0x60] sm:$0xff] %v3138
  %3143 = vst [vmem:[#allocation2 + $0x68] sm:$0xff] %v3139
  %3144 = vrot.lane.b32.xlu0 %v2901, 112
  %v3145 = vpop.permute.xlu0 %3144
  %3146 = vrot.lane.b32.xlu0 %v2902, 112
  %v3147 = vpop.permute.xlu0 %3146
  %3148 = vrot.lane.b32.xlu0 %v2903, 112
  %v3149 = vpop.permute.xlu0 %3148
  %3150 = vrot.lane.b32.xlu0 %v2904, 112
  %v3151 = vpop.permute.xlu0 %3150
  %v3152 = vsel %vm565, %v3145, %v3147
  %v3153 = vsel %vm565, %v3147, %v3149
  %v3154 = vsel %vm565, %v3149, %v3151
  %v3160 = vsel %vm572, %v3151, %v3145
  %v3162 = vmul.bf16 %v3152, %v580
  %v3163 = vmul.bf16 %v3153, %v584
  %v3164 = vmul.bf16 %v3154, %v588
  %v3165 = vmul.bf16 %v3160, %v592
  %v3170 = vunpack.c.l.b16 %v3162
  %v3171 = vunpack.c.l.b16 %v3163
  %v3172 = vunpack.c.l.b16 %v3164
  %v3173 = vunpack.c.l.b16 %v3165
  %v3174 = vpack.c.b16 %v3171, %v3170
  %v3175 = vpack.c.b16 %v3173, %v3172
  %3178 = vst [vmem:[#allocation2 + $0x70] sm:$0xff] %v3174
  %3179 = vst [vmem:[#allocation2 + $0x78] sm:$0xff] %v3175
  %3180 = vrot.lane.b32.xlu0 %v2901, 111
  %v3181 = vpop.permute.xlu0 %3180
  %3182 = vrot.lane.b32.xlu0 %v2902, 111
  %v3183 = vpop.permute.xlu0 %3182
  %3184 = vrot.lane.b32.xlu0 %v2903, 111
  %v3185 = vpop.permute.xlu0 %3184
  %3186 = vrot.lane.b32.xlu0 %v2904, 111
  %v3187 = vpop.permute.xlu0 %3186
  %v3188 = vsel %vm619, %v3181, %v3183
  %v3189 = vsel %vm619, %v3183, %v3185
  %v3190 = vsel %vm619, %v3185, %v3187
  %v3196 = vsel %vm626, %v3187, %v3181
  %v3198 = vmul.bf16 %v3188, %v647
  %v3199 = vmul.bf16 %v3189, %v654
  %v3200 = vmul.bf16 %v3190, %v661
  %v3201 = vmul.bf16 %v3196, %v668
  %v3206 = vunpack.c.l.b16 %v3198
  %v3207 = vunpack.c.l.b16 %v3199
  %v3208 = vunpack.c.l.b16 %v3200
  %v3209 = vunpack.c.l.b16 %v3201
  %v3210 = vpack.c.b16 %v3207, %v3206
  %v3211 = vpack.c.b16 %v3209, %v3208
  %3214 = vst [vmem:[#allocation2 + $0x80] sm:$0xff] %v3210
  %3215 = vst [vmem:[#allocation2 + $0x88] sm:$0xff] %v3211
  %3216 = vmatprep.subr.bf16.mxu0 %v1776
  %3217 = vmatpush1.bf16.msra.mxu0 %v1775
  %3218 = vmatprep.subr.bf16.mxu0 %v1780
  %3219 = vmatpush1.bf16.msra.mxu0 %v1779
  %3220 = vmatprep.subr.bf16.mxu0 %v1784
  %3221 = vmatpush1.bf16.msra.mxu0 %v1783
  %3222 = vmatprep.subr.bf16.mxu0 %v1788
  %3223 = vmatpush1.bf16.msra.mxu0 %v1787
  %3224 = vmatprep.subr.bf16.mxu0 %v1792
  %3225 = vmatpush1.bf16.msra.mxu0 %v1791
  %3226 = vmatprep.subr.bf16.mxu0 %v1796
  %3227 = vmatpush1.bf16.msra.mxu0 %v1795
  %3228 = vmatprep.subr.bf16.mxu0 %v1800
  %3229 = vmatpush1.bf16.msra.mxu0 %v1799
  %3230 = vmatprep.subr.bf16.mxu0 %v1804
  %3231 = vmatpush1.bf16.msra.mxu0 %v1803
  %3232 = vmatprep.subr.bf16.mxu0 0
  %3233 = vmatpush1.bf16.msra.mxu0 0
  %3234 = vmatprep.subr.bf16.mxu0 0
  %3235 = vmatpush1.bf16.msra.mxu0 0
  %3236 = vmatprep.subr.bf16.mxu0 0
  %3237 = vmatpush1.bf16.msra.mxu0 0
  %3238 = vmatprep.subr.bf16.mxu0 0
  %3239 = vmatpush1.bf16.msra.mxu0 0
  %3240 = vmatprep.subr.bf16.mxu0 0
  %3241 = vmatpush1.bf16.msra.mxu0 0
  %3242 = vmatprep.subr.bf16.mxu0 0
  %3243 = vmatpush1.bf16.msra.mxu0 0
  %3244 = vmatprep.subr.bf16.mxu0 0
  %3245 = vmatpush1.bf16.msra.mxu0 0
  %3246 = vmatprep.subr.bf16.mxu0 0
  %3247 = vmatpush1.bf16.msra.mxu0 0
  %3248 = vmatprep.mubr.bf16.mxu0 0
  %3249 = vmatmul.mubr.bf16.gmra.mrb[0].mxu0 %v2905
  %v3250 = vpop.f32.mrb[0].mxu0
  %v3251 = vadd.f32 0.0, %v3250
  %v3252 = vpop.f32.mrb[0].mxu0
  %v3253 = vadd.f32 0.0, %v3252
  %v3254 = vpop.f32.mrb[0].mxu0
  %v3255 = vpop.f32.mrb[0].mxu0
  %3256 = vdwg.mxu0
  %3257 = vmatprep.subr.bf16.mxu0 %v1778
  %3258 = vmatpush1.bf16.msra.mxu0 %v1777
  %3259 = vmatprep.subr.bf16.mxu0 %v1782
  %3260 = vmatpush1.bf16.msra.mxu0 %v1781
  %3261 = vmatprep.subr.bf16.mxu0 %v1786
  %3262 = vmatpush1.bf16.msra.mxu0 %v1785
  %3263 = vmatprep.subr.bf16.mxu0 %v1790
  %3264 = vmatpush1.bf16.msra.mxu0 %v1789
  %3265 = vmatprep.subr.bf16.mxu0 %v1794
  %3266 = vmatpush1.bf16.msra.mxu0 %v1793
  %3267 = vmatprep.subr.bf16.mxu0 %v1798
  %3268 = vmatpush1.bf16.msra.mxu0 %v1797
  %3269 = vmatprep.subr.bf16.mxu0 %v1802
  %3270 = vmatpush1.bf16.msra.mxu0 %v1801
  %3271 = vmatprep.subr.bf16.mxu0 %v1806
  %3272 = vmatpush1.bf16.msra.mxu0 %v1805
  %3273 = vmatprep.subr.bf16.mxu0 0
  %3274 = vmatpush1.bf16.msra.mxu0 0
  %3275 = vmatprep.subr.bf16.mxu0 0
  %3276 = vmatpush1.bf16.msra.mxu0 0
  %3277 = vmatprep.subr.bf16.mxu0 0
  %3278 = vmatpush1.bf16.msra.mxu0 0
  %3279 = vmatprep.subr.bf16.mxu0 0
  %3280 = vmatpush1.bf16.msra.mxu0 0
  %3281 = vmatprep.subr.bf16.mxu0 0
  %3282 = vmatpush1.bf16.msra.mxu0 0
  %3283 = vmatprep.subr.bf16.mxu0 0
  %3284 = vmatpush1.bf16.msra.mxu0 0
  %3285 = vmatprep.subr.bf16.mxu0 0
  %3286 = vmatpush1.bf16.msra.mxu0 0
  %3287 = vmatprep.subr.bf16.mxu0 0
  %3288 = vmatpush1.bf16.msra.mxu0 0
  %3289 = vmatprep.mubr.bf16.mxu0 0
  %3290 = vmatmul.mubr.bf16.gmra.mrb[0].mxu0 %v2905
  %v3291 = vpop.f32.mrb[0].mxu0
  %v3292 = vadd.f32 0.0, %v3291
  %v3293 = vpop.f32.mrb[0].mxu0
  %v3294 = vadd.f32 0.0, %v3293
  %v3295 = vpop.f32.mrb[0].mxu0
  %v3296 = vpop.f32.mrb[0].mxu0
  %3297 = vdwg.mxu0
  %v3298 = vpack.c.bf16 %v3251, %v3251
  %v3299 = vpack.c.bf16 %v3253, %v3253
  %v3300 = vpack.c.bf16 %v3292, %v3292
  %v3301 = vpack.c.bf16 %v3294, %v3294
  %3303 = vrot.lane.b32.xlu0 %v3301, 17
  %v3304 = vpop.permute.xlu0 %3303
  %3308 = vrot.lane.b32.xlu0 %v3298, 17
  %v3309 = vpop.permute.xlu0 %3308
  %3310 = vrot.lane.b32.xlu0 %v3299, 17
  %v3311 = vpop.permute.xlu0 %3310
  %3312 = vrot.lane.b32.xlu0 %v3300, 17
  %v3313 = vpop.permute.xlu0 %3312
  %v3314 = vsel %vm173, %v3309, %v3311
  %v3315 = vsel %vm173, %v3311, %v3313
  %v3316 = vsel %vm173, %v3313, %v3304
  %v3322 = vsel %vm180, %v3304, %v3309
  %v3324 = vmul.bf16 %v3322, %v201
  %v3325 = vmul.bf16 %v3314, %v208
  %v3326 = vmul.bf16 %v3315, %v215
  %v3327 = vmul.bf16 %v3316, %v222
  %v3332 = vunpack.c.l.b16 %v3324
  %v3333 = vunpack.c.l.b16 %v3325
  %v3334 = vunpack.c.l.b16 %v3326
  %v3335 = vunpack.c.l.b16 %v3327
  %v3336 = vpack.c.b16 %v3333, %v3332
  %v3337 = vpack.c.b16 %v3335, %v3334
  %3340 = vst [vmem:[#allocation2 + $0x90] sm:$0x33] %v3336
  %3341 = vst [vmem:[#allocation2 + $0x98] sm:$0x33] %v3337
  %3342 = vrot.lane.b32.xlu0 %v3301, 16
  %v3343 = vpop.permute.xlu0 %3342
  %3344 = vrot.lane.b32.xlu0 %v3298, 16
  %v3345 = vpop.permute.xlu0 %3344
  %3346 = vrot.lane.b32.xlu0 %v3299, 16
  %v3347 = vpop.permute.xlu0 %3346
  %3348 = vrot.lane.b32.xlu0 %v3300, 16
  %v3349 = vpop.permute.xlu0 %3348
  %v3350 = vsel %vm249, %v3345, %v3347
  %v3351 = vsel %vm249, %v3347, %v3349
  %v3352 = vsel %vm249, %v3349, %v3343
  %v3358 = vsel %vm256, %v3343, %v3345
  %v3360 = vmul.bf16 %v3358, %v267
  %v3361 = vmul.bf16 %v3350, %v274
  %v3362 = vmul.bf16 %v3351, %v281
  %v3363 = vmul.bf16 %v3352, %v288
  %v3368 = vunpack.c.l.b16 %v3360
  %v3369 = vunpack.c.l.b16 %v3361
  %v3370 = vunpack.c.l.b16 %v3362
  %v3371 = vunpack.c.l.b16 %v3363
  %v3372 = vpack.c.b16 %v3369, %v3368
  %v3373 = vpack.c.b16 %v3371, %v3370
  %v3374 = vrot.slane %v3372, 6
  %v3375 = vrot.slane %v3373, 6
  %3378 = vst [vmem:[#allocation2 + $0x90] sm:$0xcc] %v3374
  %3379 = vst [vmem:[#allocation2 + $0x98] sm:$0xcc] %v3375
  %3380 = vrot.lane.b32.xlu0 %v3301, 15
  %v3381 = vpop.permute.xlu0 %3380
  %3382 = vrot.lane.b32.xlu0 %v3298, 15
  %v3383 = vpop.permute.xlu0 %3382
  %3384 = vrot.lane.b32.xlu0 %v3299, 15
  %v3385 = vpop.permute.xlu0 %3384
  %3386 = vrot.lane.b32.xlu0 %v3300, 15
  %v3387 = vpop.permute.xlu0 %3386
  %v3388 = vsel %vm315, %v3383, %v3385
  %v3389 = vsel %vm315, %v3385, %v3387
  %v3390 = vsel %vm315, %v3387, %v3381
  %v3396 = vsel %vm322, %v3381, %v3383
  %v3398 = vmul.bf16 %v3396, %v330
  %v3399 = vmul.bf16 %v3388, %v334
  %v3400 = vmul.bf16 %v3389, %v338
  %v3401 = vmul.bf16 %v3390, %v342
  %v3406 = vunpack.c.l.b16 %v3398
  %v3407 = vunpack.c.l.b16 %v3399
  %v3408 = vunpack.c.l.b16 %v3400
  %v3409 = vunpack.c.l.b16 %v3401
  %v3410 = vpack.c.b16 %v3407, %v3406
  %v3411 = vpack.c.b16 %v3409, %v3408
  %3414 = vst [vmem:[#allocation2 + $0xa0] sm:$0x33] %v3410
  %3415 = vst [vmem:[#allocation2 + $0xa8] sm:$0x33] %v3411
  %3416 = vrot.lane.b32.xlu0 %v3301, 1
  %v3417 = vpop.permute.xlu0 %3416
  %3418 = vrot.lane.b32.xlu0 %v3298, 1
  %v3419 = vpop.permute.xlu0 %3418
  %3420 = vrot.lane.b32.xlu0 %v3299, 1
  %v3421 = vpop.permute.xlu0 %3420
  %3422 = vrot.lane.b32.xlu0 %v3300, 1
  %v3423 = vpop.permute.xlu0 %3422
  %v3424 = vsel %vm369, %v3419, %v3421
  %v3425 = vsel %vm369, %v3421, %v3423
  %v3426 = vsel %vm369, %v3423, %v3417
  %v3432 = vsel %vm376, %v3417, %v3419
  %v3434 = vmul.bf16 %v3432, %v384
  %v3435 = vmul.bf16 %v3424, %v388
  %v3436 = vmul.bf16 %v3425, %v392
  %v3437 = vmul.bf16 %v3426, %v396
  %v3442 = vunpack.c.l.b16 %v3434
  %v3443 = vunpack.c.l.b16 %v3435
  %v3444 = vunpack.c.l.b16 %v3436
  %v3445 = vunpack.c.l.b16 %v3437
  %v3446 = vpack.c.b16 %v3443, %v3442
  %v3447 = vpack.c.b16 %v3445, %v3444
  %v3448 = vrot.slane %v3446, 6
  %v3449 = vrot.slane %v3447, 6
  %3452 = vst [vmem:[#allocation2 + $0xa0] sm:$0xcc] %v3448
  %3453 = vst [vmem:[#allocation2 + $0xa8] sm:$0xcc] %v3449
  %v3454 = vmul.bf16 %v3298, %v418
  %v3455 = vmul.bf16 %v3299, %v422
  %v3456 = vmul.bf16 %v3300, %v426
  %v3457 = vmul.bf16 %v3301, %v430
  %v3462 = vunpack.c.l.b16 %v3454
  %v3463 = vunpack.c.l.b16 %v3455
  %v3464 = vunpack.c.l.b16 %v3456
  %v3465 = vunpack.c.l.b16 %v3457
  %v3466 = vpack.c.b16 %v3463, %v3462
  %v3467 = vpack.c.b16 %v3465, %v3464
  %3470 = vst [vmem:[#allocation2 + $0xb0] sm:$0x33] %v3466
  %3471 = vst [vmem:[#allocation2 + $0xb8] sm:$0x33] %v3467
  %3472 = vrot.lane.b32.xlu0 %v3298, 127
  %v3473 = vpop.permute.xlu0 %3472
  %3474 = vrot.lane.b32.xlu0 %v3299, 127
  %v3475 = vpop.permute.xlu0 %3474
  %3476 = vrot.lane.b32.xlu0 %v3300, 127
  %v3477 = vpop.permute.xlu0 %3476
  %3478 = vrot.lane.b32.xlu0 %v3301, 127
  %v3479 = vpop.permute.xlu0 %3478
  %v3480 = vsel %vm457, %v3473, %v3475
  %v3481 = vsel %vm457, %v3475, %v3477
  %v3482 = vsel %vm457, %v3477, %v3479
  %v3488 = vsel %vm464, %v3479, %v3473
  %v3490 = vmul.bf16 %v3480, %v472
  %v3491 = vmul.bf16 %v3481, %v476
  %v3492 = vmul.bf16 %v3482, %v480
  %v3493 = vmul.bf16 %v3488, %v484
  %v3498 = vunpack.c.l.b16 %v3490
  %v3499 = vunpack.c.l.b16 %v3491
  %v3500 = vunpack.c.l.b16 %v3492
  %v3501 = vunpack.c.l.b16 %v3493
  %v3502 = vpack.c.b16 %v3499, %v3498
  %v3503 = vpack.c.b16 %v3501, %v3500
  %v3504 = vrot.slane %v3502, 6
  %v3505 = vrot.slane %v3503, 6
  %3508 = vst [vmem:[#allocation2 + $0xb0] sm:$0xcc] %v3504
  %3509 = vst [vmem:[#allocation2 + $0xb8] sm:$0xcc] %v3505
  %3510 = vrot.lane.b32.xlu0 %v3298, 113
  %v3511 = vpop.permute.xlu0 %3510
  %3512 = vrot.lane.b32.xlu0 %v3299, 113
  %v3513 = vpop.permute.xlu0 %3512
  %3514 = vrot.lane.b32.xlu0 %v3300, 113
  %v3515 = vpop.permute.xlu0 %3514
  %3516 = vrot.lane.b32.xlu0 %v3301, 113
  %v3517 = vpop.permute.xlu0 %3516
  %v3518 = vsel %vm511, %v3511, %v3513
  %v3519 = vsel %vm511, %v3513, %v3515
  %v3520 = vsel %vm511, %v3515, %v3517
  %v3526 = vsel %vm518, %v3517, %v3511
  %v3528 = vmul.bf16 %v3518, %v526
  %v3529 = vmul.bf16 %v3519, %v530
  %v3530 = vmul.bf16 %v3520, %v534
  %v3531 = vmul.bf16 %v3526, %v538
  %v3536 = vunpack.c.l.b16 %v3528
  %v3537 = vunpack.c.l.b16 %v3529
  %v3538 = vunpack.c.l.b16 %v3530
  %v3539 = vunpack.c.l.b16 %v3531
  %v3540 = vpack.c.b16 %v3537, %v3536
  %v3541 = vpack.c.b16 %v3539, %v3538
  %3544 = vst [vmem:[#allocation2 + $0xc0] sm:$0x33] %v3540
  %3545 = vst [vmem:[#allocation2 + $0xc8] sm:$0x33] %v3541
  %3546 = vrot.lane.b32.xlu0 %v3298, 112
  %v3547 = vpop.permute.xlu0 %3546
  %3548 = vrot.lane.b32.xlu0 %v3299, 112
  %v3549 = vpop.permute.xlu0 %3548
  %3550 = vrot.lane.b32.xlu0 %v3300, 112
  %v3551 = vpop.permute.xlu0 %3550
  %3552 = vrot.lane.b32.xlu0 %v3301, 112
  %v3553 = vpop.permute.xlu0 %3552
  %v3554 = vsel %vm565, %v3547, %v3549
  %v3555 = vsel %vm565, %v3549, %v3551
  %v3556 = vsel %vm565, %v3551, %v3553
  %v3562 = vsel %vm572, %v3553, %v3547
  %v3564 = vmul.bf16 %v3554, %v580
  %v3565 = vmul.bf16 %v3555, %v584
  %v3566 = vmul.bf16 %v3556, %v588
  %v3567 = vmul.bf16 %v3562, %v592
  %v3572 = vunpack.c.l.b16 %v3564
  %v3573 = vunpack.c.l.b16 %v3565
  %v3574 = vunpack.c.l.b16 %v3566
  %v3575 = vunpack.c.l.b16 %v3567
  %v3576 = vpack.c.b16 %v3573, %v3572
  %v3577 = vpack.c.b16 %v3575, %v3574
  %v3578 = vrot.slane %v3576, 6
  %v3579 = vrot.slane %v3577, 6
  %3582 = vst [vmem:[#allocation2 + $0xc0] sm:$0xcc] %v3578
  %3583 = vst [vmem:[#allocation2 + $0xc8] sm:$0xcc] %v3579
  %3584 = vrot.lane.b32.xlu0 %v3298, 111
  %v3585 = vpop.permute.xlu0 %3584
  %3586 = vrot.lane.b32.xlu0 %v3299, 111
  %v3587 = vpop.permute.xlu0 %3586
  %3588 = vrot.lane.b32.xlu0 %v3300, 111
  %v3589 = vpop.permute.xlu0 %3588
  %3590 = vrot.lane.b32.xlu0 %v3301, 111
  %v3591 = vpop.permute.xlu0 %3590
  %v3592 = vsel %vm619, %v3585, %v3587
  %v3593 = vsel %vm619, %v3587, %v3589
  %v3594 = vsel %vm619, %v3589, %v3591
  %v3600 = vsel %vm626, %v3591, %v3585
  %v3602 = vmul.bf16 %v3592, %v647
  %v3603 = vmul.bf16 %v3593, %v654
  %v3604 = vmul.bf16 %v3594, %v661
  %v3605 = vmul.bf16 %v3600, %v668
  %v3610 = vunpack.c.l.b16 %v3602
  %v3611 = vunpack.c.l.b16 %v3603
  %v3612 = vunpack.c.l.b16 %v3604
  %v3613 = vunpack.c.l.b16 %v3605
  %v3614 = vpack.c.b16 %v3611, %v3610
  %v3615 = vpack.c.b16 %v3613, %v3612
  %3618 = vst [vmem:[#allocation2 + $0xd0] sm:$0x33] %v3614
  %3619 = vst [vmem:[#allocation2 + $0xd8] sm:$0x33] %v3615
  %v3620 = vld [vmem:[%s13] sm:$0xf]
  %v3621 = vld [vmem:[#allocation2] sm:$0xff]
  %v3622 = vld [vmem:[#allocation2 + $0x8] sm:$0xff]
  %v3623 = vld [vmem:[#allocation2 + $0x10] sm:$0xff]
  %v3624 = vld [vmem:[#allocation2 + $0x18] sm:$0xff]
  %v3625 = vld [vmem:[#allocation2 + $0x20] sm:$0xff]
  %v3626 = vld [vmem:[#allocation2 + $0x28] sm:$0xff]
  %v3627 = vld [vmem:[#allocation2 + $0x30] sm:$0xff]
  %v3628 = vld [vmem:[#allocation2 + $0x38] sm:$0xff]
  %v3629 = vld [vmem:[#allocation2 + $0x40] sm:$0xff]
  %v3630 = vld [vmem:[#allocation2 + $0x48] sm:$0xff]
  %v3631 = vld [vmem:[#allocation2 + $0x50] sm:$0xff]
  %v3632 = vld [vmem:[#allocation2 + $0x58] sm:$0xff]
  %v3633 = vld [vmem:[#allocation2 + $0x60] sm:$0xff]
  %v3634 = vld [vmem:[#allocation2 + $0x68] sm:$0xff]
  %v3635 = vld [vmem:[#allocation2 + $0x70] sm:$0xff]
  %v3636 = vld [vmem:[#allocation2 + $0x78] sm:$0xff]
  %v3637 = vld [vmem:[#allocation2 + $0x80] sm:$0xff]
  %v3638 = vld [vmem:[#allocation2 + $0x88] sm:$0xff]
  %v3639 = vld [vmem:[#allocation2 + $0x90] sm:$0xff]
  %v3640 = vld [vmem:[#allocation2 + $0x98] sm:$0xff]
  %v3641 = vld [vmem:[#allocation2 + $0xa0] sm:$0xff]
  %v3642 = vld [vmem:[#allocation2 + $0xa8] sm:$0xff]
  %v3643 = vld [vmem:[#allocation2 + $0xb0] sm:$0xff]
  %v3644 = vld [vmem:[#allocation2 + $0xb8] sm:$0xff]
  %v3645 = vld [vmem:[#allocation2 + $0xc0] sm:$0xff]
  %v3646 = vld [vmem:[#allocation2 + $0xc8] sm:$0xff]
  %v3647 = vld [vmem:[#allocation2 + $0xd0] sm:$0x33]
  %v3648 = vld [vmem:[#allocation2 + $0xd8] sm:$0x33]
  %v3649 = vld [vmem:[%s14] sm:$0xff]
  %3651 = vset.pattern.permute.xlu0 0
  %3652 = vperm.xlu0 %3651, %v3649
  %v3653 = vpop.permute.xlu0 %3652
  %v3683 = vunpack.c.l.b16 %v3621
  %v3684 = vunpack.c.h.b16 %v3621
  %v3685 = vunpack.c.l.b16 %v3622
  %v3686 = vunpack.c.h.b16 %v3622
  %v3687 = vunpack.c.l.b16 %v3623
  %v3688 = vunpack.c.h.b16 %v3623
  %v3689 = vunpack.c.l.b16 %v3624
  %v3690 = vunpack.c.h.b16 %v3624
  %v3691 = vunpack.c.l.b16 %v3625
  %v3692 = vunpack.c.h.b16 %v3625
  %v3693 = vunpack.c.l.b16 %v3626
  %v3694 = vunpack.c.h.b16 %v3626
  %v3695 = vunpack.c.l.b16 %v3627
  %v3696 = vunpack.c.h.b16 %v3627
  %v3697 = vunpack.c.l.b16 %v3628
  %v3698 = vunpack.c.h.b16 %v3628
  %v3699 = vunpack.c.l.b16 %v3629
  %v3700 = vunpack.c.h.b16 %v3629
  %v3701 = vunpack.c.l.b16 %v3630
  %v3702 = vunpack.c.h.b16 %v3630
  %v3703 = vunpack.c.l.b16 %v3631
  %v3704 = vunpack.c.h.b16 %v3631
  %v3705 = vunpack.c.l.b16 %v3632
  %v3706 = vunpack.c.h.b16 %v3632
  %v3707 = vunpack.c.l.b16 %v3633
  %v3708 = vunpack.c.h.b16 %v3633
  %v3709 = vunpack.c.l.b16 %v3634
  %v3710 = vunpack.c.h.b16 %v3634
  %v3711 = vunpack.c.l.b16 %v3635
  %v3712 = vunpack.c.h.b16 %v3635
  %v3713 = vunpack.c.l.b16 %v3636
  %v3714 = vunpack.c.h.b16 %v3636
  %v3715 = vunpack.c.l.b16 %v3637
  %v3716 = vunpack.c.h.b16 %v3637
  %v3717 = vunpack.c.l.b16 %v3638
  %v3718 = vunpack.c.h.b16 %v3638
  %v3719 = vunpack.c.l.b16 %v3639
  %v3720 = vunpack.c.h.b16 %v3639
  %v3721 = vunpack.c.l.b16 %v3640
  %v3722 = vunpack.c.h.b16 %v3640
  %v3723 = vunpack.c.l.b16 %v3641
  %v3724 = vunpack.c.h.b16 %v3641
  %v3725 = vunpack.c.l.b16 %v3642
  %v3726 = vunpack.c.h.b16 %v3642
  %v3727 = vunpack.c.l.b16 %v3643
  %v3728 = vunpack.c.h.b16 %v3643
  %v3729 = vunpack.c.l.b16 %v3644
  %v3730 = vunpack.c.h.b16 %v3644
  %v3731 = vunpack.c.l.b16 %v3645
  %v3732 = vunpack.c.h.b16 %v3645
  %v3733 = vunpack.c.l.b16 %v3646
  %v3734 = vunpack.c.h.b16 %v3646
  %v3735 = vunpack.c.l.b16 %v3647
  %v3736 = vunpack.c.h.b16 %v3647
  %v3737 = vunpack.c.l.b16 %v3648
  %v3738 = vunpack.c.h.b16 %v3648
  %v3739 = vpack.c.b16 %v3687, %v3683
  %v3740 = vpack.c.b16 %v3688, %v3684
  %v3741 = vpack.c.b16 %v3689, %v3685
  %v3742 = vpack.c.b16 %v3690, %v3686
  %v3743 = vpack.c.b16 %v3695, %v3691
  %v3744 = vpack.c.b16 %v3696, %v3692
  %v3745 = vpack.c.b16 %v3697, %v3693
  %v3746 = vpack.c.b16 %v3698, %v3694
  %v3747 = vpack.c.b16 %v3703, %v3699
  %v3748 = vpack.c.b16 %v3704, %v3700
  %v3749 = vpack.c.b16 %v3705, %v3701
  %v3750 = vpack.c.b16 %v3706, %v3702
  %v3751 = vpack.c.b16 %v3711, %v3707
  %v3752 = vpack.c.b16 %v3712, %v3708
  %v3753 = vpack.c.b16 %v3713, %v3709
  %v3754 = vpack.c.b16 %v3714, %v3710
  %v3755 = vpack.c.b16 %v3719, %v3715
  %v3756 = vpack.c.b16 %v3720, %v3716
  %v3757 = vpack.c.b16 %v3721, %v3717
  %v3758 = vpack.c.b16 %v3722, %v3718
  %v3759 = vpack.c.b16 %v3727, %v3723
  %v3760 = vpack.c.b16 %v3728, %v3724
  %v3761 = vpack.c.b16 %v3729, %v3725
  %v3762 = vpack.c.b16 %v3730, %v3726
  %v3763 = vpack.c.b16 %v3735, %v3731
  %v3764 = vpack.c.b16 %v3736, %v3732
  %v3765 = vpack.c.b16 %v3737, %v3733
  %v3766 = vpack.c.b16 %v3738, %v3734
  %v3792 = vsel %vm2414, %v3620, 0
  %v3795 = vsel %vm2418, %v3763, 0
  %v3798 = vsel %vm2418, %v3764, 0
  %v3801 = vsel %vm2418, %v3765, 0
  %v3804 = vsel %vm2418, %v3766, 0
  %3806 = vmatprep.subr.bf16.mxu0 %v3740
  %3807 = vmatpush1.bf16.msra.mxu0 %v3739
  %3808 = vmatprep.subr.bf16.mxu0 %v3744
  %3809 = vmatpush1.bf16.msra.mxu0 %v3743
  %3810 = vmatprep.subr.bf16.mxu0 %v3748
  %3811 = vmatpush1.bf16.msra.mxu0 %v3747
  %3812 = vmatprep.subr.bf16.mxu0 %v3752
  %3813 = vmatpush1.bf16.msra.mxu0 %v3751
  %3814 = vmatprep.subr.bf16.mxu0 %v3756
  %3815 = vmatpush1.bf16.msra.mxu0 %v3755
  %3816 = vmatprep.subr.bf16.mxu0 %v3760
  %3817 = vmatpush1.bf16.msra.mxu0 %v3759
  %3818 = vmatprep.subr.bf16.mxu0 %v3798
  %3819 = vmatpush1.bf16.msra.mxu0 %v3795
  %3820 = vmatprep.subr.bf16.mxu0 0
  %3821 = vmatpush1.bf16.msra.mxu0 0
  %3822 = vmatprep.subr.bf16.mxu0 0
  %3823 = vmatpush1.bf16.msra.mxu0 0
  %3824 = vmatprep.subr.bf16.mxu0 0
  %3825 = vmatpush1.bf16.msra.mxu0 0
  %3826 = vmatprep.subr.bf16.mxu0 0
  %3827 = vmatpush1.bf16.msra.mxu0 0
  %3828 = vmatprep.subr.bf16.mxu0 0
  %3829 = vmatpush1.bf16.msra.mxu0 0
  %3830 = vmatprep.subr.bf16.mxu0 0
  %3831 = vmatpush1.bf16.msra.mxu0 0
  %3832 = vmatprep.subr.bf16.mxu0 0
  %3833 = vmatpush1.bf16.msra.mxu0 0
  %3834 = vmatprep.subr.bf16.mxu0 0
  %3835 = vmatpush1.bf16.msra.mxu0 0
  %3836 = vmatprep.subr.bf16.mxu0 0
  %3837 = vmatpush1.bf16.msra.mxu0 0
  %3838 = vmatprep.mubr.bf16.mxu0 0
  %3839 = vmatmul.mubr.bf16.gmra.mrb[0].mxu0 %v3792
  %v3840 = vpop.f32.mrb[0].mxu0
  %v3841 = vadd.f32 %v3653, %v3840
  %v3842 = vpop.f32.mrb[0].mxu0
  %v3843 = vadd.f32 %v3653, %v3842
  %v3844 = vpop.f32.mrb[0].mxu0
  %v3845 = vpop.f32.mrb[0].mxu0
  %3846 = vdwg.mxu0
  %3847 = vmatprep.subr.bf16.mxu0 %v3742
  %3848 = vmatpush1.bf16.msra.mxu0 %v3741
  %3849 = vmatprep.subr.bf16.mxu0 %v3746
  %3850 = vmatpush1.bf16.msra.mxu0 %v3745
  %3851 = vmatprep.subr.bf16.mxu0 %v3750
  %3852 = vmatpush1.bf16.msra.mxu0 %v3749
  %3853 = vmatprep.subr.bf16.mxu0 %v3754
  %3854 = vmatpush1.bf16.msra.mxu0 %v3753
  %3855 = vmatprep.subr.bf16.mxu0 %v3758
  %3856 = vmatpush1.bf16.msra.mxu0 %v3757
  %3857 = vmatprep.subr.bf16.mxu0 %v3762
  %3858 = vmatpush1.bf16.msra.mxu0 %v3761
  %3859 = vmatprep.subr.bf16.mxu0 %v3804
  %3860 = vmatpush1.bf16.msra.mxu0 %v3801
  %3861 = vmatprep.subr.bf16.mxu0 0
  %3862 = vmatpush1.bf16.msra.mxu0 0
  %3863 = vmatprep.subr.bf16.mxu0 0
  %3864 = vmatpush1.bf16.msra.mxu0 0
  %3865 = vmatprep.subr.bf16.mxu0 0
  %3866 = vmatpush1.bf16.msra.mxu0 0
  %3867 = vmatprep.subr.bf16.mxu0 0
  %3868 = vmatpush1.bf16.msra.mxu0 0
  %3869 = vmatprep.subr.bf16.mxu0 0
  %3870 = vmatpush1.bf16.msra.mxu0 0
  %3871 = vmatprep.subr.bf16.mxu0 0
  %3872 = vmatpush1.bf16.msra.mxu0 0
  %3873 = vmatprep.subr.bf16.mxu0 0
  %3874 = vmatpush1.bf16.msra.mxu0 0
  %3875 = vmatprep.subr.bf16.mxu0 0
  %3876 = vmatpush1.bf16.msra.mxu0 0
  %3877 = vmatprep.subr.bf16.mxu0 0
  %3878 = vmatpush1.bf16.msra.mxu0 0
  %3879 = vmatprep.mubr.bf16.mxu0 0
  %3880 = vmatmul.mubr.bf16.gmra.mrb[0].mxu0 %v3792
  %v3881 = vpop.f32.mrb[0].mxu0
  %v3882 = vadd.f32 %v3653, %v3881
  %v3883 = vpop.f32.mrb[0].mxu0
  %v3884 = vadd.f32 %v3653, %v3883
  %v3885 = vpop.f32.mrb[0].mxu0
  %v3886 = vpop.f32.mrb[0].mxu0
  %3887 = vdwg.mxu0
  %v3888 = vmax.f32 %v3841, 0.0
  %v3889 = vmax.f32 %v3843, 0.0
  %v3890 = vmax.f32 %v3882, 0.0
  %v3891 = vmax.f32 %v3884, 0.0
  %3892 = vst [vmem:[%s15] sm:$0xff] %v3888
  %3893 = vst [vmem:[%s15 + $0x8] sm:$0xff] %v3889
  %3894 = vst [vmem:[%s15 + $0x10] sm:$0xff] %v3890
  %3895 = vst [vmem:[%s15 + $0x18] sm:$0xff] %v3891
  // Predicated region
  $region62: #{sim_forward.1} parent=0 // pred_check
    _
  $region63: #{sim_forward.1} parent=0 // pred_check_branch
    %3897 = sbr.rel (0) target = $region65
  $region64: #{sim_forward.1} parent=0 // pred_region
    _
  $region65: #{sim_forward.1} parent=0 // pred_fallthru
    _
  // Predicated region
  $region66: #{sim_forward.1} parent=0 // pred_check
    _
  $region67: #{sim_forward.1} parent=0 // pred_check_branch
    %3899 = sbr.rel (0) target = $region69
  $region68: #{sim_forward.1} parent=0 // pred_region
    _
  $region69: #{sim_forward.1} parent=0 // pred_fallthru
    _

</llo_original>
